<compile_context>
chip_gen: v5e
topology: v5e:2x2
jax: 0.10.0
libtpu: 0.0.40
codegen_flags: <defaults>
</compile_context>

<pallas_src>
import functools
import math

import jax
import jax.numpy as jnp
from jax.experimental import pallas as pl
from jax.experimental.pallas import tpu as pltpu

# ----------------------- tiny BERT config -----------------------
VOCAB = 100
HIDDEN = 32
HEADS = 4
HEAD_DIM = HIDDEN // HEADS
INTERMEDIATE = 64
LAYERS = 2
MAX_POS = 64
TYPE_VOCAB = 2
EPS = 1e-12  # BERT LayerNorm eps


# ----------------------- fused forward kernel -----------------------
def bert_forward_kernel(
    ids_ref, wemb_ref, pt_ref, emb_g_ref, emb_b_ref,
    wqkv_ref, bqkv_ref, wo_ref, bo_ref, ln1_g_ref, ln1_b_ref,
    w1_ref, b1_ref, w2_ref, b2_ref, ln2_g_ref, ln2_b_ref,
    o_ref,
    *, B, S,
):
    """Full 2-layer BERT encoder on a (B*S, HIDDEN) activation slab in VMEM."""

    def layernorm(y, g, b):
        mu = jnp.mean(y, axis=-1, keepdims=True)
        var = jnp.mean((y - mu) ** 2, axis=-1, keepdims=True)
        return (y - mu) * jax.lax.rsqrt(var + EPS) * g + b

    # --- embedding lookup: one-hot matmul gather (in-kernel, MXU) ---
    ids = ids_ref[...]                                           # (B*S, 1) i32
    iota = jax.lax.broadcasted_iota(jnp.int32, (B * S, VOCAB), 1)
    onehot = jnp.where(ids == iota, 1.0, 0.0).astype(jnp.bfloat16)
    word = jnp.dot(onehot, wemb_ref[...],
                   preferred_element_type=jnp.float32)           # (B*S, H) f32
    pos_type = pt_ref[0:S, :]                                    # (S, H) f32
    emb = word.reshape(B, S, HIDDEN) + pos_type[None, :, :]
    x = layernorm(emb.reshape(B * S, HIDDEN), emb_g_ref[...], emb_b_ref[...])

    inv_sqrt2 = 1.0 / math.sqrt(2.0)

    for l in range(LAYERS):  # static unroll (LAYERS = 2)
        # --- fused QKV projection (1/sqrt(d) folded into Q weights) ---
        qkv = jnp.dot(x.astype(jnp.bfloat16), wqkv_ref[l],
                      preferred_element_type=jnp.float32) + bqkv_ref[l]  # (B*S, 3H) f32

        # --- multi-head self-attention: all heads per batch in one batched
        #     einsum pair; layout built only from tile-aligned transposes and
        #     sublane-boundary reshapes (no 8-lane column slices, no lane
        #     concats) ---
        ctx_parts = []
        for b in range(B):
            qkv_bT = qkv[b * S:(b + 1) * S, :].T                 # (3H, S)
            q_hT = qkv_bT[0 * HIDDEN:1 * HIDDEN, :].reshape(HEADS, HEAD_DIM, S)
            k_hT = qkv_bT[1 * HIDDEN:2 * HIDDEN, :].reshape(HEADS, HEAD_DIM, S)
            v_hT = qkv_bT[2 * HIDDEN:3 * HIDDEN, :].reshape(HEADS, HEAD_DIM, S)
            q_h = jnp.transpose(q_hT, (0, 2, 1)).astype(jnp.bfloat16)  # (H,S,d)
            k_h = jnp.transpose(k_hT, (0, 2, 1)).astype(jnp.bfloat16)
            v_h = jnp.transpose(v_hT, (0, 2, 1)).astype(jnp.bfloat16)

            s = jnp.einsum('hqd,hkd->hqk', q_h, k_h,
                           preferred_element_type=jnp.float32)   # (HEADS, S, S)
            s = s - jnp.max(s, axis=-1, keepdims=True)
            p = jnp.exp(s)
            p = p * pl.reciprocal(jnp.sum(p, axis=-1, keepdims=True),
                                  approx=True)
            ctx_h = jnp.einsum('hqk,hkd->hqd', p.astype(jnp.bfloat16), v_h,
                               preferred_element_type=jnp.float32)  # (HEADS,S,d)
            # back to (S, HIDDEN): (H,S,d) -> (H,d,S) -> (HIDDEN,S) -> (S,HIDDEN)
            ctx_b = jnp.transpose(ctx_h, (0, 2, 1)).reshape(HIDDEN, S).T
            ctx_parts.append(ctx_b)
        ctx = jnp.concatenate(ctx_parts, axis=0)                 # (B*S, H)

        # --- attention output dense + residual + LayerNorm (fused epilogue) ---
        attn_out = jnp.dot(ctx.astype(jnp.bfloat16), wo_ref[l],
                           preferred_element_type=jnp.float32) + bo_ref[l]
        x = layernorm(attn_out + x, ln1_g_ref[l], ln1_b_ref[l])

        # --- FFN: matmul + bias + exact (erf) GELU fused ---
        inter = jnp.dot(x.astype(jnp.bfloat16), w1_ref[l],
                        preferred_element_type=jnp.float32) + b1_ref[l]
        inter = 0.5 * inter * (1.0 + jax.lax.erf(inter * inv_sqrt2))

        # --- FFN-2 matmul + bias + residual + LayerNorm (fused epilogue) ---
        ffn_out = jnp.dot(inter.astype(jnp.bfloat16), w2_ref[l],
                          preferred_element_type=jnp.float32) + b2_ref[l]
        x = layernorm(ffn_out + x, ln2_g_ref[l], ln2_b_ref[l])

    # --- MyBert: [CLS] rows via reshape + sublane select (no per-row concat) ---
    x3 = x.reshape(B, S, HIDDEN)
    o_ref[...] = x3[:, 0, :]


def bert_forward_pallas(ids_flat, params, B, S):
    """One pallas_call: everything resident in VMEM, single grid step."""
    args = (
        ids_flat,                 # (B*S, 1) int32
        params["word_emb"],       # (V, H)   bf16
        params["pos_type"],       # (MAX_POS, H) f32 (pos + type0, pre-summed)
        params["emb_ln_g"],       # (1, H)
        params["emb_ln_b"],       # (1, H)
        params["wqkv"],           # (L, H, 3H) bf16
        params["bqkv"],           # (L, 1, 3H)
        params["wo"],             # (L, H, H)  bf16
        params["bo"],             # (L, 1, H)
        params["ln1_g"],          # (L, 1, H)
        params["ln1_b"],          # (L, 1, H)
        params["w1"],             # (L, H, I)  bf16
        params["b1"],             # (L, 1, I)
        params["w2"],             # (L, I, H)  bf16
        params["b2"],             # (L, 1, H)
        params["ln2_g"],          # (L, 1, H)
        params["ln2_b"],          # (L, 1, H)
    )

    def full_spec(shape):
        rank = len(shape)
        return pl.BlockSpec(shape, lambda i, _r=rank: (0,) * _r)

    return pl.pallas_call(
        functools.partial(bert_forward_kernel, B=B, S=S),
        out_shape=jax.ShapeDtypeStruct((B, HIDDEN), jnp.float32),
        grid=(1,),
        in_specs=[full_spec(a.shape) for a in args],
        out_specs=full_spec((B, HIDDEN)),
        compiler_params=pltpu.CompilerParams(
            dimension_semantics=("arbitrary",)),
    )(*args)


# ----------------------- parameter init (deterministic) -----------------------
def init_params(key):
    def nxt():
        nonlocal key
        key, sub = jax.random.split(key)
        return sub

    def w(shape):
        return (0.02 * jax.random.normal(nxt(), shape)).astype(jnp.float32)

    word_emb = w((VOCAB, HIDDEN))
    pos_emb = w((MAX_POS, HIDDEN))
    type_emb = w((TYPE_VOCAB, HIDDEN))

    params = {
        "word_emb": word_emb.astype(jnp.bfloat16),
        # token_type_ids are all zero in MyBert's forward -> pre-sum type row 0.
        "pos_type": pos_emb + type_emb[0][None, :],
        "emb_ln_g": jnp.ones((1, HIDDEN), jnp.float32),
        "emb_ln_b": jnp.zeros((1, HIDDEN), jnp.float32),
    }

    stacked = {k: [] for k in
               ("wqkv", "bqkv", "wo", "bo", "ln1_g", "ln1_b",
                "w1", "b1", "w2", "b2", "ln2_g", "ln2_b")}
    q_scale = 1.0 / math.sqrt(HEAD_DIM)
    for _ in range(LAYERS):
        wq, wk, wv = (w((HIDDEN, HIDDEN)) for _ in range(3))
        wq = wq * q_scale  # fold 1/sqrt(d) score scale into Q (Q bias is zero)
        stacked["wqkv"].append(
            jnp.concatenate([wq, wk, wv], axis=1).astype(jnp.bfloat16))
        stacked["bqkv"].append(jnp.zeros((1, 3 * HIDDEN), jnp.float32))
        stacked["wo"].append(w((HIDDEN, HIDDEN)).astype(jnp.bfloat16))
        stacked["bo"].append(jnp.zeros((1, HIDDEN), jnp.float32))
        stacked["ln1_g"].append(jnp.ones((1, HIDDEN), jnp.float32))
        stacked["ln1_b"].append(jnp.zeros((1, HIDDEN), jnp.float32))
        stacked["w1"].append(w((HIDDEN, INTERMEDIATE)).astype(jnp.bfloat16))
        stacked["b1"].append(jnp.zeros((1, INTERMEDIATE), jnp.float32))
        stacked["w2"].append(w((INTERMEDIATE, HIDDEN)).astype(jnp.bfloat16))
        stacked["b2"].append(jnp.zeros((1, HIDDEN), jnp.float32))
        stacked["ln2_g"].append(jnp.ones((1, HIDDEN), jnp.float32))
        stacked["ln2_b"].append(jnp.zeros((1, HIDDEN), jnp.float32))
    for name, vals in stacked.items():
        params[name] = jnp.stack(vals, axis=0)
    return params


# ----------------------- forward pass -----------------------
@jax.jit
def my_bert_forward(params, input_ids):
    B, S = input_ids.shape
    # Only glue left outside the kernel: flatten ids to a (B*S, 1) column so
    # the in-kernel one-hot gather needs no lane->sublane relayout.
    ids_flat = input_ids.reshape(B * S, 1).astype(jnp.int32)
    return bert_forward_pallas(ids_flat, params, B, S)           # (B, HIDDEN)


# ----------------------- main -----------------------
if __name__ == "__main__":
    key = jax.random.PRNGKey(0)
    pkey, dkey = jax.random.split(key)
    params = init_params(pkey)

    B, S = 2, 8
    input_ids = jax.random.randint(dkey, (B, S), 0, VOCAB, dtype=jnp.int32)

    out = my_bert_forward(params, input_ids)
    out = jax.block_until_ready(out)
    assert out.shape == (B, HIDDEN)
    assert jnp.all(jnp.isfinite(out))
    print("KERNEL_OK")
</pallas_src>

<mosaic_0001>
module attributes {stable_mosaic.version = 11 : i64} {
  func.func @bert_forward_kernel(%arg0: i32, %arg1: memref<16x1xi32, #tpu.memory_space<vmem>>, %arg2: memref<100x32xbf16, #tpu.memory_space<vmem>>, %arg3: memref<64x32xf32, #tpu.memory_space<vmem>>, %arg4: memref<1x32xf32, #tpu.memory_space<vmem>>, %arg5: memref<1x32xf32, #tpu.memory_space<vmem>>, %arg6: memref<2x32x96xbf16, #tpu.memory_space<vmem>>, %arg7: memref<2x1x96xf32, #tpu.memory_space<vmem>>, %arg8: memref<2x32x32xbf16, #tpu.memory_space<vmem>>, %arg9: memref<2x1x32xf32, #tpu.memory_space<vmem>>, %arg10: memref<2x1x32xf32, #tpu.memory_space<vmem>>, %arg11: memref<2x1x32xf32, #tpu.memory_space<vmem>>, %arg12: memref<2x32x64xbf16, #tpu.memory_space<vmem>>, %arg13: memref<2x1x64xf32, #tpu.memory_space<vmem>>, %arg14: memref<2x64x32xbf16, #tpu.memory_space<vmem>>, %arg15: memref<2x1x32xf32, #tpu.memory_space<vmem>>, %arg16: memref<2x1x32xf32, #tpu.memory_space<vmem>>, %arg17: memref<2x1x32xf32, #tpu.memory_space<vmem>>, %arg18: memref<2x32xf32, #tpu.memory_space<vmem>>) attributes {dimension_semantics = [#tpu.dimension_semantics<arbitrary>], iteration_bounds = array<i64: 1>, scalar_prefetch = 0 : i64, scratch_operands = 0 : i64, tpu.core_type = #tpu.core_type<tc>, window_params = [{pipeline_mode = #tpu.pipeline_mode<synchronous>, transform_indices = @transform_0, window_bounds = array<i64: 16, 1>}, {pipeline_mode = #tpu.pipeline_mode<synchronous>, transform_indices = @transform_1, window_bounds = array<i64: 100, 32>}, {pipeline_mode = #tpu.pipeline_mode<synchronous>, transform_indices = @transform_2, window_bounds = array<i64: 64, 32>}, {pipeline_mode = #tpu.pipeline_mode<synchronous>, transform_indices = @transform_3, window_bounds = array<i64: 1, 32>}, {pipeline_mode = #tpu.pipeline_mode<synchronous>, transform_indices = @transform_4, window_bounds = array<i64: 1, 32>}, {pipeline_mode = #tpu.pipeline_mode<synchronous>, transform_indices = @transform_5, window_bounds = array<i64: 2, 32, 96>}, {pipeline_mode = #tpu.pipeline_mode<synchronous>, transform_indices = @transform_6, window_bounds = array<i64: 2, 1, 96>}, {pipeline_mode = #tpu.pipeline_mode<synchronous>, transform_indices = @transform_7, window_bounds = array<i64: 2, 32, 32>}, {pipeline_mode = #tpu.pipeline_mode<synchronous>, transform_indices = @transform_8, window_bounds = array<i64: 2, 1, 32>}, {pipeline_mode = #tpu.pipeline_mode<synchronous>, transform_indices = @transform_9, window_bounds = array<i64: 2, 1, 32>}, {pipeline_mode = #tpu.pipeline_mode<synchronous>, transform_indices = @transform_10, window_bounds = array<i64: 2, 1, 32>}, {pipeline_mode = #tpu.pipeline_mode<synchronous>, transform_indices = @transform_11, window_bounds = array<i64: 2, 32, 64>}, {pipeline_mode = #tpu.pipeline_mode<synchronous>, transform_indices = @transform_12, window_bounds = array<i64: 2, 1, 64>}, {pipeline_mode = #tpu.pipeline_mode<synchronous>, transform_indices = @transform_13, window_bounds = array<i64: 2, 64, 32>}, {pipeline_mode = #tpu.pipeline_mode<synchronous>, transform_indices = @transform_14, window_bounds = array<i64: 2, 1, 32>}, {pipeline_mode = #tpu.pipeline_mode<synchronous>, transform_indices = @transform_15, window_bounds = array<i64: 2, 1, 32>}, {pipeline_mode = #tpu.pipeline_mode<synchronous>, transform_indices = @transform_16, window_bounds = array<i64: 2, 1, 32>}, {pipeline_mode = #tpu.pipeline_mode<synchronous>, transform_indices = @transform_17, window_bounds = array<i64: 2, 32>}]} {
    %c0 = arith.constant 0 : index
    %c0_0 = arith.constant 0 : index
    %0 = vector.load %arg1[%c0, %c0_0] : memref<16x1xi32, #tpu.memory_space<vmem>>, vector<16x1xi32>
    %1 = tpu.iota {dimensions = array<i32: 1>} : vector<16x100xi32>
    %2 = vector.broadcast %0 : vector<16x1xi32> to vector<16x100xi32>
    %3 = arith.cmpi eq, %2, %1 : vector<16x100xi32>
    %cst = arith.constant 1.000000e+00 : f32
    %cst_1 = arith.constant 0.000000e+00 : f32
    %4 = vector.broadcast %cst : f32 to vector<16x100xf32>
    %5 = vector.broadcast %cst_1 : f32 to vector<16x100xf32>
    %6 = arith.select %3, %4, %5 : vector<16x100xi1>, vector<16x100xf32>
    %7 = arith.truncf %6 : vector<16x100xf32> to vector<16x100xbf16>
    %c0_2 = arith.constant 0 : index
    %c0_3 = arith.constant 0 : index
    %8 = vector.load %arg2[%c0_2, %c0_3] : memref<100x32xbf16, #tpu.memory_space<vmem>>, vector<100x32xbf16>
    %cst_4 = arith.constant dense<0.000000e+00> : vector<16x32xf32>
    %9 = tpu.matmul %7, %8, %cst_4 {dimension_numbers = #tpu.dot_dimension_numbers<[1], [0], [0], [1], [0, 0, 1, 1], [], []>} : vector<16x100xbf16>, vector<100x32xbf16>, vector<16x32xf32> -> vector<16x32xf32>
    %c0_5 = arith.constant 0 : index
    %c0_6 = arith.constant 0 : index
    %10 = vector.load %arg3[%c0_5, %c0_6] : memref<64x32xf32, #tpu.memory_space<vmem>>, vector<8x32xf32>
    %11 = vector.shape_cast %9 : vector<16x32xf32> to vector<2x8x32xf32>
    %12 = vector.shape_cast %10 : vector<8x32xf32> to vector<1x8x32xf32>
    %13 = vector.broadcast %12 : vector<1x8x32xf32> to vector<2x8x32xf32>
    %14 = arith.addf %11, %13 : vector<2x8x32xf32>
    %15 = vector.shape_cast %14 : vector<2x8x32xf32> to vector<16x32xf32>
    %c0_7 = arith.constant 0 : index
    %c0_8 = arith.constant 0 : index
    %16 = vector.load %arg4[%c0_7, %c0_8] : memref<1x32xf32, #tpu.memory_space<vmem>>, vector<1x32xf32>
    %c0_9 = arith.constant 0 : index
    %c0_10 = arith.constant 0 : index
    %17 = vector.load %arg5[%c0_9, %c0_10] : memref<1x32xf32, #tpu.memory_space<vmem>>, vector<1x32xf32>
    %cst_11 = arith.constant dense<0.000000e+00> : vector<16xf32>
    %18 = vector.multi_reduction <add>, %15, %cst_11 [1] : vector<16x32xf32> to vector<16xf32>
    %19 = vector.shape_cast %18 : vector<16xf32> to vector<16x1xf32>
    %cst_12 = arith.constant 3.200000e+01 : f32
    %20 = vector.broadcast %cst_12 : f32 to vector<16x1xf32>
    %21 = arith.divf %19, %20 : vector<16x1xf32>
    %22 = vector.broadcast %21 : vector<16x1xf32> to vector<16x32xf32>
    %23 = arith.subf %15, %22 : vector<16x32xf32>
    %24 = arith.mulf %23, %23 : vector<16x32xf32>
    %cst_13 = arith.constant dense<0.000000e+00> : vector<16xf32>
    %25 = vector.multi_reduction <add>, %24, %cst_13 [1] : vector<16x32xf32> to vector<16xf32>
    %26 = vector.shape_cast %25 : vector<16xf32> to vector<16x1xf32>
    %cst_14 = arith.constant 3.200000e+01 : f32
    %27 = vector.broadcast %cst_14 : f32 to vector<16x1xf32>
    %28 = arith.divf %26, %27 : vector<16x1xf32>
    %29 = vector.broadcast %21 : vector<16x1xf32> to vector<16x32xf32>
    %30 = arith.subf %15, %29 : vector<16x32xf32>
    %cst_15 = arith.constant 9.99999996E-13 : f32
    %31 = vector.broadcast %cst_15 : f32 to vector<16x1xf32>
    %32 = arith.addf %28, %31 : vector<16x1xf32>
    %33 = math.rsqrt %32 : vector<16x1xf32>
    %34 = vector.broadcast %33 : vector<16x1xf32> to vector<16x32xf32>
    %35 = arith.mulf %30, %34 : vector<16x32xf32>
    %36 = vector.broadcast %16 : vector<1x32xf32> to vector<16x32xf32>
    %37 = arith.mulf %35, %36 : vector<16x32xf32>
    %38 = vector.broadcast %17 : vector<1x32xf32> to vector<16x32xf32>
    %39 = arith.addf %37, %38 : vector<16x32xf32>
    %40 = arith.truncf %39 : vector<16x32xf32> to vector<16x32xbf16>
    %c0_16 = arith.constant 0 : index
    %c0_17 = arith.constant 0 : index
    %c0_18 = arith.constant 0 : index
    %41 = vector.load %arg6[%c0_16, %c0_17, %c0_18] : memref<2x32x96xbf16, #tpu.memory_space<vmem>>, vector<1x32x96xbf16>
    %42 = vector.shape_cast %41 : vector<1x32x96xbf16> to vector<32x96xbf16>
    %cst_19 = arith.constant dense<0.000000e+00> : vector<16x96xf32>
    %43 = tpu.matmul %40, %42, %cst_19 {dimension_numbers = #tpu.dot_dimension_numbers<[1], [0], [0], [1], [0, 0, 1, 1], [], []>} : vector<16x32xbf16>, vector<32x96xbf16>, vector<16x96xf32> -> vector<16x96xf32>
    %c0_20 = arith.constant 0 : index
    %c0_21 = arith.constant 0 : index
    %c0_22 = arith.constant 0 : index
    %44 = vector.load %arg7[%c0_20, %c0_21, %c0_22] : memref<2x1x96xf32, #tpu.memory_space<vmem>>, vector<1x1x96xf32>
    %45 = vector.shape_cast %44 : vector<1x1x96xf32> to vector<1x96xf32>
    %46 = vector.broadcast %45 : vector<1x96xf32> to vector<16x96xf32>
    %47 = arith.addf %43, %46 : vector<16x96xf32>
    %48 = vector.extract_strided_slice %47 {offsets = [0, 0], sizes = [8, 96], strides = [1, 1]} : vector<16x96xf32> to vector<8x96xf32>
    %49 = tpu.transpose %48, [1, 0] : vector<8x96xf32> -> vector<96x8xf32>
    %50 = vector.extract_strided_slice %49 {offsets = [0, 0], sizes = [32, 8], strides = [1, 1]} : vector<96x8xf32> to vector<32x8xf32>
    %51 = vector.shape_cast %50 : vector<32x8xf32> to vector<4x8x8xf32>
    %52 = vector.extract_strided_slice %49 {offsets = [32, 0], sizes = [32, 8], strides = [1, 1]} : vector<96x8xf32> to vector<32x8xf32>
    %53 = vector.shape_cast %52 : vector<32x8xf32> to vector<4x8x8xf32>
    %54 = vector.extract_strided_slice %49 {offsets = [64, 0], sizes = [32, 8], strides = [1, 1]} : vector<96x8xf32> to vector<32x8xf32>
    %55 = vector.shape_cast %54 : vector<32x8xf32> to vector<4x8x8xf32>
    %56 = tpu.transpose %51, [0, 2, 1] : vector<4x8x8xf32> -> vector<4x8x8xf32>
    %57 = arith.truncf %56 : vector<4x8x8xf32> to vector<4x8x8xbf16>
    %58 = tpu.transpose %53, [0, 2, 1] : vector<4x8x8xf32> -> vector<4x8x8xf32>
    %59 = arith.truncf %58 : vector<4x8x8xf32> to vector<4x8x8xbf16>
    %60 = tpu.transpose %55, [0, 2, 1] : vector<4x8x8xf32> -> vector<4x8x8xf32>
    %61 = arith.truncf %60 : vector<4x8x8xf32> to vector<4x8x8xbf16>
    "tpu.trace_start"() <{level = 10 : i32, message = "hqd,hkd->hqk"}> : () -> ()
    %cst_23 = arith.constant dense<0.000000e+00> : vector<4x8x8xf32>
    %62 = tpu.matmul %57, %59, %cst_23 {dimension_numbers = #tpu.dot_dimension_numbers<[2], [2], [1], [1], [0, 0, 0, 1, 1, 1], [0], [0]>} : vector<4x8x8xbf16>, vector<4x8x8xbf16>, vector<4x8x8xf32> -> vector<4x8x8xf32>
    "tpu.trace_stop"() : () -> ()
    %cst_24 = arith.constant dense<0xFF800000> : vector<4x8xf32>
    %63 = vector.multi_reduction <maximumf>, %62, %cst_24 [2] : vector<4x8x8xf32> to vector<4x8xf32>
    %64 = vector.shape_cast %63 : vector<4x8xf32> to vector<4x8x1xf32>
    %65 = vector.broadcast %64 : vector<4x8x1xf32> to vector<4x8x8xf32>
    %66 = arith.subf %62, %65 : vector<4x8x8xf32>
    %67 = math.exp %66 : vector<4x8x8xf32>
    %cst_25 = arith.constant dense<0.000000e+00> : vector<4x8xf32>
    %68 = vector.multi_reduction <add>, %67, %cst_25 [2] : vector<4x8x8xf32> to vector<4x8xf32>
    %69 = vector.shape_cast %68 : vector<4x8xf32> to vector<4x8x1xf32>
    %70 = tpu.reciprocal %69 {approx = true} : vector<4x8x1xf32> -> vector<4x8x1xf32>
    %71 = vector.broadcast %70 : vector<4x8x1xf32> to vector<4x8x8xf32>
    %72 = arith.mulf %67, %71 : vector<4x8x8xf32>
    %73 = arith.truncf %72 : vector<4x8x8xf32> to vector<4x8x8xbf16>
    "tpu.trace_start"() <{level = 10 : i32, message = "hqk,hkd->hqd"}> : () -> ()
    %cst_26 = arith.constant dense<0.000000e+00> : vector<4x8x8xf32>
    %74 = tpu.matmul %73, %61, %cst_26 {dimension_numbers = #tpu.dot_dimension_numbers<[2], [1], [1], [2], [0, 0, 0, 1, 1, 2], [0], [0]>} : vector<4x8x8xbf16>, vector<4x8x8xbf16>, vector<4x8x8xf32> -> vector<4x8x8xf32>
    "tpu.trace_stop"() : () -> ()
    %75 = tpu.transpose %74, [0, 2, 1] : vector<4x8x8xf32> -> vector<4x8x8xf32>
    %76 = vector.shape_cast %75 : vector<4x8x8xf32> to vector<32x8xf32>
    %77 = tpu.transpose %76, [1, 0] : vector<32x8xf32> -> vector<8x32xf32>
    %78 = vector.extract_strided_slice %47 {offsets = [8, 0], sizes = [8, 96], strides = [1, 1]} : vector<16x96xf32> to vector<8x96xf32>
    %79 = tpu.transpose %78, [1, 0] : vector<8x96xf32> -> vector<96x8xf32>
    %80 = vector.extract_strided_slice %79 {offsets = [0, 0], sizes = [32, 8], strides = [1, 1]} : vector<96x8xf32> to vector<32x8xf32>
    %81 = vector.shape_cast %80 : vector<32x8xf32> to vector<4x8x8xf32>
    %82 = vector.extract_strided_slice %79 {offsets = [32, 0], sizes = [32, 8], strides = [1, 1]} : vector<96x8xf32> to vector<32x8xf32>
    %83 = vector.shape_cast %82 : vector<32x8xf32> to vector<4x8x8xf32>
    %84 = vector.extract_strided_slice %79 {offsets = [64, 0], sizes = [32, 8], strides = [1, 1]} : vector<96x8xf32> to vector<32x8xf32>
    %85 = vector.shape_cast %84 : vector<32x8xf32> to vector<4x8x8xf32>
    %86 = tpu.transpose %81, [0, 2, 1] : vector<4x8x8xf32> -> vector<4x8x8xf32>
    %87 = arith.truncf %86 : vector<4x8x8xf32> to vector<4x8x8xbf16>
    %88 = tpu.transpose %83, [0, 2, 1] : vector<4x8x8xf32> -> vector<4x8x8xf32>
    %89 = arith.truncf %88 : vector<4x8x8xf32> to vector<4x8x8xbf16>
    %90 = tpu.transpose %85, [0, 2, 1] : vector<4x8x8xf32> -> vector<4x8x8xf32>
    %91 = arith.truncf %90 : vector<4x8x8xf32> to vector<4x8x8xbf16>
    "tpu.trace_start"() <{level = 10 : i32, message = "hqd,hkd->hqk"}> : () -> ()
    %cst_27 = arith.constant dense<0.000000e+00> : vector<4x8x8xf32>
    %92 = tpu.matmul %87, %89, %cst_27 {dimension_numbers = #tpu.dot_dimension_numbers<[2], [2], [1], [1], [0, 0, 0, 1, 1, 1], [0], [0]>} : vector<4x8x8xbf16>, vector<4x8x8xbf16>, vector<4x8x8xf32> -> vector<4x8x8xf32>
    "tpu.trace_stop"() : () -> ()
    %cst_28 = arith.constant dense<0xFF800000> : vector<4x8xf32>
    %93 = vector.multi_reduction <maximumf>, %92, %cst_28 [2] : vector<4x8x8xf32> to vector<4x8xf32>
    %94 = vector.shape_cast %93 : vector<4x8xf32> to vector<4x8x1xf32>
    %95 = vector.broadcast %94 : vector<4x8x1xf32> to vector<4x8x8xf32>
    %96 = arith.subf %92, %95 : vector<4x8x8xf32>
    %97 = math.exp %96 : vector<4x8x8xf32>
    %cst_29 = arith.constant dense<0.000000e+00> : vector<4x8xf32>
    %98 = vector.multi_reduction <add>, %97, %cst_29 [2] : vector<4x8x8xf32> to vector<4x8xf32>
    %99 = vector.shape_cast %98 : vector<4x8xf32> to vector<4x8x1xf32>
    %100 = tpu.reciprocal %99 {approx = true} : vector<4x8x1xf32> -> vector<4x8x1xf32>
    %101 = vector.broadcast %100 : vector<4x8x1xf32> to vector<4x8x8xf32>
    %102 = arith.mulf %97, %101 : vector<4x8x8xf32>
    %103 = arith.truncf %102 : vector<4x8x8xf32> to vector<4x8x8xbf16>
    "tpu.trace_start"() <{level = 10 : i32, message = "hqk,hkd->hqd"}> : () -> ()
    %cst_30 = arith.constant dense<0.000000e+00> : vector<4x8x8xf32>
    %104 = tpu.matmul %103, %91, %cst_30 {dimension_numbers = #tpu.dot_dimension_numbers<[2], [1], [1], [2], [0, 0, 0, 1, 1, 2], [0], [0]>} : vector<4x8x8xbf16>, vector<4x8x8xbf16>, vector<4x8x8xf32> -> vector<4x8x8xf32>
    "tpu.trace_stop"() : () -> ()
    %105 = tpu.transpose %104, [0, 2, 1] : vector<4x8x8xf32> -> vector<4x8x8xf32>
    %106 = vector.shape_cast %105 : vector<4x8x8xf32> to vector<32x8xf32>
    %107 = tpu.transpose %106, [1, 0] : vector<32x8xf32> -> vector<8x32xf32>
    %108 = tpu.concatenate %77, %107 in 0 : vector<8x32xf32>, vector<8x32xf32> -> vector<16x32xf32>
    %109 = arith.truncf %108 : vector<16x32xf32> to vector<16x32xbf16>
    %c0_31 = arith.constant 0 : index
    %c0_32 = arith.constant 0 : index
    %c0_33 = arith.constant 0 : index
    %110 = vector.load %arg8[%c0_31, %c0_32, %c0_33] : memref<2x32x32xbf16, #tpu.memory_space<vmem>>, vector<1x32x32xbf16>
    %111 = vector.shape_cast %110 : vector<1x32x32xbf16> to vector<32x32xbf16>
    %cst_34 = arith.constant dense<0.000000e+00> : vector<16x32xf32>
    %112 = tpu.matmul %109, %111, %cst_34 {dimension_numbers = #tpu.dot_dimension_numbers<[1], [0], [0], [1], [0, 0, 1, 1], [], []>} : vector<16x32xbf16>, vector<32x32xbf16>, vector<16x32xf32> -> vector<16x32xf32>
    %c0_35 = arith.constant 0 : index
    %c0_36 = arith.constant 0 : index
    %c0_37 = arith.constant 0 : index
    %113 = vector.load %arg9[%c0_35, %c0_36, %c0_37] : memref<2x1x32xf32, #tpu.memory_space<vmem>>, vector<1x1x32xf32>
    %114 = vector.shape_cast %113 : vector<1x1x32xf32> to vector<1x32xf32>
    %115 = vector.broadcast %114 : vector<1x32xf32> to vector<16x32xf32>
    %116 = arith.addf %112, %115 : vector<16x32xf32>
    %117 = arith.addf %116, %39 : vector<16x32xf32>
    %c0_38 = arith.constant 0 : index
    %c0_39 = arith.constant 0 : index
    %c0_40 = arith.constant 0 : index
    %118 = vector.load %arg10[%c0_38, %c0_39, %c0_40] : memref<2x1x32xf32, #tpu.memory_space<vmem>>, vector<1x1x32xf32>
    %119 = vector.shape_cast %118 : vector<1x1x32xf32> to vector<1x32xf32>
    %c0_41 = arith.constant 0 : index
    %c0_42 = arith.constant 0 : index
    %c0_43 = arith.constant 0 : index
    %120 = vector.load %arg11[%c0_41, %c0_42, %c0_43] : memref<2x1x32xf32, #tpu.memory_space<vmem>>, vector<1x1x32xf32>
    %121 = vector.shape_cast %120 : vector<1x1x32xf32> to vector<1x32xf32>
    %cst_44 = arith.constant dense<0.000000e+00> : vector<16xf32>
    %122 = vector.multi_reduction <add>, %117, %cst_44 [1] : vector<16x32xf32> to vector<16xf32>
    %123 = vector.shape_cast %122 : vector<16xf32> to vector<16x1xf32>
    %cst_45 = arith.constant 3.200000e+01 : f32
    %124 = vector.broadcast %cst_45 : f32 to vector<16x1xf32>
    %125 = arith.divf %123, %124 : vector<16x1xf32>
    %126 = vector.broadcast %125 : vector<16x1xf32> to vector<16x32xf32>
    %127 = arith.subf %117, %126 : vector<16x32xf32>
    %128 = arith.mulf %127, %127 : vector<16x32xf32>
    %cst_46 = arith.constant dense<0.000000e+00> : vector<16xf32>
    %129 = vector.multi_reduction <add>, %128, %cst_46 [1] : vector<16x32xf32> to vector<16xf32>
    %130 = vector.shape_cast %129 : vector<16xf32> to vector<16x1xf32>
    %cst_47 = arith.constant 3.200000e+01 : f32
    %131 = vector.broadcast %cst_47 : f32 to vector<16x1xf32>
    %132 = arith.divf %130, %131 : vector<16x1xf32>
    %133 = vector.broadcast %125 : vector<16x1xf32> to vector<16x32xf32>
    %134 = arith.subf %117, %133 : vector<16x32xf32>
    %cst_48 = arith.constant 9.99999996E-13 : f32
    %135 = vector.broadcast %cst_48 : f32 to vector<16x1xf32>
    %136 = arith.addf %132, %135 : vector<16x1xf32>
    %137 = math.rsqrt %136 : vector<16x1xf32>
    %138 = vector.broadcast %137 : vector<16x1xf32> to vector<16x32xf32>
    %139 = arith.mulf %134, %138 : vector<16x32xf32>
    %140 = vector.broadcast %119 : vector<1x32xf32> to vector<16x32xf32>
    %141 = arith.mulf %139, %140 : vector<16x32xf32>
    %142 = vector.broadcast %121 : vector<1x32xf32> to vector<16x32xf32>
    %143 = arith.addf %141, %142 : vector<16x32xf32>
    %144 = arith.truncf %143 : vector<16x32xf32> to vector<16x32xbf16>
    %c0_49 = arith.constant 0 : index
    %c0_50 = arith.constant 0 : index
    %c0_51 = arith.constant 0 : index
    %145 = vector.load %arg12[%c0_49, %c0_50, %c0_51] : memref<2x32x64xbf16, #tpu.memory_space<vmem>>, vector<1x32x64xbf16>
    %146 = vector.shape_cast %145 : vector<1x32x64xbf16> to vector<32x64xbf16>
    %cst_52 = arith.constant dense<0.000000e+00> : vector<16x64xf32>
    %147 = tpu.matmul %144, %146, %cst_52 {dimension_numbers = #tpu.dot_dimension_numbers<[1], [0], [0], [1], [0, 0, 1, 1], [], []>} : vector<16x32xbf16>, vector<32x64xbf16>, vector<16x64xf32> -> vector<16x64xf32>
    %c0_53 = arith.constant 0 : index
    %c0_54 = arith.constant 0 : index
    %c0_55 = arith.constant 0 : index
    %148 = vector.load %arg13[%c0_53, %c0_54, %c0_55] : memref<2x1x64xf32, #tpu.memory_space<vmem>>, vector<1x1x64xf32>
    %149 = vector.shape_cast %148 : vector<1x1x64xf32> to vector<1x64xf32>
    %150 = vector.broadcast %149 : vector<1x64xf32> to vector<16x64xf32>
    %151 = arith.addf %147, %150 : vector<16x64xf32>
    %cst_56 = arith.constant 5.000000e-01 : f32
    %152 = vector.broadcast %cst_56 : f32 to vector<16x64xf32>
    %153 = arith.mulf %152, %151 : vector<16x64xf32>
    %cst_57 = arith.constant 0.707106769 : f32
    %154 = vector.broadcast %cst_57 : f32 to vector<16x64xf32>
    %155 = arith.mulf %151, %154 : vector<16x64xf32>
    %156 = math.erf %155 : vector<16x64xf32>
    %cst_58 = arith.constant 1.000000e+00 : f32
    %157 = vector.broadcast %cst_58 : f32 to vector<16x64xf32>
    %158 = arith.addf %157, %156 : vector<16x64xf32>
    %159 = arith.mulf %153, %158 : vector<16x64xf32>
    %160 = arith.truncf %159 : vector<16x64xf32> to vector<16x64xbf16>
    %c0_59 = arith.constant 0 : index
    %c0_60 = arith.constant 0 : index
    %c0_61 = arith.constant 0 : index
    %161 = vector.load %arg14[%c0_59, %c0_60, %c0_61] : memref<2x64x32xbf16, #tpu.memory_space<vmem>>, vector<1x64x32xbf16>
    %162 = vector.shape_cast %161 : vector<1x64x32xbf16> to vector<64x32xbf16>
    %cst_62 = arith.constant dense<0.000000e+00> : vector<16x32xf32>
    %163 = tpu.matmul %160, %162, %cst_62 {dimension_numbers = #tpu.dot_dimension_numbers<[1], [0], [0], [1], [0, 0, 1, 1], [], []>} : vector<16x64xbf16>, vector<64x32xbf16>, vector<16x32xf32> -> vector<16x32xf32>
    %c0_63 = arith.constant 0 : index
    %c0_64 = arith.constant 0 : index
    %c0_65 = arith.constant 0 : index
    %164 = vector.load %arg15[%c0_63, %c0_64, %c0_65] : memref<2x1x32xf32, #tpu.memory_space<vmem>>, vector<1x1x32xf32>
    %165 = vector.shape_cast %164 : vector<1x1x32xf32> to vector<1x32xf32>
    %166 = vector.broadcast %165 : vector<1x32xf32> to vector<16x32xf32>
    %167 = arith.addf %163, %166 : vector<16x32xf32>
    %168 = arith.addf %167, %143 : vector<16x32xf32>
    %c0_66 = arith.constant 0 : index
    %c0_67 = arith.constant 0 : index
    %c0_68 = arith.constant 0 : index
    %169 = vector.load %arg16[%c0_66, %c0_67, %c0_68] : memref<2x1x32xf32, #tpu.memory_space<vmem>>, vector<1x1x32xf32>
    %170 = vector.shape_cast %169 : vector<1x1x32xf32> to vector<1x32xf32>
    %c0_69 = arith.constant 0 : index
    %c0_70 = arith.constant 0 : index
    %c0_71 = arith.constant 0 : index
    %171 = vector.load %arg17[%c0_69, %c0_70, %c0_71] : memref<2x1x32xf32, #tpu.memory_space<vmem>>, vector<1x1x32xf32>
    %172 = vector.shape_cast %171 : vector<1x1x32xf32> to vector<1x32xf32>
    %cst_72 = arith.constant dense<0.000000e+00> : vector<16xf32>
    %173 = vector.multi_reduction <add>, %168, %cst_72 [1] : vector<16x32xf32> to vector<16xf32>
    %174 = vector.shape_cast %173 : vector<16xf32> to vector<16x1xf32>
    %cst_73 = arith.constant 3.200000e+01 : f32
    %175 = vector.broadcast %cst_73 : f32 to vector<16x1xf32>
    %176 = arith.divf %174, %175 : vector<16x1xf32>
    %177 = vector.broadcast %176 : vector<16x1xf32> to vector<16x32xf32>
    %178 = arith.subf %168, %177 : vector<16x32xf32>
    %179 = arith.mulf %178, %178 : vector<16x32xf32>
    %cst_74 = arith.constant dense<0.000000e+00> : vector<16xf32>
    %180 = vector.multi_reduction <add>, %179, %cst_74 [1] : vector<16x32xf32> to vector<16xf32>
    %181 = vector.shape_cast %180 : vector<16xf32> to vector<16x1xf32>
    %cst_75 = arith.constant 3.200000e+01 : f32
    %182 = vector.broadcast %cst_75 : f32 to vector<16x1xf32>
    %183 = arith.divf %181, %182 : vector<16x1xf32>
    %184 = vector.broadcast %176 : vector<16x1xf32> to vector<16x32xf32>
    %185 = arith.subf %168, %184 : vector<16x32xf32>
    %cst_76 = arith.constant 9.99999996E-13 : f32
    %186 = vector.broadcast %cst_76 : f32 to vector<16x1xf32>
    %187 = arith.addf %183, %186 : vector<16x1xf32>
    %188 = math.rsqrt %187 : vector<16x1xf32>
    %189 = vector.broadcast %188 : vector<16x1xf32> to vector<16x32xf32>
    %190 = arith.mulf %185, %189 : vector<16x32xf32>
    %191 = vector.broadcast %170 : vector<1x32xf32> to vector<16x32xf32>
    %192 = arith.mulf %190, %191 : vector<16x32xf32>
    %193 = vector.broadcast %172 : vector<1x32xf32> to vector<16x32xf32>
    %194 = arith.addf %192, %193 : vector<16x32xf32>
    %195 = arith.truncf %194 : vector<16x32xf32> to vector<16x32xbf16>
    %c1 = arith.constant 1 : index
    %c0_77 = arith.constant 0 : index
    %c0_78 = arith.constant 0 : index
    %196 = vector.load %arg6[%c1, %c0_77, %c0_78] : memref<2x32x96xbf16, #tpu.memory_space<vmem>>, vector<1x32x96xbf16>
    %197 = vector.shape_cast %196 : vector<1x32x96xbf16> to vector<32x96xbf16>
    %cst_79 = arith.constant dense<0.000000e+00> : vector<16x96xf32>
    %198 = tpu.matmul %195, %197, %cst_79 {dimension_numbers = #tpu.dot_dimension_numbers<[1], [0], [0], [1], [0, 0, 1, 1], [], []>} : vector<16x32xbf16>, vector<32x96xbf16>, vector<16x96xf32> -> vector<16x96xf32>
    %c1_80 = arith.constant 1 : index
    %c0_81 = arith.constant 0 : index
    %c0_82 = arith.constant 0 : index
    %199 = vector.load %arg7[%c1_80, %c0_81, %c0_82] : memref<2x1x96xf32, #tpu.memory_space<vmem>>, vector<1x1x96xf32>
    %200 = vector.shape_cast %199 : vector<1x1x96xf32> to vector<1x96xf32>
    %201 = vector.broadcast %200 : vector<1x96xf32> to vector<16x96xf32>
    %202 = arith.addf %198, %201 : vector<16x96xf32>
    %203 = vector.extract_strided_slice %202 {offsets = [0, 0], sizes = [8, 96], strides = [1, 1]} : vector<16x96xf32> to vector<8x96xf32>
    %204 = tpu.transpose %203, [1, 0] : vector<8x96xf32> -> vector<96x8xf32>
    %205 = vector.extract_strided_slice %204 {offsets = [0, 0], sizes = [32, 8], strides = [1, 1]} : vector<96x8xf32> to vector<32x8xf32>
    %206 = vector.shape_cast %205 : vector<32x8xf32> to vector<4x8x8xf32>
    %207 = vector.extract_strided_slice %204 {offsets = [32, 0], sizes = [32, 8], strides = [1, 1]} : vector<96x8xf32> to vector<32x8xf32>
    %208 = vector.shape_cast %207 : vector<32x8xf32> to vector<4x8x8xf32>
    %209 = vector.extract_strided_slice %204 {offsets = [64, 0], sizes = [32, 8], strides = [1, 1]} : vector<96x8xf32> to vector<32x8xf32>
    %210 = vector.shape_cast %209 : vector<32x8xf32> to vector<4x8x8xf32>
    %211 = tpu.transpose %206, [0, 2, 1] : vector<4x8x8xf32> -> vector<4x8x8xf32>
    %212 = arith.truncf %211 : vector<4x8x8xf32> to vector<4x8x8xbf16>
    %213 = tpu.transpose %208, [0, 2, 1] : vector<4x8x8xf32> -> vector<4x8x8xf32>
    %214 = arith.truncf %213 : vector<4x8x8xf32> to vector<4x8x8xbf16>
    %215 = tpu.transpose %210, [0, 2, 1] : vector<4x8x8xf32> -> vector<4x8x8xf32>
    %216 = arith.truncf %215 : vector<4x8x8xf32> to vector<4x8x8xbf16>
    "tpu.trace_start"() <{level = 10 : i32, message = "hqd,hkd->hqk"}> : () -> ()
    %cst_83 = arith.constant dense<0.000000e+00> : vector<4x8x8xf32>
    %217 = tpu.matmul %212, %214, %cst_83 {dimension_numbers = #tpu.dot_dimension_numbers<[2], [2], [1], [1], [0, 0, 0, 1, 1, 1], [0], [0]>} : vector<4x8x8xbf16>, vector<4x8x8xbf16>, vector<4x8x8xf32> -> vector<4x8x8xf32>
    "tpu.trace_stop"() : () -> ()
    %cst_84 = arith.constant dense<0xFF800000> : vector<4x8xf32>
    %218 = vector.multi_reduction <maximumf>, %217, %cst_84 [2] : vector<4x8x8xf32> to vector<4x8xf32>
    %219 = vector.shape_cast %218 : vector<4x8xf32> to vector<4x8x1xf32>
    %220 = vector.broadcast %219 : vector<4x8x1xf32> to vector<4x8x8xf32>
    %221 = arith.subf %217, %220 : vector<4x8x8xf32>
    %222 = math.exp %221 : vector<4x8x8xf32>
    %cst_85 = arith.constant dense<0.000000e+00> : vector<4x8xf32>
    %223 = vector.multi_reduction <add>, %222, %cst_85 [2] : vector<4x8x8xf32> to vector<4x8xf32>
    %224 = vector.shape_cast %223 : vector<4x8xf32> to vector<4x8x1xf32>
    %225 = tpu.reciprocal %224 {approx = true} : vector<4x8x1xf32> -> vector<4x8x1xf32>
    %226 = vector.broadcast %225 : vector<4x8x1xf32> to vector<4x8x8xf32>
    %227 = arith.mulf %222, %226 : vector<4x8x8xf32>
    %228 = arith.truncf %227 : vector<4x8x8xf32> to vector<4x8x8xbf16>
    "tpu.trace_start"() <{level = 10 : i32, message = "hqk,hkd->hqd"}> : () -> ()
    %cst_86 = arith.constant dense<0.000000e+00> : vector<4x8x8xf32>
    %229 = tpu.matmul %228, %216, %cst_86 {dimension_numbers = #tpu.dot_dimension_numbers<[2], [1], [1], [2], [0, 0, 0, 1, 1, 2], [0], [0]>} : vector<4x8x8xbf16>, vector<4x8x8xbf16>, vector<4x8x8xf32> -> vector<4x8x8xf32>
    "tpu.trace_stop"() : () -> ()
    %230 = tpu.transpose %229, [0, 2, 1] : vector<4x8x8xf32> -> vector<4x8x8xf32>
    %231 = vector.shape_cast %230 : vector<4x8x8xf32> to vector<32x8xf32>
    %232 = tpu.transpose %231, [1, 0] : vector<32x8xf32> -> vector<8x32xf32>
    %233 = vector.extract_strided_slice %202 {offsets = [8, 0], sizes = [8, 96], strides = [1, 1]} : vector<16x96xf32> to vector<8x96xf32>
    %234 = tpu.transpose %233, [1, 0] : vector<8x96xf32> -> vector<96x8xf32>
    %235 = vector.extract_strided_slice %234 {offsets = [0, 0], sizes = [32, 8], strides = [1, 1]} : vector<96x8xf32> to vector<32x8xf32>
    %236 = vector.shape_cast %235 : vector<32x8xf32> to vector<4x8x8xf32>
    %237 = vector.extract_strided_slice %234 {offsets = [32, 0], sizes = [32, 8], strides = [1, 1]} : vector<96x8xf32> to vector<32x8xf32>
    %238 = vector.shape_cast %237 : vector<32x8xf32> to vector<4x8x8xf32>
    %239 = vector.extract_strided_slice %234 {offsets = [64, 0], sizes = [32, 8], strides = [1, 1]} : vector<96x8xf32> to vector<32x8xf32>
    %240 = vector.shape_cast %239 : vector<32x8xf32> to vector<4x8x8xf32>
    %241 = tpu.transpose %236, [0, 2, 1] : vector<4x8x8xf32> -> vector<4x8x8xf32>
    %242 = arith.truncf %241 : vector<4x8x8xf32> to vector<4x8x8xbf16>
    %243 = tpu.transpose %238, [0, 2, 1] : vector<4x8x8xf32> -> vector<4x8x8xf32>
    %244 = arith.truncf %243 : vector<4x8x8xf32> to vector<4x8x8xbf16>
    %245 = tpu.transpose %240, [0, 2, 1] : vector<4x8x8xf32> -> vector<4x8x8xf32>
    %246 = arith.truncf %245 : vector<4x8x8xf32> to vector<4x8x8xbf16>
    "tpu.trace_start"() <{level = 10 : i32, message = "hqd,hkd->hqk"}> : () -> ()
    %cst_87 = arith.constant dense<0.000000e+00> : vector<4x8x8xf32>
    %247 = tpu.matmul %242, %244, %cst_87 {dimension_numbers = #tpu.dot_dimension_numbers<[2], [2], [1], [1], [0, 0, 0, 1, 1, 1], [0], [0]>} : vector<4x8x8xbf16>, vector<4x8x8xbf16>, vector<4x8x8xf32> -> vector<4x8x8xf32>
    "tpu.trace_stop"() : () -> ()
    %cst_88 = arith.constant dense<0xFF800000> : vector<4x8xf32>
    %248 = vector.multi_reduction <maximumf>, %247, %cst_88 [2] : vector<4x8x8xf32> to vector<4x8xf32>
    %249 = vector.shape_cast %248 : vector<4x8xf32> to vector<4x8x1xf32>
    %250 = vector.broadcast %249 : vector<4x8x1xf32> to vector<4x8x8xf32>
    %251 = arith.subf %247, %250 : vector<4x8x8xf32>
    %252 = math.exp %251 : vector<4x8x8xf32>
    %cst_89 = arith.constant dense<0.000000e+00> : vector<4x8xf32>
    %253 = vector.multi_reduction <add>, %252, %cst_89 [2] : vector<4x8x8xf32> to vector<4x8xf32>
    %254 = vector.shape_cast %253 : vector<4x8xf32> to vector<4x8x1xf32>
    %255 = tpu.reciprocal %254 {approx = true} : vector<4x8x1xf32> -> vector<4x8x1xf32>
    %256 = vector.broadcast %255 : vector<4x8x1xf32> to vector<4x8x8xf32>
    %257 = arith.mulf %252, %256 : vector<4x8x8xf32>
    %258 = arith.truncf %257 : vector<4x8x8xf32> to vector<4x8x8xbf16>
    "tpu.trace_start"() <{level = 10 : i32, message = "hqk,hkd->hqd"}> : () -> ()
    %cst_90 = arith.constant dense<0.000000e+00> : vector<4x8x8xf32>
    %259 = tpu.matmul %258, %246, %cst_90 {dimension_numbers = #tpu.dot_dimension_numbers<[2], [1], [1], [2], [0, 0, 0, 1, 1, 2], [0], [0]>} : vector<4x8x8xbf16>, vector<4x8x8xbf16>, vector<4x8x8xf32> -> vector<4x8x8xf32>
    "tpu.trace_stop"() : () -> ()
    %260 = tpu.transpose %259, [0, 2, 1] : vector<4x8x8xf32> -> vector<4x8x8xf32>
    %261 = vector.shape_cast %260 : vector<4x8x8xf32> to vector<32x8xf32>
    %262 = tpu.transpose %261, [1, 0] : vector<32x8xf32> -> vector<8x32xf32>
    %263 = tpu.concatenate %232, %262 in 0 : vector<8x32xf32>, vector<8x32xf32> -> vector<16x32xf32>
    %264 = arith.truncf %263 : vector<16x32xf32> to vector<16x32xbf16>
    %c1_91 = arith.constant 1 : index
    %c0_92 = arith.constant 0 : index
    %c0_93 = arith.constant 0 : index
    %265 = vector.load %arg8[%c1_91, %c0_92, %c0_93] : memref<2x32x32xbf16, #tpu.memory_space<vmem>>, vector<1x32x32xbf16>
    %266 = vector.shape_cast %265 : vector<1x32x32xbf16> to vector<32x32xbf16>
    %cst_94 = arith.constant dense<0.000000e+00> : vector<16x32xf32>
    %267 = tpu.matmul %264, %266, %cst_94 {dimension_numbers = #tpu.dot_dimension_numbers<[1], [0], [0], [1], [0, 0, 1, 1], [], []>} : vector<16x32xbf16>, vector<32x32xbf16>, vector<16x32xf32> -> vector<16x32xf32>
    %c1_95 = arith.constant 1 : index
    %c0_96 = arith.constant 0 : index
    %c0_97 = arith.constant 0 : index
    %268 = vector.load %arg9[%c1_95, %c0_96, %c0_97] : memref<2x1x32xf32, #tpu.memory_space<vmem>>, vector<1x1x32xf32>
    %269 = vector.shape_cast %268 : vector<1x1x32xf32> to vector<1x32xf32>
    %270 = vector.broadcast %269 : vector<1x32xf32> to vector<16x32xf32>
    %271 = arith.addf %267, %270 : vector<16x32xf32>
    %272 = arith.addf %271, %194 : vector<16x32xf32>
    %c1_98 = arith.constant 1 : index
    %c0_99 = arith.constant 0 : index
    %c0_100 = arith.constant 0 : index
    %273 = vector.load %arg10[%c1_98, %c0_99, %c0_100] : memref<2x1x32xf32, #tpu.memory_space<vmem>>, vector<1x1x32xf32>
    %274 = vector.shape_cast %273 : vector<1x1x32xf32> to vector<1x32xf32>
    %c1_101 = arith.constant 1 : index
    %c0_102 = arith.constant 0 : index
    %c0_103 = arith.constant 0 : index
    %275 = vector.load %arg11[%c1_101, %c0_102, %c0_103] : memref<2x1x32xf32, #tpu.memory_space<vmem>>, vector<1x1x32xf32>
    %276 = vector.shape_cast %275 : vector<1x1x32xf32> to vector<1x32xf32>
    %cst_104 = arith.constant dense<0.000000e+00> : vector<16xf32>
    %277 = vector.multi_reduction <add>, %272, %cst_104 [1] : vector<16x32xf32> to vector<16xf32>
    %278 = vector.shape_cast %277 : vector<16xf32> to vector<16x1xf32>
    %cst_105 = arith.constant 3.200000e+01 : f32
    %279 = vector.broadcast %cst_105 : f32 to vector<16x1xf32>
    %280 = arith.divf %278, %279 : vector<16x1xf32>
    %281 = vector.broadcast %280 : vector<16x1xf32> to vector<16x32xf32>
    %282 = arith.subf %272, %281 : vector<16x32xf32>
    %283 = arith.mulf %282, %282 : vector<16x32xf32>
    %cst_106 = arith.constant dense<0.000000e+00> : vector<16xf32>
    %284 = vector.multi_reduction <add>, %283, %cst_106 [1] : vector<16x32xf32> to vector<16xf32>
    %285 = vector.shape_cast %284 : vector<16xf32> to vector<16x1xf32>
    %cst_107 = arith.constant 3.200000e+01 : f32
    %286 = vector.broadcast %cst_107 : f32 to vector<16x1xf32>
    %287 = arith.divf %285, %286 : vector<16x1xf32>
    %288 = vector.broadcast %280 : vector<16x1xf32> to vector<16x32xf32>
    %289 = arith.subf %272, %288 : vector<16x32xf32>
    %cst_108 = arith.constant 9.99999996E-13 : f32
    %290 = vector.broadcast %cst_108 : f32 to vector<16x1xf32>
    %291 = arith.addf %287, %290 : vector<16x1xf32>
    %292 = math.rsqrt %291 : vector<16x1xf32>
    %293 = vector.broadcast %292 : vector<16x1xf32> to vector<16x32xf32>
    %294 = arith.mulf %289, %293 : vector<16x32xf32>
    %295 = vector.broadcast %274 : vector<1x32xf32> to vector<16x32xf32>
    %296 = arith.mulf %294, %295 : vector<16x32xf32>
    %297 = vector.broadcast %276 : vector<1x32xf32> to vector<16x32xf32>
    %298 = arith.addf %296, %297 : vector<16x32xf32>
    %299 = arith.truncf %298 : vector<16x32xf32> to vector<16x32xbf16>
    %c1_109 = arith.constant 1 : index
    %c0_110 = arith.constant 0 : index
    %c0_111 = arith.constant 0 : index
    %300 = vector.load %arg12[%c1_109, %c0_110, %c0_111] : memref<2x32x64xbf16, #tpu.memory_space<vmem>>, vector<1x32x64xbf16>
    %301 = vector.shape_cast %300 : vector<1x32x64xbf16> to vector<32x64xbf16>
    %cst_112 = arith.constant dense<0.000000e+00> : vector<16x64xf32>
    %302 = tpu.matmul %299, %301, %cst_112 {dimension_numbers = #tpu.dot_dimension_numbers<[1], [0], [0], [1], [0, 0, 1, 1], [], []>} : vector<16x32xbf16>, vector<32x64xbf16>, vector<16x64xf32> -> vector<16x64xf32>
    %c1_113 = arith.constant 1 : index
    %c0_114 = arith.constant 0 : index
    %c0_115 = arith.constant 0 : index
    %303 = vector.load %arg13[%c1_113, %c0_114, %c0_115] : memref<2x1x64xf32, #tpu.memory_space<vmem>>, vector<1x1x64xf32>
    %304 = vector.shape_cast %303 : vector<1x1x64xf32> to vector<1x64xf32>
    %305 = vector.broadcast %304 : vector<1x64xf32> to vector<16x64xf32>
    %306 = arith.addf %302, %305 : vector<16x64xf32>
    %cst_116 = arith.constant 5.000000e-01 : f32
    %307 = vector.broadcast %cst_116 : f32 to vector<16x64xf32>
    %308 = arith.mulf %307, %306 : vector<16x64xf32>
    %cst_117 = arith.constant 0.707106769 : f32
    %309 = vector.broadcast %cst_117 : f32 to vector<16x64xf32>
    %310 = arith.mulf %306, %309 : vector<16x64xf32>
    %311 = math.erf %310 : vector<16x64xf32>
    %cst_118 = arith.constant 1.000000e+00 : f32
    %312 = vector.broadcast %cst_118 : f32 to vector<16x64xf32>
    %313 = arith.addf %312, %311 : vector<16x64xf32>
    %314 = arith.mulf %308, %313 : vector<16x64xf32>
    %315 = arith.truncf %314 : vector<16x64xf32> to vector<16x64xbf16>
    %c1_119 = arith.constant 1 : index
    %c0_120 = arith.constant 0 : index
    %c0_121 = arith.constant 0 : index
    %316 = vector.load %arg14[%c1_119, %c0_120, %c0_121] : memref<2x64x32xbf16, #tpu.memory_space<vmem>>, vector<1x64x32xbf16>
    %317 = vector.shape_cast %316 : vector<1x64x32xbf16> to vector<64x32xbf16>
    %cst_122 = arith.constant dense<0.000000e+00> : vector<16x32xf32>
    %318 = tpu.matmul %315, %317, %cst_122 {dimension_numbers = #tpu.dot_dimension_numbers<[1], [0], [0], [1], [0, 0, 1, 1], [], []>} : vector<16x64xbf16>, vector<64x32xbf16>, vector<16x32xf32> -> vector<16x32xf32>
    %c1_123 = arith.constant 1 : index
    %c0_124 = arith.constant 0 : index
    %c0_125 = arith.constant 0 : index
    %319 = vector.load %arg15[%c1_123, %c0_124, %c0_125] : memref<2x1x32xf32, #tpu.memory_space<vmem>>, vector<1x1x32xf32>
    %320 = vector.shape_cast %319 : vector<1x1x32xf32> to vector<1x32xf32>
    %321 = vector.broadcast %320 : vector<1x32xf32> to vector<16x32xf32>
    %322 = arith.addf %318, %321 : vector<16x32xf32>
    %323 = arith.addf %322, %298 : vector<16x32xf32>
    %c1_126 = arith.constant 1 : index
    %c0_127 = arith.constant 0 : index
    %c0_128 = arith.constant 0 : index
    %324 = vector.load %arg16[%c1_126, %c0_127, %c0_128] : memref<2x1x32xf32, #tpu.memory_space<vmem>>, vector<1x1x32xf32>
    %325 = vector.shape_cast %324 : vector<1x1x32xf32> to vector<1x32xf32>
    %c1_129 = arith.constant 1 : index
    %c0_130 = arith.constant 0 : index
    %c0_131 = arith.constant 0 : index
    %326 = vector.load %arg17[%c1_129, %c0_130, %c0_131] : memref<2x1x32xf32, #tpu.memory_space<vmem>>, vector<1x1x32xf32>
    %327 = vector.shape_cast %326 : vector<1x1x32xf32> to vector<1x32xf32>
    %cst_132 = arith.constant dense<0.000000e+00> : vector<16xf32>
    %328 = vector.multi_reduction <add>, %323, %cst_132 [1] : vector<16x32xf32> to vector<16xf32>
    %329 = vector.shape_cast %328 : vector<16xf32> to vector<16x1xf32>
    %cst_133 = arith.constant 3.200000e+01 : f32
    %330 = vector.broadcast %cst_133 : f32 to vector<16x1xf32>
    %331 = arith.divf %329, %330 : vector<16x1xf32>
    %332 = vector.broadcast %331 : vector<16x1xf32> to vector<16x32xf32>
    %333 = arith.subf %323, %332 : vector<16x32xf32>
    %334 = arith.mulf %333, %333 : vector<16x32xf32>
    %cst_134 = arith.constant dense<0.000000e+00> : vector<16xf32>
    %335 = vector.multi_reduction <add>, %334, %cst_134 [1] : vector<16x32xf32> to vector<16xf32>
    %336 = vector.shape_cast %335 : vector<16xf32> to vector<16x1xf32>
    %cst_135 = arith.constant 3.200000e+01 : f32
    %337 = vector.broadcast %cst_135 : f32 to vector<16x1xf32>
    %338 = arith.divf %336, %337 : vector<16x1xf32>
    %339 = vector.broadcast %331 : vector<16x1xf32> to vector<16x32xf32>
    %340 = arith.subf %323, %339 : vector<16x32xf32>
    %cst_136 = arith.constant 9.99999996E-13 : f32
    %341 = vector.broadcast %cst_136 : f32 to vector<16x1xf32>
    %342 = arith.addf %338, %341 : vector<16x1xf32>
    %343 = math.rsqrt %342 : vector<16x1xf32>
    %344 = vector.broadcast %343 : vector<16x1xf32> to vector<16x32xf32>
    %345 = arith.mulf %340, %344 : vector<16x32xf32>
    %346 = vector.broadcast %325 : vector<1x32xf32> to vector<16x32xf32>
    %347 = arith.mulf %345, %346 : vector<16x32xf32>
    %348 = vector.broadcast %327 : vector<1x32xf32> to vector<16x32xf32>
    %349 = arith.addf %347, %348 : vector<16x32xf32>
    %350 = vector.shape_cast %349 : vector<16x32xf32> to vector<2x8x32xf32>
    %351 = vector.extract_strided_slice %350 {offsets = [0, 0, 0], sizes = [2, 1, 32], strides = [1, 1, 1]} : vector<2x8x32xf32> to vector<2x1x32xf32>
    %352 = vector.shape_cast %351 : vector<2x1x32xf32> to vector<2x32xf32>
    %c0_137 = arith.constant 0 : index
    %c0_138 = arith.constant 0 : index
    %353 = vector.load %arg18[%c0_137, %c0_138] : memref<2x32xf32, #tpu.memory_space<vmem>>, vector<2x32xf32>
    tpu.vector_store %arg18[%c0_137, %c0_138], %352 {strides = array<i32>} : memref<2x32xf32, #tpu.memory_space<vmem>>, vector<2x32xf32>,
    return
  }
  func.func @transform_0(%arg0: i32) -> (i32, i32) {
    %c0_i32 = arith.constant 0 : i32
    %c0_i32_0 = arith.constant 0 : i32
    %c0_i32_1 = arith.constant 0 : i32
    return %c0_i32, %c0_i32_0 : i32, i32
  }
  func.func @transform_1(%arg0: i32) -> (i32, i32) {
    %c0_i32 = arith.constant 0 : i32
    %c0_i32_0 = arith.constant 0 : i32
    %c0_i32_1 = arith.constant 0 : i32
    return %c0_i32, %c0_i32_0 : i32, i32
  }
  func.func @transform_2(%arg0: i32) -> (i32, i32) {
    %c0_i32 = arith.constant 0 : i32
    %c0_i32_0 = arith.constant 0 : i32
    %c0_i32_1 = arith.constant 0 : i32
    return %c0_i32, %c0_i32_0 : i32, i32
  }
  func.func @transform_3(%arg0: i32) -> (i32, i32) {
    %c0_i32 = arith.constant 0 : i32
    %c0_i32_0 = arith.constant 0 : i32
    %c0_i32_1 = arith.constant 0 : i32
    return %c0_i32, %c0_i32_0 : i32, i32
  }
  func.func @transform_4(%arg0: i32) -> (i32, i32) {
    %c0_i32 = arith.constant 0 : i32
    %c0_i32_0 = arith.constant 0 : i32
    %c0_i32_1 = arith.constant 0 : i32
    return %c0_i32, %c0_i32_0 : i32, i32
  }
  func.func @transform_5(%arg0: i32) -> (i32, i32, i32) {
    %c0_i32 = arith.constant 0 : i32
    %c0_i32_0 = arith.constant 0 : i32
    %c0_i32_1 = arith.constant 0 : i32
    %c0_i32_2 = arith.constant 0 : i32
    return %c0_i32, %c0_i32_0, %c0_i32_1 : i32, i32, i32
  }
  func.func @transform_6(%arg0: i32) -> (i32, i32, i32) {
    %c0_i32 = arith.constant 0 : i32
    %c0_i32_0 = arith.constant 0 : i32
    %c0_i32_1 = arith.constant 0 : i32
    %c0_i32_2 = arith.constant 0 : i32
    return %c0_i32, %c0_i32_0, %c0_i32_1 : i32, i32, i32
  }
  func.func @transform_7(%arg0: i32) -> (i32, i32, i32) {
    %c0_i32 = arith.constant 0 : i32
    %c0_i32_0 = arith.constant 0 : i32
    %c0_i32_1 = arith.constant 0 : i32
    %c0_i32_2 = arith.constant 0 : i32
    return %c0_i32, %c0_i32_0, %c0_i32_1 : i32, i32, i32
  }
  func.func @transform_8(%arg0: i32) -> (i32, i32, i32) {
    %c0_i32 = arith.constant 0 : i32
    %c0_i32_0 = arith.constant 0 : i32
    %c0_i32_1 = arith.constant 0 : i32
    %c0_i32_2 = arith.constant 0 : i32
    return %c0_i32, %c0_i32_0, %c0_i32_1 : i32, i32, i32
  }
  func.func @transform_9(%arg0: i32) -> (i32, i32, i32) {
    %c0_i32 = arith.constant 0 : i32
    %c0_i32_0 = arith.constant 0 : i32
    %c0_i32_1 = arith.constant 0 : i32
    %c0_i32_2 = arith.constant 0 : i32
    return %c0_i32, %c0_i32_0, %c0_i32_1 : i32, i32, i32
  }
  func.func @transform_10(%arg0: i32) -> (i32, i32, i32) {
    %c0_i32 = arith.constant 0 : i32
    %c0_i32_0 = arith.constant 0 : i32
    %c0_i32_1 = arith.constant 0 : i32
    %c0_i32_2 = arith.constant 0 : i32
    return %c0_i32, %c0_i32_0, %c0_i32_1 : i32, i32, i32
  }
  func.func @transform_11(%arg0: i32) -> (i32, i32, i32) {
    %c0_i32 = arith.constant 0 : i32
    %c0_i32_0 = arith.constant 0 : i32
    %c0_i32_1 = arith.constant 0 : i32
    %c0_i32_2 = arith.constant 0 : i32
    return %c0_i32, %c0_i32_0, %c0_i32_1 : i32, i32, i32
  }
  func.func @transform_12(%arg0: i32) -> (i32, i32, i32) {
    %c0_i32 = arith.constant 0 : i32
    %c0_i32_0 = arith.constant 0 : i32
    %c0_i32_1 = arith.constant 0 : i32
    %c0_i32_2 = arith.constant 0 : i32
    return %c0_i32, %c0_i32_0, %c0_i32_1 : i32, i32, i32
  }
  func.func @transform_13(%arg0: i32) -> (i32, i32, i32) {
    %c0_i32 = arith.constant 0 : i32
    %c0_i32_0 = arith.constant 0 : i32
    %c0_i32_1 = arith.constant 0 : i32
    %c0_i32_2 = arith.constant 0 : i32
    return %c0_i32, %c0_i32_0, %c0_i32_1 : i32, i32, i32
  }
  func.func @transform_14(%arg0: i32) -> (i32, i32, i32) {
    %c0_i32 = arith.constant 0 : i32
    %c0_i32_0 = arith.constant 0 : i32
    %c0_i32_1 = arith.constant 0 : i32
    %c0_i32_2 = arith.constant 0 : i32
    return %c0_i32, %c0_i32_0, %c0_i32_1 : i32, i32, i32
  }
  func.func @transform_15(%arg0: i32) -> (i32, i32, i32) {
    %c0_i32 = arith.constant 0 : i32
    %c0_i32_0 = arith.constant 0 : i32
    %c0_i32_1 = arith.constant 0 : i32
    %c0_i32_2 = arith.constant 0 : i32
    return %c0_i32, %c0_i32_0, %c0_i32_1 : i32, i32, i32
  }
  func.func @transform_16(%arg0: i32) -> (i32, i32, i32) {
    %c0_i32 = arith.constant 0 : i32
    %c0_i32_0 = arith.constant 0 : i32
    %c0_i32_1 = arith.constant 0 : i32
    %c0_i32_2 = arith.constant 0 : i32
    return %c0_i32, %c0_i32_0, %c0_i32_1 : i32, i32, i32
  }
  func.func @transform_17(%arg0: i32) -> (i32, i32) {
    %c0_i32 = arith.constant 0 : i32
    %c0_i32_0 = arith.constant 0 : i32
    %c0_i32_1 = arith.constant 0 : i32
    return %c0_i32, %c0_i32_0 : i32, i32
  }
}

</mosaic_0001>

<llo_original>
// kernel: my_bert_forward.1
$region0: #{my_bert_forward.1}
  #allocation0 [shape = 'u32[]', space=smem, size = 0x4, offset = 0x4, fixed_abs, tag = 'smem constant byte address 0x4 - core index']
  #allocation1 [shape = 'u32[72,128]{1,0:T(1,128)}', space=vmem, size = 0x9000, scoped, tag = 'internal scratch']
  %s0 = inlined_call_operand.vmem [shape: s32[16,1], index: 0, kind: input, shape index: {}]
  %s1 = inlined_call_operand.vmem [shape: bf16[100,32], index: 1, kind: input, shape index: {}]
  %s2 = inlined_call_operand.vmem [shape: f32[64,32], index: 2, kind: input, shape index: {}]
  %s3 = inlined_call_operand.vmem [shape: f32[1,32], index: 3, kind: input, shape index: {}]
  %s4 = inlined_call_operand.vmem [shape: f32[1,32], index: 4, kind: input, shape index: {}]
  %s5 = inlined_call_operand.vmem [shape: bf16[2,32,96], index: 5, kind: input, shape index: {}]
  %s6 = inlined_call_operand.vmem [shape: f32[2,1,96], index: 6, kind: input, shape index: {}]
  %s7 = inlined_call_operand.vmem [shape: bf16[2,32,32], index: 7, kind: input, shape index: {}]
  %s8 = inlined_call_operand.vmem [shape: f32[2,1,32], index: 8, kind: input, shape index: {}]
  %s9 = inlined_call_operand.vmem [shape: f32[2,1,32], index: 9, kind: input, shape index: {}]
  %s10 = inlined_call_operand.vmem [shape: f32[2,1,32], index: 10, kind: input, shape index: {}]
  %s11 = inlined_call_operand.vmem [shape: bf16[2,32,64], index: 11, kind: input, shape index: {}]
  %s12 = inlined_call_operand.vmem [shape: f32[2,1,64], index: 12, kind: input, shape index: {}]
  %s13 = inlined_call_operand.vmem [shape: bf16[2,64,32], index: 13, kind: input, shape index: {}]
  %s14 = inlined_call_operand.vmem [shape: f32[2,1,32], index: 14, kind: input, shape index: {}]
  %s15 = inlined_call_operand.vmem [shape: f32[2,1,32], index: 15, kind: input, shape index: {}]
  %s16 = inlined_call_operand.vmem [shape: f32[2,1,32], index: 16, kind: input, shape index: {}]
  %s17 = inlined_call_operand.hbm [shape: f32[2,32], index: 17, kind: output, shape index: {}]
  %s18 = sld [smem:[#allocation0]]
  $region78: #{my_bert_forward.1} parent=0
    _
  %s20 = ssub.s32 1, %s18
  %s21 = scalar_select 0, %s20, %s18
  $region1: #{my_bert_forward.1} parent=0
    #allocation2 [shape = 'u8[1024]{0}', space=vmem, size = 0x400, scoped, tag = 'output window, operand 0, single buffered']
    #allocation3 [shape = 's32[1]{0}', space=sflag, size = 0x4, scoped, tag = 'scoped memory for my_bert_forward.1']
    %22 = vsyncpa [#allocation3], 0
    // Predicated region
    $region2: #{my_bert_forward.1} parent=1 // pred_check
      _
    $region3: #{my_bert_forward.1} parent=1 // pred_check_branch
      %24 = sbr.rel (0) target = $region5
    $region4: #{my_bert_forward.1} parent=1 // pred_region
      _
    $region5: #{my_bert_forward.1} parent=1 // pred_fallthru
      _
    // Predicated region
    $region6: #{my_bert_forward.1} parent=1 // pred_check
      _
    $region7: #{my_bert_forward.1} parent=1 // pred_check_branch
      %26 = sbr.rel (0) target = $region9
    $region8: #{my_bert_forward.1} parent=1 // pred_region
      _
    $region9: #{my_bert_forward.1} parent=1 // pred_fallthru
      _
    // Predicated region
    $region10: #{my_bert_forward.1} parent=1 // pred_check
      _
    $region11: #{my_bert_forward.1} parent=1 // pred_check_branch
      %28 = sbr.rel (0) target = $region13
    $region12: #{my_bert_forward.1} parent=1 // pred_region
      _
    $region13: #{my_bert_forward.1} parent=1 // pred_fallthru
      _
    // Predicated region
    $region14: #{my_bert_forward.1} parent=1 // pred_check
      _
    $region15: #{my_bert_forward.1} parent=1 // pred_check_branch
      %30 = sbr.rel (0) target = $region17
    $region16: #{my_bert_forward.1} parent=1 // pred_region
      _
    $region17: #{my_bert_forward.1} parent=1 // pred_fallthru
      _
    // Predicated region
    $region18: #{my_bert_forward.1} parent=1 // pred_check
      _
    $region19: #{my_bert_forward.1} parent=1 // pred_check_branch
      %32 = sbr.rel (0) target = $region21
    $region20: #{my_bert_forward.1} parent=1 // pred_region
      _
    $region21: #{my_bert_forward.1} parent=1 // pred_fallthru
      _
    // Predicated region
    $region22: #{my_bert_forward.1} parent=1 // pred_check
      _
    $region23: #{my_bert_forward.1} parent=1 // pred_check_branch
      %34 = sbr.rel (0) target = $region25
    $region24: #{my_bert_forward.1} parent=1 // pred_region
      _
    $region25: #{my_bert_forward.1} parent=1 // pred_fallthru
      _
    // Predicated region
    $region26: #{my_bert_forward.1} parent=1 // pred_check
      _
    $region27: #{my_bert_forward.1} parent=1 // pred_check_branch
      %36 = sbr.rel (0) target = $region29
    $region28: #{my_bert_forward.1} parent=1 // pred_region
      _
    $region29: #{my_bert_forward.1} parent=1 // pred_fallthru
      _
    // Predicated region
    $region30: #{my_bert_forward.1} parent=1 // pred_check
      _
    $region31: #{my_bert_forward.1} parent=1 // pred_check_branch
      %38 = sbr.rel (0) target = $region33
    $region32: #{my_bert_forward.1} parent=1 // pred_region
      _
    $region33: #{my_bert_forward.1} parent=1 // pred_fallthru
      _
    // Predicated region
    $region34: #{my_bert_forward.1} parent=1 // pred_check
      _
    $region35: #{my_bert_forward.1} parent=1 // pred_check_branch
      %40 = sbr.rel (0) target = $region37
    $region36: #{my_bert_forward.1} parent=1 // pred_region
      _
    $region37: #{my_bert_forward.1} parent=1 // pred_fallthru
      _
    // Predicated region
    $region38: #{my_bert_forward.1} parent=1 // pred_check
      _
    $region39: #{my_bert_forward.1} parent=1 // pred_check_branch
      %42 = sbr.rel (0) target = $region41
    $region40: #{my_bert_forward.1} parent=1 // pred_region
      _
    $region41: #{my_bert_forward.1} parent=1 // pred_fallthru
      _
    // Predicated region
    $region42: #{my_bert_forward.1} parent=1 // pred_check
      _
    $region43: #{my_bert_forward.1} parent=1 // pred_check_branch
      %44 = sbr.rel (0) target = $region45
    $region44: #{my_bert_forward.1} parent=1 // pred_region
      _
    $region45: #{my_bert_forward.1} parent=1 // pred_fallthru
      _
    // Predicated region
    $region46: #{my_bert_forward.1} parent=1 // pred_check
      _
    $region47: #{my_bert_forward.1} parent=1 // pred_check_branch
      %46 = sbr.rel (0) target = $region49
    $region48: #{my_bert_forward.1} parent=1 // pred_region
      _
    $region49: #{my_bert_forward.1} parent=1 // pred_fallthru
      _
    // Predicated region
    $region50: #{my_bert_forward.1} parent=1 // pred_check
      _
    $region51: #{my_bert_forward.1} parent=1 // pred_check_branch
      %48 = sbr.rel (0) target = $region53
    $region52: #{my_bert_forward.1} parent=1 // pred_region
      _
    $region53: #{my_bert_forward.1} parent=1 // pred_fallthru
      _
    // Predicated region
    $region54: #{my_bert_forward.1} parent=1 // pred_check
      _
    $region55: #{my_bert_forward.1} parent=1 // pred_check_branch
      %50 = sbr.rel (0) target = $region57
    $region56: #{my_bert_forward.1} parent=1 // pred_region
      _
    $region57: #{my_bert_forward.1} parent=1 // pred_fallthru
      _
    // Predicated region
    $region58: #{my_bert_forward.1} parent=1 // pred_check
      _
    $region59: #{my_bert_forward.1} parent=1 // pred_check_branch
      %52 = sbr.rel (0) target = $region61
    $region60: #{my_bert_forward.1} parent=1 // pred_region
      _
    $region61: #{my_bert_forward.1} parent=1 // pred_fallthru
      _
    // Predicated region
    $region62: #{my_bert_forward.1} parent=1 // pred_check
      _
    $region63: #{my_bert_forward.1} parent=1 // pred_check_branch
      %54 = sbr.rel (0) target = $region65
    $region64: #{my_bert_forward.1} parent=1 // pred_region
      _
    $region65: #{my_bert_forward.1} parent=1 // pred_fallthru
      _
    // Predicated region
    $region66: #{my_bert_forward.1} parent=1 // pred_check
      _
    $region67: #{my_bert_forward.1} parent=1 // pred_check_branch
      %56 = sbr.rel (0) target = $region69
    $region68: #{my_bert_forward.1} parent=1 // pred_region
      _
    $region69: #{my_bert_forward.1} parent=1 // pred_fallthru
      _
    %v58 = vld [vmem:[%s0] sm:$0xff]
    %v59 = vld [vmem:[%s0 + $0x8] sm:$0xff]
    %v60 = vlaneseq
    %v61 = vand.u32 %v60, 127
    %62 = vset.pattern.permute.xlu0 0
    %63 = vperm.xlu0 %62, %v58
    %v64 = vpop.permute.xlu0 %63
    %65 = vset.pattern.permute.xlu0 0
    %66 = vperm.xlu0 %65, %v59
    %v67 = vpop.permute.xlu0 %66
    %vm68 = vcmp.eq.s32.totalorder %v64, %v61
    %vm69 = vcmp.eq.s32.totalorder %v67, %v61
    %v70 = vsel %vm68, 1.0, 0.0
    %v71 = vsel %vm69, 1.0, 0.0
    %v72 = vpack.c.bf16 %v71, %v70
    %v73 = vld [vmem:[%s1] sm:$0xf]
    %v74 = vld [vmem:[%s1 + $0x4] sm:$0xf]
    %v75 = vld [vmem:[%s1 + $0x8] sm:$0xf]
    %v76 = vld [vmem:[%s1 + $0xc] sm:$0xf]
    %v77 = vld [vmem:[%s1 + $0x10] sm:$0xf]
    %v78 = vld [vmem:[%s1 + $0x14] sm:$0xf]
    %v79 = vld [vmem:[%s1 + $0x18] sm:$0xf]
    %v80 = vld [vmem:[%s1 + $0x1c] sm:$0xf]
    %v81 = vld [vmem:[%s1 + $0x20] sm:$0xf]
    %v82 = vld [vmem:[%s1 + $0x24] sm:$0xf]
    %v83 = vld [vmem:[%s1 + $0x28] sm:$0xf]
    %v84 = vld [vmem:[%s1 + $0x2c] sm:$0xf]
    %v85 = vld [vmem:[%s1 + $0x30] sm:$0x3]
    %v99 = vunpack.c.l.b16 %v73
    %v100 = vunpack.c.l.b16 %v74
    %v101 = vunpack.c.l.b16 %v75
    %v102 = vunpack.c.l.b16 %v76
    %v103 = vunpack.c.l.b16 %v77
    %v104 = vunpack.c.l.b16 %v78
    %v105 = vunpack.c.l.b16 %v79
    %v106 = vunpack.c.l.b16 %v80
    %v107 = vunpack.c.l.b16 %v81
    %v108 = vunpack.c.l.b16 %v82
    %v109 = vunpack.c.l.b16 %v83
    %v110 = vunpack.c.l.b16 %v84
    %v111 = vunpack.c.l.b16 %v85
    %v112 = vpack.c.b16 %v100, %v99
    %v113 = vpack.c.b16 %v102, %v101
    %v114 = vpack.c.b16 %v104, %v103
    %v115 = vpack.c.b16 %v106, %v105
    %v116 = vpack.c.b16 %v108, %v107
    %v117 = vpack.c.b16 %v110, %v109
    %v118 = vpack.c.b16 %v111, %v111
    %vm125 = vcmask 818176
    %v127 = vsel %vm125, %v72, 0
    %vm129 = vcmask 1041408
    %v131 = vsel %vm129, %v118, 0
    %133 = vmatpush.bf16.msra.mxu0 0
    %134 = vmatpush.bf16.msra.mxu0 %v131
    %135 = vmatpush.bf16.msra.mxu0 %v117
    %136 = vmatpush.bf16.msra.mxu0 %v116
    %137 = vmatpush.bf16.msra.mxu0 %v115
    %138 = vmatpush.bf16.msra.mxu0 %v114
    %139 = vmatpush.bf16.msra.mxu0 %v113
    %140 = vmatpush.bf16.msra.mxu0 %v112
    %141 = vmatmul.bf16.gmra.mxu0 %v127
    %v142 = vpop.f32.mrf.mxu0
    %v143 = vadd.f32 0.0, %v142
    %v144 = vpop.f32.mrf.mxu0
    %v145 = vadd.f32 0.0, %v144
    %146 = vdwg.mxu0
    %v147 = vld [vmem:[%s2] sm:$0xff]
    %v148 = vadd.f32 %v143, %v147
    %v149 = vadd.f32 %v145, %v147
    %v150 = vld [vmem:[%s3] sm:$0x1]
    %v151 = vld [vmem:[%s4] sm:$0x1]
    %vm152 = vcmask 261120
    %v153 = vsel %vm152, %v148, 0.0
    %154 = vadd.xlane.f32.xlu0 %v153
    %v155 = vpop.xlane.xlu0 %154
    %v156 = vsel %vm152, %v149, 0.0
    %157 = vadd.xlane.f32.xlu0 %v156
    %v158 = vpop.xlane.xlu0 %157
    %v159 = vrcp.pop 32.0
    %v160 = vmul.f32 32.0, %v159
    %v161 = vsub.f32 1.0, %v160
    %v162 = vmul.f32 %v159, %v161
    %v163 = vadd.f32 %v159, %v162
    %vm164 = vweird.f32 %v159
    %v165 = vsel %vm164, %v159, %v163
    %v166 = vmul.f32 %v155, %v165
    %v167 = vmul.f32 %v158, %v165
    %v168 = vsub.f32 %v148, %v166
    %v169 = vsub.f32 %v149, %v167
    %v170 = vmul.f32 %v168, %v168
    %v171 = vmul.f32 %v169, %v169
    %v172 = vsel %vm152, %v170, 0.0
    %173 = vadd.xlane.f32.xlu0 %v172
    %v174 = vpop.xlane.xlu0 %173
    %v175 = vsel %vm152, %v171, 0.0
    %176 = vadd.xlane.f32.xlu0 %v175
    %v177 = vpop.xlane.xlu0 %176
    %v178 = vmul.f32 %v174, %v165
    %v179 = vmul.f32 %v177, %v165
    %v180 = vadd.f32 %v178, 1e-12
    %v181 = vadd.f32 %v179, 1e-12
    %v182 = vrsqrt.pop %v180
    %v183 = vmul.f32 %v182, %v180
    %v184 = vmul.f32 %v183, %v182
    %v185 = vmul.f32 0.5, %v184
    %v186 = vsub.f32 1.5, %v185
    %v187 = vmul.f32 %v182, %v186
    %vm188 = vweird.f32 %v180
    %vm189 = vweird.f32 %v182
    %vm190 = vmor %vm188, %vm189
    %v191 = vsel %vm190, %v182, %v187
    %v192 = vrsqrt.pop %v181
    %v193 = vmul.f32 %v192, %v181
    %v194 = vmul.f32 %v193, %v192
    %v195 = vmul.f32 0.5, %v194
    %v196 = vsub.f32 1.5, %v195
    %v197 = vmul.f32 %v192, %v196
    %vm198 = vweird.f32 %v181
    %vm199 = vweird.f32 %v192
    %vm200 = vmor %vm198, %vm199
    %v201 = vsel %vm200, %v192, %v197
    %v202 = vmul.f32 %v168, %v191
    %v203 = vmul.f32 %v169, %v201
    %v205 = vperm.slane %v150, 0
    %v207 = vmul.f32 %v202, %v205
    %v208 = vmul.f32 %v203, %v205
    %v210 = vperm.slane %v151, 0
    %v212 = vadd.f32 %v207, %v210
    %v213 = vadd.f32 %v208, %v210
    %v214 = vpack.c.bf16 %v213, %v212
    %v215 = vld [vmem:[%s5] sm:$0xf]
    %v216 = vld [vmem:[%s5 + $0x4] sm:$0xf]
    %v217 = vld [vmem:[%s5 + $0x8] sm:$0xf]
    %v218 = vld [vmem:[%s5 + $0xc] sm:$0xf]
    %v219 = vld [vmem:[%s6] sm:$0x1]
    %v221 = vperm.slane %v219, 0
    %v227 = vunpack.c.l.b16 %v215
    %v228 = vunpack.c.l.b16 %v216
    %v229 = vunpack.c.l.b16 %v217
    %v230 = vunpack.c.l.b16 %v218
    %v231 = vpack.c.b16 %v228, %v227
    %v232 = vpack.c.b16 %v230, %v229
    %v236 = vsel %vm152, %v214, 0
    %238 = vmatpush.bf16.msra.mxu0 0
    %239 = vmatpush.bf16.msra.mxu0 0
    %240 = vmatpush.bf16.msra.mxu0 0
    %241 = vmatpush.bf16.msra.mxu0 0
    %242 = vmatpush.bf16.msra.mxu0 0
    %243 = vmatpush.bf16.msra.mxu0 0
    %244 = vmatpush.bf16.msra.mxu0 %v232
    %245 = vmatpush.bf16.msra.mxu0 %v231
    %246 = vmatmul.bf16.gmra.mxu0 %v236
    %v247 = vpop.f32.mrf.mxu0
    %v248 = vadd.f32 %v221, %v247
    %v249 = vpop.f32.mrf.mxu0
    %v250 = vadd.f32 %v221, %v249
    %251 = vdwg.mxu0
    %252 = vxpose.xlu0.b32.start [1/16] %v248, 128
    %253 = vxpose.xlu0.b32.cont [2/16] 0.0, 128
    %254 = vxpose.xlu0.b32.cont [3/16] 0.0, 128
    %255 = vxpose.xlu0.b32.cont [4/16] 0.0, 128
    %256 = vxpose.xlu0.b32.cont [5/16] 0.0, 128
    %257 = vxpose.xlu0.b32.cont [6/16] 0.0, 128
    %258 = vxpose.xlu0.b32.cont [7/16] 0.0, 128
    %259 = vxpose.xlu0.b32.cont [8/16] 0.0, 128
    %260 = vxpose.xlu0.b32.cont [9/16] 0.0, 128
    %261 = vxpose.xlu0.b32.cont [10/16] 0.0, 128
    %262 = vxpose.xlu0.b32.cont [11/16] 0.0, 128
    %263 = vxpose.xlu0.b32.cont [12/16] 0.0, 128
    %264 = vxpose.xlu0.b32.cont [13/16] 0.0, 128
    %265 = vxpose.xlu0.b32.cont [14/16] 0.0, 128
    %266 = vxpose.xlu0.b32.cont [15/16] 0.0, 128
    %267 = vxpose.xlu0.b32.end [16/16] 0.0, 128
    %v268 = vpop.trf.xlu0
    %v269 = vpop.trf.xlu0
    %v270 = vpop.trf.xlu0
    %v271 = vpop.trf.xlu0
    %v272 = vpop.trf.xlu0
    %v273 = vpop.trf.xlu0
    %v274 = vpop.trf.xlu0
    %v275 = vpop.trf.xlu0
    %v276 = vpop.trf.xlu0
    %v277 = vpop.trf.xlu0
    %v278 = vpop.trf.xlu0
    %v279 = vpop.trf.xlu0
    %v280 = vpop.trf.xlu0
    %v281 = vpop.trf.xlu0
    %v282 = vpop.trf.xlu0
    %v283 = vpop.trf.xlu0
    %284 = vxpose.xlu0.b32.start [1/16] %v268, 128
    %285 = vxpose.xlu0.b32.cont [2/16] 0.0, 128
    %286 = vxpose.xlu0.b32.cont [3/16] 0.0, 128
    %287 = vxpose.xlu0.b32.cont [4/16] 0.0, 128
    %288 = vxpose.xlu0.b32.cont [5/16] 0.0, 128
    %289 = vxpose.xlu0.b32.cont [6/16] 0.0, 128
    %290 = vxpose.xlu0.b32.cont [7/16] 0.0, 128
    %291 = vxpose.xlu0.b32.cont [8/16] 0.0, 128
    %292 = vxpose.xlu0.b32.cont [9/16] 0.0, 128
    %293 = vxpose.xlu0.b32.cont [10/16] 0.0, 128
    %294 = vxpose.xlu0.b32.cont [11/16] 0.0, 128
    %295 = vxpose.xlu0.b32.cont [12/16] 0.0, 128
    %296 = vxpose.xlu0.b32.cont [13/16] 0.0, 128
    %297 = vxpose.xlu0.b32.cont [14/16] 0.0, 128
    %298 = vxpose.xlu0.b32.cont [15/16] 0.0, 128
    %299 = vxpose.xlu0.b32.end [16/16] 0.0, 128
    %v300 = vpop.trf.xlu0
    %v301 = vpop.trf.xlu0
    %v302 = vpop.trf.xlu0
    %v303 = vpop.trf.xlu0
    %v304 = vpop.trf.xlu0
    %v305 = vpop.trf.xlu0
    %v306 = vpop.trf.xlu0
    %v307 = vpop.trf.xlu0
    %v308 = vpop.trf.xlu0
    %v309 = vpop.trf.xlu0
    %v310 = vpop.trf.xlu0
    %v311 = vpop.trf.xlu0
    %v312 = vpop.trf.xlu0
    %v313 = vpop.trf.xlu0
    %v314 = vpop.trf.xlu0
    %v315 = vpop.trf.xlu0
    %316 = vxpose.xlu0.b32.start [1/16] %v269, 128
    %317 = vxpose.xlu0.b32.cont [2/16] 0.0, 128
    %318 = vxpose.xlu0.b32.cont [3/16] 0.0, 128
    %319 = vxpose.xlu0.b32.cont [4/16] 0.0, 128
    %320 = vxpose.xlu0.b32.cont [5/16] 0.0, 128
    %321 = vxpose.xlu0.b32.cont [6/16] 0.0, 128
    %322 = vxpose.xlu0.b32.cont [7/16] 0.0, 128
    %323 = vxpose.xlu0.b32.cont [8/16] 0.0, 128
    %324 = vxpose.xlu0.b32.cont [9/16] 0.0, 128
    %325 = vxpose.xlu0.b32.cont [10/16] 0.0, 128
    %326 = vxpose.xlu0.b32.cont [11/16] 0.0, 128
    %327 = vxpose.xlu0.b32.cont [12/16] 0.0, 128
    %328 = vxpose.xlu0.b32.cont [13/16] 0.0, 128
    %329 = vxpose.xlu0.b32.cont [14/16] 0.0, 128
    %330 = vxpose.xlu0.b32.cont [15/16] 0.0, 128
    %331 = vxpose.xlu0.b32.end [16/16] 0.0, 128
    %v332 = vpop.trf.xlu0
    %v333 = vpop.trf.xlu0
    %v334 = vpop.trf.xlu0
    %v335 = vpop.trf.xlu0
    %v336 = vpop.trf.xlu0
    %v337 = vpop.trf.xlu0
    %v338 = vpop.trf.xlu0
    %v339 = vpop.trf.xlu0
    %v340 = vpop.trf.xlu0
    %v341 = vpop.trf.xlu0
    %v342 = vpop.trf.xlu0
    %v343 = vpop.trf.xlu0
    %v344 = vpop.trf.xlu0
    %v345 = vpop.trf.xlu0
    %v346 = vpop.trf.xlu0
    %v347 = vpop.trf.xlu0
    %348 = vxpose.xlu0.b32.start [1/16] %v270, 128
    %349 = vxpose.xlu0.b32.cont [2/16] 0.0, 128
    %350 = vxpose.xlu0.b32.cont [3/16] 0.0, 128
    %351 = vxpose.xlu0.b32.cont [4/16] 0.0, 128
    %352 = vxpose.xlu0.b32.cont [5/16] 0.0, 128
    %353 = vxpose.xlu0.b32.cont [6/16] 0.0, 128
    %354 = vxpose.xlu0.b32.cont [7/16] 0.0, 128
    %355 = vxpose.xlu0.b32.cont [8/16] 0.0, 128
    %356 = vxpose.xlu0.b32.cont [9/16] 0.0, 128
    %357 = vxpose.xlu0.b32.cont [10/16] 0.0, 128
    %358 = vxpose.xlu0.b32.cont [11/16] 0.0, 128
    %359 = vxpose.xlu0.b32.cont [12/16] 0.0, 128
    %360 = vxpose.xlu0.b32.cont [13/16] 0.0, 128
    %361 = vxpose.xlu0.b32.cont [14/16] 0.0, 128
    %362 = vxpose.xlu0.b32.cont [15/16] 0.0, 128
    %363 = vxpose.xlu0.b32.end [16/16] 0.0, 128
    %v364 = vpop.trf.xlu0
    %v365 = vpop.trf.xlu0
    %v366 = vpop.trf.xlu0
    %v367 = vpop.trf.xlu0
    %v368 = vpop.trf.xlu0
    %v369 = vpop.trf.xlu0
    %v370 = vpop.trf.xlu0
    %v371 = vpop.trf.xlu0
    %v372 = vpop.trf.xlu0
    %v373 = vpop.trf.xlu0
    %v374 = vpop.trf.xlu0
    %v375 = vpop.trf.xlu0
    %v376 = vpop.trf.xlu0
    %v377 = vpop.trf.xlu0
    %v378 = vpop.trf.xlu0
    %v379 = vpop.trf.xlu0
    %380 = vxpose.xlu0.b32.start [1/16] %v271, 128
    %381 = vxpose.xlu0.b32.cont [2/16] 0.0, 128
    %382 = vxpose.xlu0.b32.cont [3/16] 0.0, 128
    %383 = vxpose.xlu0.b32.cont [4/16] 0.0, 128
    %384 = vxpose.xlu0.b32.cont [5/16] 0.0, 128
    %385 = vxpose.xlu0.b32.cont [6/16] 0.0, 128
    %386 = vxpose.xlu0.b32.cont [7/16] 0.0, 128
    %387 = vxpose.xlu0.b32.cont [8/16] 0.0, 128
    %388 = vxpose.xlu0.b32.cont [9/16] 0.0, 128
    %389 = vxpose.xlu0.b32.cont [10/16] 0.0, 128
    %390 = vxpose.xlu0.b32.cont [11/16] 0.0, 128
    %391 = vxpose.xlu0.b32.cont [12/16] 0.0, 128
    %392 = vxpose.xlu0.b32.cont [13/16] 0.0, 128
    %393 = vxpose.xlu0.b32.cont [14/16] 0.0, 128
    %394 = vxpose.xlu0.b32.cont [15/16] 0.0, 128
    %395 = vxpose.xlu0.b32.end [16/16] 0.0, 128
    %v396 = vpop.trf.xlu0
    %v397 = vpop.trf.xlu0
    %v398 = vpop.trf.xlu0
    %v399 = vpop.trf.xlu0
    %v400 = vpop.trf.xlu0
    %v401 = vpop.trf.xlu0
    %v402 = vpop.trf.xlu0
    %v403 = vpop.trf.xlu0
    %v404 = vpop.trf.xlu0
    %v405 = vpop.trf.xlu0
    %v406 = vpop.trf.xlu0
    %v407 = vpop.trf.xlu0
    %v408 = vpop.trf.xlu0
    %v409 = vpop.trf.xlu0
    %v410 = vpop.trf.xlu0
    %v411 = vpop.trf.xlu0
    %v412 = vpack.c.bf16 %v300, %v300
    %v413 = vpack.c.bf16 %v332, %v332
    %v414 = vpack.c.bf16 %v364, %v364
    %v415 = vpack.c.bf16 %v396, %v396
    %416 = vxpose.xlu0.b32.start [1/16] %v272, 128
    %417 = vxpose.xlu0.b32.cont [2/16] 0.0, 128
    %418 = vxpose.xlu0.b32.cont [3/16] 0.0, 128
    %419 = vxpose.xlu0.b32.cont [4/16] 0.0, 128
    %420 = vxpose.xlu0.b32.cont [5/16] 0.0, 128
    %421 = vxpose.xlu0.b32.cont [6/16] 0.0, 128
    %422 = vxpose.xlu0.b32.cont [7/16] 0.0, 128
    %423 = vxpose.xlu0.b32.cont [8/16] 0.0, 128
    %424 = vxpose.xlu0.b32.cont [9/16] 0.0, 128
    %425 = vxpose.xlu0.b32.cont [10/16] 0.0, 128
    %426 = vxpose.xlu0.b32.cont [11/16] 0.0, 128
    %427 = vxpose.xlu0.b32.cont [12/16] 0.0, 128
    %428 = vxpose.xlu0.b32.cont [13/16] 0.0, 128
    %429 = vxpose.xlu0.b32.cont [14/16] 0.0, 128
    %430 = vxpose.xlu0.b32.cont [15/16] 0.0, 128
    %431 = vxpose.xlu0.b32.end [16/16] 0.0, 128
    %v432 = vpop.trf.xlu0
    %v433 = vpop.trf.xlu0
    %v434 = vpop.trf.xlu0
    %v435 = vpop.trf.xlu0
    %v436 = vpop.trf.xlu0
    %v437 = vpop.trf.xlu0
    %v438 = vpop.trf.xlu0
    %v439 = vpop.trf.xlu0
    %v440 = vpop.trf.xlu0
    %v441 = vpop.trf.xlu0
    %v442 = vpop.trf.xlu0
    %v443 = vpop.trf.xlu0
    %v444 = vpop.trf.xlu0
    %v445 = vpop.trf.xlu0
    %v446 = vpop.trf.xlu0
    %v447 = vpop.trf.xlu0
    %448 = vxpose.xlu0.b32.start [1/16] %v273, 128
    %449 = vxpose.xlu0.b32.cont [2/16] 0.0, 128
    %450 = vxpose.xlu0.b32.cont [3/16] 0.0, 128
    %451 = vxpose.xlu0.b32.cont [4/16] 0.0, 128
    %452 = vxpose.xlu0.b32.cont [5/16] 0.0, 128
    %453 = vxpose.xlu0.b32.cont [6/16] 0.0, 128
    %454 = vxpose.xlu0.b32.cont [7/16] 0.0, 128
    %455 = vxpose.xlu0.b32.cont [8/16] 0.0, 128
    %456 = vxpose.xlu0.b32.cont [9/16] 0.0, 128
    %457 = vxpose.xlu0.b32.cont [10/16] 0.0, 128
    %458 = vxpose.xlu0.b32.cont [11/16] 0.0, 128
    %459 = vxpose.xlu0.b32.cont [12/16] 0.0, 128
    %460 = vxpose.xlu0.b32.cont [13/16] 0.0, 128
    %461 = vxpose.xlu0.b32.cont [14/16] 0.0, 128
    %462 = vxpose.xlu0.b32.cont [15/16] 0.0, 128
    %463 = vxpose.xlu0.b32.end [16/16] 0.0, 128
    %v464 = vpop.trf.xlu0
    %v465 = vpop.trf.xlu0
    %v466 = vpop.trf.xlu0
    %v467 = vpop.trf.xlu0
    %v468 = vpop.trf.xlu0
    %v469 = vpop.trf.xlu0
    %v470 = vpop.trf.xlu0
    %v471 = vpop.trf.xlu0
    %v472 = vpop.trf.xlu0
    %v473 = vpop.trf.xlu0
    %v474 = vpop.trf.xlu0
    %v475 = vpop.trf.xlu0
    %v476 = vpop.trf.xlu0
    %v477 = vpop.trf.xlu0
    %v478 = vpop.trf.xlu0
    %v479 = vpop.trf.xlu0
    %480 = vxpose.xlu0.b32.start [1/16] %v274, 128
    %481 = vxpose.xlu0.b32.cont [2/16] 0.0, 128
    %482 = vxpose.xlu0.b32.cont [3/16] 0.0, 128
    %483 = vxpose.xlu0.b32.cont [4/16] 0.0, 128
    %484 = vxpose.xlu0.b32.cont [5/16] 0.0, 128
    %485 = vxpose.xlu0.b32.cont [6/16] 0.0, 128
    %486 = vxpose.xlu0.b32.cont [7/16] 0.0, 128
    %487 = vxpose.xlu0.b32.cont [8/16] 0.0, 128
    %488 = vxpose.xlu0.b32.cont [9/16] 0.0, 128
    %489 = vxpose.xlu0.b32.cont [10/16] 0.0, 128
    %490 = vxpose.xlu0.b32.cont [11/16] 0.0, 128
    %491 = vxpose.xlu0.b32.cont [12/16] 0.0, 128
    %492 = vxpose.xlu0.b32.cont [13/16] 0.0, 128
    %493 = vxpose.xlu0.b32.cont [14/16] 0.0, 128
    %494 = vxpose.xlu0.b32.cont [15/16] 0.0, 128
    %495 = vxpose.xlu0.b32.end [16/16] 0.0, 128
    %v496 = vpop.trf.xlu0
    %v497 = vpop.trf.xlu0
    %v498 = vpop.trf.xlu0
    %v499 = vpop.trf.xlu0
    %v500 = vpop.trf.xlu0
    %v501 = vpop.trf.xlu0
    %v502 = vpop.trf.xlu0
    %v503 = vpop.trf.xlu0
    %v504 = vpop.trf.xlu0
    %v505 = vpop.trf.xlu0
    %v506 = vpop.trf.xlu0
    %v507 = vpop.trf.xlu0
    %v508 = vpop.trf.xlu0
    %v509 = vpop.trf.xlu0
    %v510 = vpop.trf.xlu0
    %v511 = vpop.trf.xlu0
    %512 = vxpose.xlu0.b32.start [1/16] %v275, 128
    %513 = vxpose.xlu0.b32.cont [2/16] 0.0, 128
    %514 = vxpose.xlu0.b32.cont [3/16] 0.0, 128
    %515 = vxpose.xlu0.b32.cont [4/16] 0.0, 128
    %516 = vxpose.xlu0.b32.cont [5/16] 0.0, 128
    %517 = vxpose.xlu0.b32.cont [6/16] 0.0, 128
    %518 = vxpose.xlu0.b32.cont [7/16] 0.0, 128
    %519 = vxpose.xlu0.b32.cont [8/16] 0.0, 128
    %520 = vxpose.xlu0.b32.cont [9/16] 0.0, 128
    %521 = vxpose.xlu0.b32.cont [10/16] 0.0, 128
    %522 = vxpose.xlu0.b32.cont [11/16] 0.0, 128
    %523 = vxpose.xlu0.b32.cont [12/16] 0.0, 128
    %524 = vxpose.xlu0.b32.cont [13/16] 0.0, 128
    %525 = vxpose.xlu0.b32.cont [14/16] 0.0, 128
    %526 = vxpose.xlu0.b32.cont [15/16] 0.0, 128
    %527 = vxpose.xlu0.b32.end [16/16] 0.0, 128
    %v528 = vpop.trf.xlu0
    %v529 = vpop.trf.xlu0
    %v530 = vpop.trf.xlu0
    %v531 = vpop.trf.xlu0
    %v532 = vpop.trf.xlu0
    %v533 = vpop.trf.xlu0
    %v534 = vpop.trf.xlu0
    %v535 = vpop.trf.xlu0
    %v536 = vpop.trf.xlu0
    %v537 = vpop.trf.xlu0
    %v538 = vpop.trf.xlu0
    %v539 = vpop.trf.xlu0
    %v540 = vpop.trf.xlu0
    %v541 = vpop.trf.xlu0
    %v542 = vpop.trf.xlu0
    %v543 = vpop.trf.xlu0
    %v544 = vpack.c.bf16 %v432, %v432
    %v545 = vpack.c.bf16 %v464, %v464
    %v546 = vpack.c.bf16 %v496, %v496
    %v547 = vpack.c.bf16 %v528, %v528
    %548 = vxpose.xlu0.b32.start [1/16] %v276, 128
    %549 = vxpose.xlu0.b32.cont [2/16] 0.0, 128
    %550 = vxpose.xlu0.b32.cont [3/16] 0.0, 128
    %551 = vxpose.xlu0.b32.cont [4/16] 0.0, 128
    %552 = vxpose.xlu0.b32.cont [5/16] 0.0, 128
    %553 = vxpose.xlu0.b32.cont [6/16] 0.0, 128
    %554 = vxpose.xlu0.b32.cont [7/16] 0.0, 128
    %555 = vxpose.xlu0.b32.cont [8/16] 0.0, 128
    %556 = vxpose.xlu0.b32.cont [9/16] 0.0, 128
    %557 = vxpose.xlu0.b32.cont [10/16] 0.0, 128
    %558 = vxpose.xlu0.b32.cont [11/16] 0.0, 128
    %559 = vxpose.xlu0.b32.cont [12/16] 0.0, 128
    %560 = vxpose.xlu0.b32.cont [13/16] 0.0, 128
    %561 = vxpose.xlu0.b32.cont [14/16] 0.0, 128
    %562 = vxpose.xlu0.b32.cont [15/16] 0.0, 128
    %563 = vxpose.xlu0.b32.end [16/16] 0.0, 128
    %v564 = vpop.trf.xlu0
    %v565 = vpop.trf.xlu0
    %v566 = vpop.trf.xlu0
    %v567 = vpop.trf.xlu0
    %v568 = vpop.trf.xlu0
    %v569 = vpop.trf.xlu0
    %v570 = vpop.trf.xlu0
    %v571 = vpop.trf.xlu0
    %v572 = vpop.trf.xlu0
    %v573 = vpop.trf.xlu0
    %v574 = vpop.trf.xlu0
    %v575 = vpop.trf.xlu0
    %v576 = vpop.trf.xlu0
    %v577 = vpop.trf.xlu0
    %v578 = vpop.trf.xlu0
    %v579 = vpop.trf.xlu0
    %580 = vxpose.xlu0.b32.start [1/16] %v277, 128
    %581 = vxpose.xlu0.b32.cont [2/16] 0.0, 128
    %582 = vxpose.xlu0.b32.cont [3/16] 0.0, 128
    %583 = vxpose.xlu0.b32.cont [4/16] 0.0, 128
    %584 = vxpose.xlu0.b32.cont [5/16] 0.0, 128
    %585 = vxpose.xlu0.b32.cont [6/16] 0.0, 128
    %586 = vxpose.xlu0.b32.cont [7/16] 0.0, 128
    %587 = vxpose.xlu0.b32.cont [8/16] 0.0, 128
    %588 = vxpose.xlu0.b32.cont [9/16] 0.0, 128
    %589 = vxpose.xlu0.b32.cont [10/16] 0.0, 128
    %590 = vxpose.xlu0.b32.cont [11/16] 0.0, 128
    %591 = vxpose.xlu0.b32.cont [12/16] 0.0, 128
    %592 = vxpose.xlu0.b32.cont [13/16] 0.0, 128
    %593 = vxpose.xlu0.b32.cont [14/16] 0.0, 128
    %594 = vxpose.xlu0.b32.cont [15/16] 0.0, 128
    %595 = vxpose.xlu0.b32.end [16/16] 0.0, 128
    %v596 = vpop.trf.xlu0
    %v597 = vpop.trf.xlu0
    %v598 = vpop.trf.xlu0
    %v599 = vpop.trf.xlu0
    %v600 = vpop.trf.xlu0
    %v601 = vpop.trf.xlu0
    %v602 = vpop.trf.xlu0
    %v603 = vpop.trf.xlu0
    %v604 = vpop.trf.xlu0
    %v605 = vpop.trf.xlu0
    %v606 = vpop.trf.xlu0
    %v607 = vpop.trf.xlu0
    %v608 = vpop.trf.xlu0
    %v609 = vpop.trf.xlu0
    %v610 = vpop.trf.xlu0
    %v611 = vpop.trf.xlu0
    %612 = vxpose.xlu0.b32.start [1/16] %v278, 128
    %613 = vxpose.xlu0.b32.cont [2/16] 0.0, 128
    %614 = vxpose.xlu0.b32.cont [3/16] 0.0, 128
    %615 = vxpose.xlu0.b32.cont [4/16] 0.0, 128
    %616 = vxpose.xlu0.b32.cont [5/16] 0.0, 128
    %617 = vxpose.xlu0.b32.cont [6/16] 0.0, 128
    %618 = vxpose.xlu0.b32.cont [7/16] 0.0, 128
    %619 = vxpose.xlu0.b32.cont [8/16] 0.0, 128
    %620 = vxpose.xlu0.b32.cont [9/16] 0.0, 128
    %621 = vxpose.xlu0.b32.cont [10/16] 0.0, 128
    %622 = vxpose.xlu0.b32.cont [11/16] 0.0, 128
    %623 = vxpose.xlu0.b32.cont [12/16] 0.0, 128
    %624 = vxpose.xlu0.b32.cont [13/16] 0.0, 128
    %625 = vxpose.xlu0.b32.cont [14/16] 0.0, 128
    %626 = vxpose.xlu0.b32.cont [15/16] 0.0, 128
    %627 = vxpose.xlu0.b32.end [16/16] 0.0, 128
    %v628 = vpop.trf.xlu0
    %v629 = vpop.trf.xlu0
    %v630 = vpop.trf.xlu0
    %v631 = vpop.trf.xlu0
    %v632 = vpop.trf.xlu0
    %v633 = vpop.trf.xlu0
    %v634 = vpop.trf.xlu0
    %v635 = vpop.trf.xlu0
    %v636 = vpop.trf.xlu0
    %v637 = vpop.trf.xlu0
    %v638 = vpop.trf.xlu0
    %v639 = vpop.trf.xlu0
    %v640 = vpop.trf.xlu0
    %v641 = vpop.trf.xlu0
    %v642 = vpop.trf.xlu0
    %v643 = vpop.trf.xlu0
    %644 = vxpose.xlu0.b32.start [1/16] %v279, 128
    %645 = vxpose.xlu0.b32.cont [2/16] 0.0, 128
    %646 = vxpose.xlu0.b32.cont [3/16] 0.0, 128
    %647 = vxpose.xlu0.b32.cont [4/16] 0.0, 128
    %648 = vxpose.xlu0.b32.cont [5/16] 0.0, 128
    %649 = vxpose.xlu0.b32.cont [6/16] 0.0, 128
    %650 = vxpose.xlu0.b32.cont [7/16] 0.0, 128
    %651 = vxpose.xlu0.b32.cont [8/16] 0.0, 128
    %652 = vxpose.xlu0.b32.cont [9/16] 0.0, 128
    %653 = vxpose.xlu0.b32.cont [10/16] 0.0, 128
    %654 = vxpose.xlu0.b32.cont [11/16] 0.0, 128
    %655 = vxpose.xlu0.b32.cont [12/16] 0.0, 128
    %656 = vxpose.xlu0.b32.cont [13/16] 0.0, 128
    %657 = vxpose.xlu0.b32.cont [14/16] 0.0, 128
    %658 = vxpose.xlu0.b32.cont [15/16] 0.0, 128
    %659 = vxpose.xlu0.b32.end [16/16] 0.0, 128
    %v660 = vpop.trf.xlu0
    %v661 = vpop.trf.xlu0
    %v662 = vpop.trf.xlu0
    %v663 = vpop.trf.xlu0
    %v664 = vpop.trf.xlu0
    %v665 = vpop.trf.xlu0
    %v666 = vpop.trf.xlu0
    %v667 = vpop.trf.xlu0
    %v668 = vpop.trf.xlu0
    %v669 = vpop.trf.xlu0
    %v670 = vpop.trf.xlu0
    %v671 = vpop.trf.xlu0
    %v672 = vpop.trf.xlu0
    %v673 = vpop.trf.xlu0
    %v674 = vpop.trf.xlu0
    %v675 = vpop.trf.xlu0
    %v676 = vpack.c.bf16 %v564, %v564
    %v677 = vpack.c.bf16 %v596, %v596
    %v678 = vpack.c.bf16 %v628, %v628
    %v679 = vpack.c.bf16 %v660, %v660
    %vm680 = vcmask 64512
    %v682 = vsel %vm680, %v412, 0
    %v685 = vsel %vm680, %v544, 0
    %687 = vmatpush.bf16.xpose.msra.mxu0 0
    %688 = vmatpush.bf16.xpose.msra.mxu0 0
    %689 = vmatpush.bf16.xpose.msra.mxu0 0
    %690 = vmatpush.bf16.xpose.msra.mxu0 0
    %691 = vmatpush.bf16.xpose.msra.mxu0 0
    %692 = vmatpush.bf16.xpose.msra.mxu0 0
    %693 = vmatpush.bf16.xpose.msra.mxu0 0
    %694 = vmatpush.bf16.xpose.msra.mxu0 %v685
    %695 = vmatmul.bf16.gmra.mxu0 %v682
    %v696 = vpop.f32.mrf.mxu0
    %v697 = vadd.f32 0.0, %v696
    %v698 = vpop.f32.mrf.mxu0
    %699 = vdwg.mxu0
    %v701 = vsel %vm680, %v413, 0
    %v704 = vsel %vm680, %v545, 0
    %706 = vmatpush.bf16.xpose.msra.mxu0 0
    %707 = vmatpush.bf16.xpose.msra.mxu0 0
    %708 = vmatpush.bf16.xpose.msra.mxu0 0
    %709 = vmatpush.bf16.xpose.msra.mxu0 0
    %710 = vmatpush.bf16.xpose.msra.mxu0 0
    %711 = vmatpush.bf16.xpose.msra.mxu0 0
    %712 = vmatpush.bf16.xpose.msra.mxu0 0
    %713 = vmatpush.bf16.xpose.msra.mxu0 %v704
    %714 = vmatmul.bf16.gmra.mxu0 %v701
    %v715 = vpop.f32.mrf.mxu0
    %v716 = vadd.f32 0.0, %v715
    %v717 = vpop.f32.mrf.mxu0
    %718 = vdwg.mxu0
    %v720 = vsel %vm680, %v414, 0
    %v723 = vsel %vm680, %v546, 0
    %725 = vmatpush.bf16.xpose.msra.mxu0 0
    %726 = vmatpush.bf16.xpose.msra.mxu0 0
    %727 = vmatpush.bf16.xpose.msra.mxu0 0
    %728 = vmatpush.bf16.xpose.msra.mxu0 0
    %729 = vmatpush.bf16.xpose.msra.mxu0 0
    %730 = vmatpush.bf16.xpose.msra.mxu0 0
    %731 = vmatpush.bf16.xpose.msra.mxu0 0
    %732 = vmatpush.bf16.xpose.msra.mxu0 %v723
    %733 = vmatmul.bf16.gmra.mxu0 %v720
    %v734 = vpop.f32.mrf.mxu0
    %v735 = vadd.f32 0.0, %v734
    %v736 = vpop.f32.mrf.mxu0
    %737 = vdwg.mxu0
    %v739 = vsel %vm680, %v415, 0
    %v742 = vsel %vm680, %v547, 0
    %744 = vmatpush.bf16.xpose.msra.mxu0 0
    %745 = vmatpush.bf16.xpose.msra.mxu0 0
    %746 = vmatpush.bf16.xpose.msra.mxu0 0
    %747 = vmatpush.bf16.xpose.msra.mxu0 0
    %748 = vmatpush.bf16.xpose.msra.mxu0 0
    %749 = vmatpush.bf16.xpose.msra.mxu0 0
    %750 = vmatpush.bf16.xpose.msra.mxu0 0
    %751 = vmatpush.bf16.xpose.msra.mxu0 %v742
    %752 = vmatmul.bf16.gmra.mxu0 %v739
    %v753 = vpop.f32.mrf.mxu0
    %v754 = vadd.f32 0.0, %v753
    %v755 = vpop.f32.mrf.mxu0
    %756 = vdwg.mxu0
    %v757 = vsel %vm680, %v697, -inf
    %758 = vmax.xlane.f32.xlu0 %v757
    %v759 = vpop.xlane.xlu0 %758
    %v760 = vsel %vm680, %v716, -inf
    %761 = vmax.xlane.f32.xlu0 %v760
    %v762 = vpop.xlane.xlu0 %761
    %v763 = vsel %vm680, %v735, -inf
    %764 = vmax.xlane.f32.xlu0 %v763
    %v765 = vpop.xlane.xlu0 %764
    %v766 = vsel %vm680, %v754, -inf
    %767 = vmax.xlane.f32.xlu0 %v766
    %v768 = vpop.xlane.xlu0 %767
    %v769 = vsub.f32 %v697, %v759
    %v770 = vsub.f32 %v716, %v762
    %v771 = vsub.f32 %v735, %v765
    %v772 = vsub.f32 %v754, %v768
    %v773 = vmul.f32 %v769, 1.442695
    %v774 = vpow.pop %v773
    %v775 = vmul.f32 %v770, 1.442695
    %v776 = vpow.pop %v775
    %v777 = vmul.f32 %v771, 1.442695
    %v778 = vpow.pop %v777
    %v779 = vmul.f32 %v772, 1.442695
    %v780 = vpow.pop %v779
    %v781 = vsel %vm680, %v774, 0.0
    %782 = vadd.xlane.f32.xlu0 %v781
    %v783 = vpop.xlane.xlu0 %782
    %v784 = vsel %vm680, %v776, 0.0
    %785 = vadd.xlane.f32.xlu0 %v784
    %v786 = vpop.xlane.xlu0 %785
    %v787 = vsel %vm680, %v778, 0.0
    %788 = vadd.xlane.f32.xlu0 %v787
    %v789 = vpop.xlane.xlu0 %788
    %v790 = vsel %vm680, %v780, 0.0
    %791 = vadd.xlane.f32.xlu0 %v790
    %v792 = vpop.xlane.xlu0 %791
    %v793 = vrcp.pop %v783
    %v794 = vrcp.pop %v786
    %v795 = vrcp.pop %v789
    %v796 = vrcp.pop %v792
    %v797 = vmul.f32 %v774, %v793
    %v798 = vmul.f32 %v776, %v794
    %v799 = vmul.f32 %v778, %v795
    %v800 = vmul.f32 %v780, %v796
    %v801 = vpack.c.bf16 %v797, %v797
    %v802 = vpack.c.bf16 %v798, %v798
    %v803 = vpack.c.bf16 %v799, %v799
    %v804 = vpack.c.bf16 %v800, %v800
    %v806 = vsel %vm680, %v801, 0
    %vm808 = vcmask 1043456
    %v810 = vsel %vm808, %v676, 0
    %812 = vmatpush.bf16.msra.mxu0 0
    %813 = vmatpush.bf16.msra.mxu0 0
    %814 = vmatpush.bf16.msra.mxu0 0
    %815 = vmatpush.bf16.msra.mxu0 0
    %816 = vmatpush.bf16.msra.mxu0 0
    %817 = vmatpush.bf16.msra.mxu0 0
    %818 = vmatpush.bf16.msra.mxu0 0
    %819 = vmatpush.bf16.msra.mxu0 %v810
    %820 = vmatmul.bf16.gmra.mxu0 %v806
    %v821 = vpop.f32.mrf.mxu0
    %v822 = vadd.f32 0.0, %v821
    %v823 = vpop.f32.mrf.mxu0
    %824 = vdwg.mxu0
    %v826 = vsel %vm680, %v802, 0
    %v829 = vsel %vm808, %v677, 0
    %831 = vmatpush.bf16.msra.mxu0 0
    %832 = vmatpush.bf16.msra.mxu0 0
    %833 = vmatpush.bf16.msra.mxu0 0
    %834 = vmatpush.bf16.msra.mxu0 0
    %835 = vmatpush.bf16.msra.mxu0 0
    %836 = vmatpush.bf16.msra.mxu0 0
    %837 = vmatpush.bf16.msra.mxu0 0
    %838 = vmatpush.bf16.msra.mxu0 %v829
    %839 = vmatmul.bf16.gmra.mxu0 %v826
    %v840 = vpop.f32.mrf.mxu0
    %v841 = vadd.f32 0.0, %v840
    %v842 = vpop.f32.mrf.mxu0
    %843 = vdwg.mxu0
    %v845 = vsel %vm680, %v803, 0
    %v848 = vsel %vm808, %v678, 0
    %850 = vmatpush.bf16.msra.mxu0 0
    %851 = vmatpush.bf16.msra.mxu0 0
    %852 = vmatpush.bf16.msra.mxu0 0
    %853 = vmatpush.bf16.msra.mxu0 0
    %854 = vmatpush.bf16.msra.mxu0 0
    %855 = vmatpush.bf16.msra.mxu0 0
    %856 = vmatpush.bf16.msra.mxu0 0
    %857 = vmatpush.bf16.msra.mxu0 %v848
    %858 = vmatmul.bf16.gmra.mxu0 %v845
    %v859 = vpop.f32.mrf.mxu0
    %v860 = vadd.f32 0.0, %v859
    %v861 = vpop.f32.mrf.mxu0
    %862 = vdwg.mxu0
    %v864 = vsel %vm680, %v804, 0
    %v867 = vsel %vm808, %v679, 0
    %869 = vmatpush.bf16.msra.mxu0 0
    %870 = vmatpush.bf16.msra.mxu0 0
    %871 = vmatpush.bf16.msra.mxu0 0
    %872 = vmatpush.bf16.msra.mxu0 0
    %873 = vmatpush.bf16.msra.mxu0 0
    %874 = vmatpush.bf16.msra.mxu0 0
    %875 = vmatpush.bf16.msra.mxu0 0
    %876 = vmatpush.bf16.msra.mxu0 %v867
    %877 = vmatmul.bf16.gmra.mxu0 %v864
    %v878 = vpop.f32.mrf.mxu0
    %v879 = vadd.f32 0.0, %v878
    %v880 = vpop.f32.mrf.mxu0
    %881 = vdwg.mxu0
    %882 = vxpose.xlu0.b32.start [1/16] %v822, 128
    %883 = vxpose.xlu0.b32.cont [2/16] 0.0, 128
    %884 = vxpose.xlu0.b32.cont [3/16] 0.0, 128
    %885 = vxpose.xlu0.b32.cont [4/16] 0.0, 128
    %886 = vxpose.xlu0.b32.cont [5/16] 0.0, 128
    %887 = vxpose.xlu0.b32.cont [6/16] 0.0, 128
    %888 = vxpose.xlu0.b32.cont [7/16] 0.0, 128
    %889 = vxpose.xlu0.b32.cont [8/16] 0.0, 128
    %890 = vxpose.xlu0.b32.cont [9/16] 0.0, 128
    %891 = vxpose.xlu0.b32.cont [10/16] 0.0, 128
    %892 = vxpose.xlu0.b32.cont [11/16] 0.0, 128
    %893 = vxpose.xlu0.b32.cont [12/16] 0.0, 128
    %894 = vxpose.xlu0.b32.cont [13/16] 0.0, 128
    %895 = vxpose.xlu0.b32.cont [14/16] 0.0, 128
    %896 = vxpose.xlu0.b32.cont [15/16] 0.0, 128
    %897 = vxpose.xlu0.b32.end [16/16] 0.0, 128
    %v898 = vpop.trf.xlu0
    %v899 = vpop.trf.xlu0
    %v900 = vpop.trf.xlu0
    %v901 = vpop.trf.xlu0
    %v902 = vpop.trf.xlu0
    %v903 = vpop.trf.xlu0
    %v904 = vpop.trf.xlu0
    %v905 = vpop.trf.xlu0
    %v906 = vpop.trf.xlu0
    %v907 = vpop.trf.xlu0
    %v908 = vpop.trf.xlu0
    %v909 = vpop.trf.xlu0
    %v910 = vpop.trf.xlu0
    %v911 = vpop.trf.xlu0
    %v912 = vpop.trf.xlu0
    %v913 = vpop.trf.xlu0
    %914 = vxpose.xlu0.b32.start [1/16] %v841, 128
    %915 = vxpose.xlu0.b32.cont [2/16] 0.0, 128
    %916 = vxpose.xlu0.b32.cont [3/16] 0.0, 128
    %917 = vxpose.xlu0.b32.cont [4/16] 0.0, 128
    %918 = vxpose.xlu0.b32.cont [5/16] 0.0, 128
    %919 = vxpose.xlu0.b32.cont [6/16] 0.0, 128
    %920 = vxpose.xlu0.b32.cont [7/16] 0.0, 128
    %921 = vxpose.xlu0.b32.cont [8/16] 0.0, 128
    %922 = vxpose.xlu0.b32.cont [9/16] 0.0, 128
    %923 = vxpose.xlu0.b32.cont [10/16] 0.0, 128
    %924 = vxpose.xlu0.b32.cont [11/16] 0.0, 128
    %925 = vxpose.xlu0.b32.cont [12/16] 0.0, 128
    %926 = vxpose.xlu0.b32.cont [13/16] 0.0, 128
    %927 = vxpose.xlu0.b32.cont [14/16] 0.0, 128
    %928 = vxpose.xlu0.b32.cont [15/16] 0.0, 128
    %929 = vxpose.xlu0.b32.end [16/16] 0.0, 128
    %v930 = vpop.trf.xlu0
    %v931 = vpop.trf.xlu0
    %v932 = vpop.trf.xlu0
    %v933 = vpop.trf.xlu0
    %v934 = vpop.trf.xlu0
    %v935 = vpop.trf.xlu0
    %v936 = vpop.trf.xlu0
    %v937 = vpop.trf.xlu0
    %v938 = vpop.trf.xlu0
    %v939 = vpop.trf.xlu0
    %v940 = vpop.trf.xlu0
    %v941 = vpop.trf.xlu0
    %v942 = vpop.trf.xlu0
    %v943 = vpop.trf.xlu0
    %v944 = vpop.trf.xlu0
    %v945 = vpop.trf.xlu0
    %946 = vxpose.xlu0.b32.start [1/16] %v860, 128
    %947 = vxpose.xlu0.b32.cont [2/16] 0.0, 128
    %948 = vxpose.xlu0.b32.cont [3/16] 0.0, 128
    %949 = vxpose.xlu0.b32.cont [4/16] 0.0, 128
    %950 = vxpose.xlu0.b32.cont [5/16] 0.0, 128
    %951 = vxpose.xlu0.b32.cont [6/16] 0.0, 128
    %952 = vxpose.xlu0.b32.cont [7/16] 0.0, 128
    %953 = vxpose.xlu0.b32.cont [8/16] 0.0, 128
    %954 = vxpose.xlu0.b32.cont [9/16] 0.0, 128
    %955 = vxpose.xlu0.b32.cont [10/16] 0.0, 128
    %956 = vxpose.xlu0.b32.cont [11/16] 0.0, 128
    %957 = vxpose.xlu0.b32.cont [12/16] 0.0, 128
    %958 = vxpose.xlu0.b32.cont [13/16] 0.0, 128
    %959 = vxpose.xlu0.b32.cont [14/16] 0.0, 128
    %960 = vxpose.xlu0.b32.cont [15/16] 0.0, 128
    %961 = vxpose.xlu0.b32.end [16/16] 0.0, 128
    %v962 = vpop.trf.xlu0
    %v963 = vpop.trf.xlu0
    %v964 = vpop.trf.xlu0
    %v965 = vpop.trf.xlu0
    %v966 = vpop.trf.xlu0
    %v967 = vpop.trf.xlu0
    %v968 = vpop.trf.xlu0
    %v969 = vpop.trf.xlu0
    %v970 = vpop.trf.xlu0
    %v971 = vpop.trf.xlu0
    %v972 = vpop.trf.xlu0
    %v973 = vpop.trf.xlu0
    %v974 = vpop.trf.xlu0
    %v975 = vpop.trf.xlu0
    %v976 = vpop.trf.xlu0
    %v977 = vpop.trf.xlu0
    %978 = vxpose.xlu0.b32.start [1/16] %v879, 128
    %979 = vxpose.xlu0.b32.cont [2/16] 0.0, 128
    %980 = vxpose.xlu0.b32.cont [3/16] 0.0, 128
    %981 = vxpose.xlu0.b32.cont [4/16] 0.0, 128
    %982 = vxpose.xlu0.b32.cont [5/16] 0.0, 128
    %983 = vxpose.xlu0.b32.cont [6/16] 0.0, 128
    %984 = vxpose.xlu0.b32.cont [7/16] 0.0, 128
    %985 = vxpose.xlu0.b32.cont [8/16] 0.0, 128
    %986 = vxpose.xlu0.b32.cont [9/16] 0.0, 128
    %987 = vxpose.xlu0.b32.cont [10/16] 0.0, 128
    %988 = vxpose.xlu0.b32.cont [11/16] 0.0, 128
    %989 = vxpose.xlu0.b32.cont [12/16] 0.0, 128
    %990 = vxpose.xlu0.b32.cont [13/16] 0.0, 128
    %991 = vxpose.xlu0.b32.cont [14/16] 0.0, 128
    %992 = vxpose.xlu0.b32.cont [15/16] 0.0, 128
    %993 = vxpose.xlu0.b32.end [16/16] 0.0, 128
    %v994 = vpop.trf.xlu0
    %v995 = vpop.trf.xlu0
    %v996 = vpop.trf.xlu0
    %v997 = vpop.trf.xlu0
    %v998 = vpop.trf.xlu0
    %v999 = vpop.trf.xlu0
    %v1000 = vpop.trf.xlu0
    %v1001 = vpop.trf.xlu0
    %v1002 = vpop.trf.xlu0
    %v1003 = vpop.trf.xlu0
    %v1004 = vpop.trf.xlu0
    %v1005 = vpop.trf.xlu0
    %v1006 = vpop.trf.xlu0
    %v1007 = vpop.trf.xlu0
    %v1008 = vpop.trf.xlu0
    %v1009 = vpop.trf.xlu0
    %1010 = vxpose.xlu0.b32.start [1/16] %v898, 128
    %1011 = vxpose.xlu0.b32.cont [2/16] %v930, 128
    %1012 = vxpose.xlu0.b32.cont [3/16] %v962, 128
    %1013 = vxpose.xlu0.b32.cont [4/16] %v994, 128
    %1014 = vxpose.xlu0.b32.cont [5/16] 0.0, 128
    %1015 = vxpose.xlu0.b32.cont [6/16] 0.0, 128
    %1016 = vxpose.xlu0.b32.cont [7/16] 0.0, 128
    %1017 = vxpose.xlu0.b32.cont [8/16] 0.0, 128
    %1018 = vxpose.xlu0.b32.cont [9/16] 0.0, 128
    %1019 = vxpose.xlu0.b32.cont [10/16] 0.0, 128
    %1020 = vxpose.xlu0.b32.cont [11/16] 0.0, 128
    %1021 = vxpose.xlu0.b32.cont [12/16] 0.0, 128
    %1022 = vxpose.xlu0.b32.cont [13/16] 0.0, 128
    %1023 = vxpose.xlu0.b32.cont [14/16] 0.0, 128
    %1024 = vxpose.xlu0.b32.cont [15/16] 0.0, 128
    %1025 = vxpose.xlu0.b32.end [16/16] 0.0, 128
    %v1026 = vpop.trf.xlu0
    %v1027 = vpop.trf.xlu0
    %v1028 = vpop.trf.xlu0
    %v1029 = vpop.trf.xlu0
    %v1030 = vpop.trf.xlu0
    %v1031 = vpop.trf.xlu0
    %v1032 = vpop.trf.xlu0
    %v1033 = vpop.trf.xlu0
    %v1034 = vpop.trf.xlu0
    %v1035 = vpop.trf.xlu0
    %v1036 = vpop.trf.xlu0
    %v1037 = vpop.trf.xlu0
    %v1038 = vpop.trf.xlu0
    %v1039 = vpop.trf.xlu0
    %v1040 = vpop.trf.xlu0
    %v1041 = vpop.trf.xlu0
    %1042 = vxpose.xlu0.b32.start [1/16] %v250, 128
    %1043 = vxpose.xlu0.b32.cont [2/16] 0.0, 128
    %1044 = vxpose.xlu0.b32.cont [3/16] 0.0, 128
    %1045 = vxpose.xlu0.b32.cont [4/16] 0.0, 128
    %1046 = vxpose.xlu0.b32.cont [5/16] 0.0, 128
    %1047 = vxpose.xlu0.b32.cont [6/16] 0.0, 128
    %1048 = vxpose.xlu0.b32.cont [7/16] 0.0, 128
    %1049 = vxpose.xlu0.b32.cont [8/16] 0.0, 128
    %1050 = vxpose.xlu0.b32.cont [9/16] 0.0, 128
    %1051 = vxpose.xlu0.b32.cont [10/16] 0.0, 128
    %1052 = vxpose.xlu0.b32.cont [11/16] 0.0, 128
    %1053 = vxpose.xlu0.b32.cont [12/16] 0.0, 128
    %1054 = vxpose.xlu0.b32.cont [13/16] 0.0, 128
    %1055 = vxpose.xlu0.b32.cont [14/16] 0.0, 128
    %1056 = vxpose.xlu0.b32.cont [15/16] 0.0, 128
    %1057 = vxpose.xlu0.b32.end [16/16] 0.0, 128
    %v1058 = vpop.trf.xlu0
    %v1059 = vpop.trf.xlu0
    %v1060 = vpop.trf.xlu0
    %v1061 = vpop.trf.xlu0
    %v1062 = vpop.trf.xlu0
    %v1063 = vpop.trf.xlu0
    %v1064 = vpop.trf.xlu0
    %v1065 = vpop.trf.xlu0
    %v1066 = vpop.trf.xlu0
    %v1067 = vpop.trf.xlu0
    %v1068 = vpop.trf.xlu0
    %v1069 = vpop.trf.xlu0
    %v1070 = vpop.trf.xlu0
    %v1071 = vpop.trf.xlu0
    %v1072 = vpop.trf.xlu0
    %v1073 = vpop.trf.xlu0
    %1074 = vxpose.xlu0.b32.start [1/16] %v1058, 128
    %1075 = vxpose.xlu0.b32.cont [2/16] 0.0, 128
    %1076 = vxpose.xlu0.b32.cont [3/16] 0.0, 128
    %1077 = vxpose.xlu0.b32.cont [4/16] 0.0, 128
    %1078 = vxpose.xlu0.b32.cont [5/16] 0.0, 128
    %1079 = vxpose.xlu0.b32.cont [6/16] 0.0, 128
    %1080 = vxpose.xlu0.b32.cont [7/16] 0.0, 128
    %1081 = vxpose.xlu0.b32.cont [8/16] 0.0, 128
    %1082 = vxpose.xlu0.b32.cont [9/16] 0.0, 128
    %1083 = vxpose.xlu0.b32.cont [10/16] 0.0, 128
    %1084 = vxpose.xlu0.b32.cont [11/16] 0.0, 128
    %1085 = vxpose.xlu0.b32.cont [12/16] 0.0, 128
    %1086 = vxpose.xlu0.b32.cont [13/16] 0.0, 128
    %1087 = vxpose.xlu0.b32.cont [14/16] 0.0, 128
    %1088 = vxpose.xlu0.b32.cont [15/16] 0.0, 128
    %1089 = vxpose.xlu0.b32.end [16/16] 0.0, 128
    %v1090 = vpop.trf.xlu0
    %v1091 = vpop.trf.xlu0
    %v1092 = vpop.trf.xlu0
    %v1093 = vpop.trf.xlu0
    %v1094 = vpop.trf.xlu0
    %v1095 = vpop.trf.xlu0
    %v1096 = vpop.trf.xlu0
    %v1097 = vpop.trf.xlu0
    %v1098 = vpop.trf.xlu0
    %v1099 = vpop.trf.xlu0
    %v1100 = vpop.trf.xlu0
    %v1101 = vpop.trf.xlu0
    %v1102 = vpop.trf.xlu0
    %v1103 = vpop.trf.xlu0
    %v1104 = vpop.trf.xlu0
    %v1105 = vpop.trf.xlu0
    %1106 = vxpose.xlu0.b32.start [1/16] %v1059, 128
    %1107 = vxpose.xlu0.b32.cont [2/16] 0.0, 128
    %1108 = vxpose.xlu0.b32.cont [3/16] 0.0, 128
    %1109 = vxpose.xlu0.b32.cont [4/16] 0.0, 128
    %1110 = vxpose.xlu0.b32.cont [5/16] 0.0, 128
    %1111 = vxpose.xlu0.b32.cont [6/16] 0.0, 128
    %1112 = vxpose.xlu0.b32.cont [7/16] 0.0, 128
    %1113 = vxpose.xlu0.b32.cont [8/16] 0.0, 128
    %1114 = vxpose.xlu0.b32.cont [9/16] 0.0, 128
    %1115 = vxpose.xlu0.b32.cont [10/16] 0.0, 128
    %1116 = vxpose.xlu0.b32.cont [11/16] 0.0, 128
    %1117 = vxpose.xlu0.b32.cont [12/16] 0.0, 128
    %1118 = vxpose.xlu0.b32.cont [13/16] 0.0, 128
    %1119 = vxpose.xlu0.b32.cont [14/16] 0.0, 128
    %1120 = vxpose.xlu0.b32.cont [15/16] 0.0, 128
    %1121 = vxpose.xlu0.b32.end [16/16] 0.0, 128
    %v1122 = vpop.trf.xlu0
    %v1123 = vpop.trf.xlu0
    %v1124 = vpop.trf.xlu0
    %v1125 = vpop.trf.xlu0
    %v1126 = vpop.trf.xlu0
    %v1127 = vpop.trf.xlu0
    %v1128 = vpop.trf.xlu0
    %v1129 = vpop.trf.xlu0
    %v1130 = vpop.trf.xlu0
    %v1131 = vpop.trf.xlu0
    %v1132 = vpop.trf.xlu0
    %v1133 = vpop.trf.xlu0
    %v1134 = vpop.trf.xlu0
    %v1135 = vpop.trf.xlu0
    %v1136 = vpop.trf.xlu0
    %v1137 = vpop.trf.xlu0
    %1138 = vxpose.xlu0.b32.start [1/16] %v1060, 128
    %1139 = vxpose.xlu0.b32.cont [2/16] 0.0, 128
    %1140 = vxpose.xlu0.b32.cont [3/16] 0.0, 128
    %1141 = vxpose.xlu0.b32.cont [4/16] 0.0, 128
    %1142 = vxpose.xlu0.b32.cont [5/16] 0.0, 128
    %1143 = vxpose.xlu0.b32.cont [6/16] 0.0, 128
    %1144 = vxpose.xlu0.b32.cont [7/16] 0.0, 128
    %1145 = vxpose.xlu0.b32.cont [8/16] 0.0, 128
    %1146 = vxpose.xlu0.b32.cont [9/16] 0.0, 128
    %1147 = vxpose.xlu0.b32.cont [10/16] 0.0, 128
    %1148 = vxpose.xlu0.b32.cont [11/16] 0.0, 128
    %1149 = vxpose.xlu0.b32.cont [12/16] 0.0, 128
    %1150 = vxpose.xlu0.b32.cont [13/16] 0.0, 128
    %1151 = vxpose.xlu0.b32.cont [14/16] 0.0, 128
    %1152 = vxpose.xlu0.b32.cont [15/16] 0.0, 128
    %1153 = vxpose.xlu0.b32.end [16/16] 0.0, 128
    %v1154 = vpop.trf.xlu0
    %v1155 = vpop.trf.xlu0
    %v1156 = vpop.trf.xlu0
    %v1157 = vpop.trf.xlu0
    %v1158 = vpop.trf.xlu0
    %v1159 = vpop.trf.xlu0
    %v1160 = vpop.trf.xlu0
    %v1161 = vpop.trf.xlu0
    %v1162 = vpop.trf.xlu0
    %v1163 = vpop.trf.xlu0
    %v1164 = vpop.trf.xlu0
    %v1165 = vpop.trf.xlu0
    %v1166 = vpop.trf.xlu0
    %v1167 = vpop.trf.xlu0
    %v1168 = vpop.trf.xlu0
    %v1169 = vpop.trf.xlu0
    %1170 = vxpose.xlu0.b32.start [1/16] %v1061, 128
    %1171 = vxpose.xlu0.b32.cont [2/16] 0.0, 128
    %1172 = vxpose.xlu0.b32.cont [3/16] 0.0, 128
    %1173 = vxpose.xlu0.b32.cont [4/16] 0.0, 128
    %1174 = vxpose.xlu0.b32.cont [5/16] 0.0, 128
    %1175 = vxpose.xlu0.b32.cont [6/16] 0.0, 128
    %1176 = vxpose.xlu0.b32.cont [7/16] 0.0, 128
    %1177 = vxpose.xlu0.b32.cont [8/16] 0.0, 128
    %1178 = vxpose.xlu0.b32.cont [9/16] 0.0, 128
    %1179 = vxpose.xlu0.b32.cont [10/16] 0.0, 128
    %1180 = vxpose.xlu0.b32.cont [11/16] 0.0, 128
    %1181 = vxpose.xlu0.b32.cont [12/16] 0.0, 128
    %1182 = vxpose.xlu0.b32.cont [13/16] 0.0, 128
    %1183 = vxpose.xlu0.b32.cont [14/16] 0.0, 128
    %1184 = vxpose.xlu0.b32.cont [15/16] 0.0, 128
    %1185 = vxpose.xlu0.b32.end [16/16] 0.0, 128
    %v1186 = vpop.trf.xlu0
    %v1187 = vpop.trf.xlu0
    %v1188 = vpop.trf.xlu0
    %v1189 = vpop.trf.xlu0
    %v1190 = vpop.trf.xlu0
    %v1191 = vpop.trf.xlu0
    %v1192 = vpop.trf.xlu0
    %v1193 = vpop.trf.xlu0
    %v1194 = vpop.trf.xlu0
    %v1195 = vpop.trf.xlu0
    %v1196 = vpop.trf.xlu0
    %v1197 = vpop.trf.xlu0
    %v1198 = vpop.trf.xlu0
    %v1199 = vpop.trf.xlu0
    %v1200 = vpop.trf.xlu0
    %v1201 = vpop.trf.xlu0
    %v1202 = vpack.c.bf16 %v1090, %v1090
    %v1203 = vpack.c.bf16 %v1122, %v1122
    %v1204 = vpack.c.bf16 %v1154, %v1154
    %v1205 = vpack.c.bf16 %v1186, %v1186
    %1206 = vxpose.xlu0.b32.start [1/16] %v1062, 128
    %1207 = vxpose.xlu0.b32.cont [2/16] 0.0, 128
    %1208 = vxpose.xlu0.b32.cont [3/16] 0.0, 128
    %1209 = vxpose.xlu0.b32.cont [4/16] 0.0, 128
    %1210 = vxpose.xlu0.b32.cont [5/16] 0.0, 128
    %1211 = vxpose.xlu0.b32.cont [6/16] 0.0, 128
    %1212 = vxpose.xlu0.b32.cont [7/16] 0.0, 128
    %1213 = vxpose.xlu0.b32.cont [8/16] 0.0, 128
    %1214 = vxpose.xlu0.b32.cont [9/16] 0.0, 128
    %1215 = vxpose.xlu0.b32.cont [10/16] 0.0, 128
    %1216 = vxpose.xlu0.b32.cont [11/16] 0.0, 128
    %1217 = vxpose.xlu0.b32.cont [12/16] 0.0, 128
    %1218 = vxpose.xlu0.b32.cont [13/16] 0.0, 128
    %1219 = vxpose.xlu0.b32.cont [14/16] 0.0, 128
    %1220 = vxpose.xlu0.b32.cont [15/16] 0.0, 128
    %1221 = vxpose.xlu0.b32.end [16/16] 0.0, 128
    %v1222 = vpop.trf.xlu0
    %v1223 = vpop.trf.xlu0
    %v1224 = vpop.trf.xlu0
    %v1225 = vpop.trf.xlu0
    %v1226 = vpop.trf.xlu0
    %v1227 = vpop.trf.xlu0
    %v1228 = vpop.trf.xlu0
    %v1229 = vpop.trf.xlu0
    %v1230 = vpop.trf.xlu0
    %v1231 = vpop.trf.xlu0
    %v1232 = vpop.trf.xlu0
    %v1233 = vpop.trf.xlu0
    %v1234 = vpop.trf.xlu0
    %v1235 = vpop.trf.xlu0
    %v1236 = vpop.trf.xlu0
    %v1237 = vpop.trf.xlu0
    %1238 = vxpose.xlu0.b32.start [1/16] %v1063, 128
    %1239 = vxpose.xlu0.b32.cont [2/16] 0.0, 128
    %1240 = vxpose.xlu0.b32.cont [3/16] 0.0, 128
    %1241 = vxpose.xlu0.b32.cont [4/16] 0.0, 128
    %1242 = vxpose.xlu0.b32.cont [5/16] 0.0, 128
    %1243 = vxpose.xlu0.b32.cont [6/16] 0.0, 128
    %1244 = vxpose.xlu0.b32.cont [7/16] 0.0, 128
    %1245 = vxpose.xlu0.b32.cont [8/16] 0.0, 128
    %1246 = vxpose.xlu0.b32.cont [9/16] 0.0, 128
    %1247 = vxpose.xlu0.b32.cont [10/16] 0.0, 128
    %1248 = vxpose.xlu0.b32.cont [11/16] 0.0, 128
    %1249 = vxpose.xlu0.b32.cont [12/16] 0.0, 128
    %1250 = vxpose.xlu0.b32.cont [13/16] 0.0, 128
    %1251 = vxpose.xlu0.b32.cont [14/16] 0.0, 128
    %1252 = vxpose.xlu0.b32.cont [15/16] 0.0, 128
    %1253 = vxpose.xlu0.b32.end [16/16] 0.0, 128
    %v1254 = vpop.trf.xlu0
    %v1255 = vpop.trf.xlu0
    %v1256 = vpop.trf.xlu0
    %v1257 = vpop.trf.xlu0
    %v1258 = vpop.trf.xlu0
    %v1259 = vpop.trf.xlu0
    %v1260 = vpop.trf.xlu0
    %v1261 = vpop.trf.xlu0
    %v1262 = vpop.trf.xlu0
    %v1263 = vpop.trf.xlu0
    %v1264 = vpop.trf.xlu0
    %v1265 = vpop.trf.xlu0
    %v1266 = vpop.trf.xlu0
    %v1267 = vpop.trf.xlu0
    %v1268 = vpop.trf.xlu0
    %v1269 = vpop.trf.xlu0
    %1270 = vxpose.xlu0.b32.start [1/16] %v1064, 128
    %1271 = vxpose.xlu0.b32.cont [2/16] 0.0, 128
    %1272 = vxpose.xlu0.b32.cont [3/16] 0.0, 128
    %1273 = vxpose.xlu0.b32.cont [4/16] 0.0, 128
    %1274 = vxpose.xlu0.b32.cont [5/16] 0.0, 128
    %1275 = vxpose.xlu0.b32.cont [6/16] 0.0, 128
    %1276 = vxpose.xlu0.b32.cont [7/16] 0.0, 128
    %1277 = vxpose.xlu0.b32.cont [8/16] 0.0, 128
    %1278 = vxpose.xlu0.b32.cont [9/16] 0.0, 128
    %1279 = vxpose.xlu0.b32.cont [10/16] 0.0, 128
    %1280 = vxpose.xlu0.b32.cont [11/16] 0.0, 128
    %1281 = vxpose.xlu0.b32.cont [12/16] 0.0, 128
    %1282 = vxpose.xlu0.b32.cont [13/16] 0.0, 128
    %1283 = vxpose.xlu0.b32.cont [14/16] 0.0, 128
    %1284 = vxpose.xlu0.b32.cont [15/16] 0.0, 128
    %1285 = vxpose.xlu0.b32.end [16/16] 0.0, 128
    %v1286 = vpop.trf.xlu0
    %v1287 = vpop.trf.xlu0
    %v1288 = vpop.trf.xlu0
    %v1289 = vpop.trf.xlu0
    %v1290 = vpop.trf.xlu0
    %v1291 = vpop.trf.xlu0
    %v1292 = vpop.trf.xlu0
    %v1293 = vpop.trf.xlu0
    %v1294 = vpop.trf.xlu0
    %v1295 = vpop.trf.xlu0
    %v1296 = vpop.trf.xlu0
    %v1297 = vpop.trf.xlu0
    %v1298 = vpop.trf.xlu0
    %v1299 = vpop.trf.xlu0
    %v1300 = vpop.trf.xlu0
    %v1301 = vpop.trf.xlu0
    %1302 = vxpose.xlu0.b32.start [1/16] %v1065, 128
    %1303 = vxpose.xlu0.b32.cont [2/16] 0.0, 128
    %1304 = vxpose.xlu0.b32.cont [3/16] 0.0, 128
    %1305 = vxpose.xlu0.b32.cont [4/16] 0.0, 128
    %1306 = vxpose.xlu0.b32.cont [5/16] 0.0, 128
    %1307 = vxpose.xlu0.b32.cont [6/16] 0.0, 128
    %1308 = vxpose.xlu0.b32.cont [7/16] 0.0, 128
    %1309 = vxpose.xlu0.b32.cont [8/16] 0.0, 128
    %1310 = vxpose.xlu0.b32.cont [9/16] 0.0, 128
    %1311 = vxpose.xlu0.b32.cont [10/16] 0.0, 128
    %1312 = vxpose.xlu0.b32.cont [11/16] 0.0, 128
    %1313 = vxpose.xlu0.b32.cont [12/16] 0.0, 128
    %1314 = vxpose.xlu0.b32.cont [13/16] 0.0, 128
    %1315 = vxpose.xlu0.b32.cont [14/16] 0.0, 128
    %1316 = vxpose.xlu0.b32.cont [15/16] 0.0, 128
    %1317 = vxpose.xlu0.b32.end [16/16] 0.0, 128
    %v1318 = vpop.trf.xlu0
    %v1319 = vpop.trf.xlu0
    %v1320 = vpop.trf.xlu0
    %v1321 = vpop.trf.xlu0
    %v1322 = vpop.trf.xlu0
    %v1323 = vpop.trf.xlu0
    %v1324 = vpop.trf.xlu0
    %v1325 = vpop.trf.xlu0
    %v1326 = vpop.trf.xlu0
    %v1327 = vpop.trf.xlu0
    %v1328 = vpop.trf.xlu0
    %v1329 = vpop.trf.xlu0
    %v1330 = vpop.trf.xlu0
    %v1331 = vpop.trf.xlu0
    %v1332 = vpop.trf.xlu0
    %v1333 = vpop.trf.xlu0
    %v1334 = vpack.c.bf16 %v1222, %v1222
    %v1335 = vpack.c.bf16 %v1254, %v1254
    %v1336 = vpack.c.bf16 %v1286, %v1286
    %v1337 = vpack.c.bf16 %v1318, %v1318
    %1338 = vxpose.xlu0.b32.start [1/16] %v1066, 128
    %1339 = vxpose.xlu0.b32.cont [2/16] 0.0, 128
    %1340 = vxpose.xlu0.b32.cont [3/16] 0.0, 128
    %1341 = vxpose.xlu0.b32.cont [4/16] 0.0, 128
    %1342 = vxpose.xlu0.b32.cont [5/16] 0.0, 128
    %1343 = vxpose.xlu0.b32.cont [6/16] 0.0, 128
    %1344 = vxpose.xlu0.b32.cont [7/16] 0.0, 128
    %1345 = vxpose.xlu0.b32.cont [8/16] 0.0, 128
    %1346 = vxpose.xlu0.b32.cont [9/16] 0.0, 128
    %1347 = vxpose.xlu0.b32.cont [10/16] 0.0, 128
    %1348 = vxpose.xlu0.b32.cont [11/16] 0.0, 128
    %1349 = vxpose.xlu0.b32.cont [12/16] 0.0, 128
    %1350 = vxpose.xlu0.b32.cont [13/16] 0.0, 128
    %1351 = vxpose.xlu0.b32.cont [14/16] 0.0, 128
    %1352 = vxpose.xlu0.b32.cont [15/16] 0.0, 128
    %1353 = vxpose.xlu0.b32.end [16/16] 0.0, 128
    %v1354 = vpop.trf.xlu0
    %v1355 = vpop.trf.xlu0
    %v1356 = vpop.trf.xlu0
    %v1357 = vpop.trf.xlu0
    %v1358 = vpop.trf.xlu0
    %v1359 = vpop.trf.xlu0
    %v1360 = vpop.trf.xlu0
    %v1361 = vpop.trf.xlu0
    %v1362 = vpop.trf.xlu0
    %v1363 = vpop.trf.xlu0
    %v1364 = vpop.trf.xlu0
    %v1365 = vpop.trf.xlu0
    %v1366 = vpop.trf.xlu0
    %v1367 = vpop.trf.xlu0
    %v1368 = vpop.trf.xlu0
    %v1369 = vpop.trf.xlu0
    %1370 = vxpose.xlu0.b32.start [1/16] %v1067, 128
    %1371 = vxpose.xlu0.b32.cont [2/16] 0.0, 128
    %1372 = vxpose.xlu0.b32.cont [3/16] 0.0, 128
    %1373 = vxpose.xlu0.b32.cont [4/16] 0.0, 128
    %1374 = vxpose.xlu0.b32.cont [5/16] 0.0, 128
    %1375 = vxpose.xlu0.b32.cont [6/16] 0.0, 128
    %1376 = vxpose.xlu0.b32.cont [7/16] 0.0, 128
    %1377 = vxpose.xlu0.b32.cont [8/16] 0.0, 128
    %1378 = vxpose.xlu0.b32.cont [9/16] 0.0, 128
    %1379 = vxpose.xlu0.b32.cont [10/16] 0.0, 128
    %1380 = vxpose.xlu0.b32.cont [11/16] 0.0, 128
    %1381 = vxpose.xlu0.b32.cont [12/16] 0.0, 128
    %1382 = vxpose.xlu0.b32.cont [13/16] 0.0, 128
    %1383 = vxpose.xlu0.b32.cont [14/16] 0.0, 128
    %1384 = vxpose.xlu0.b32.cont [15/16] 0.0, 128
    %1385 = vxpose.xlu0.b32.end [16/16] 0.0, 128
    %v1386 = vpop.trf.xlu0
    %v1387 = vpop.trf.xlu0
    %v1388 = vpop.trf.xlu0
    %v1389 = vpop.trf.xlu0
    %v1390 = vpop.trf.xlu0
    %v1391 = vpop.trf.xlu0
    %v1392 = vpop.trf.xlu0
    %v1393 = vpop.trf.xlu0
    %v1394 = vpop.trf.xlu0
    %v1395 = vpop.trf.xlu0
    %v1396 = vpop.trf.xlu0
    %v1397 = vpop.trf.xlu0
    %v1398 = vpop.trf.xlu0
    %v1399 = vpop.trf.xlu0
    %v1400 = vpop.trf.xlu0
    %v1401 = vpop.trf.xlu0
    %1402 = vxpose.xlu0.b32.start [1/16] %v1068, 128
    %1403 = vxpose.xlu0.b32.cont [2/16] 0.0, 128
    %1404 = vxpose.xlu0.b32.cont [3/16] 0.0, 128
    %1405 = vxpose.xlu0.b32.cont [4/16] 0.0, 128
    %1406 = vxpose.xlu0.b32.cont [5/16] 0.0, 128
    %1407 = vxpose.xlu0.b32.cont [6/16] 0.0, 128
    %1408 = vxpose.xlu0.b32.cont [7/16] 0.0, 128
    %1409 = vxpose.xlu0.b32.cont [8/16] 0.0, 128
    %1410 = vxpose.xlu0.b32.cont [9/16] 0.0, 128
    %1411 = vxpose.xlu0.b32.cont [10/16] 0.0, 128
    %1412 = vxpose.xlu0.b32.cont [11/16] 0.0, 128
    %1413 = vxpose.xlu0.b32.cont [12/16] 0.0, 128
    %1414 = vxpose.xlu0.b32.cont [13/16] 0.0, 128
    %1415 = vxpose.xlu0.b32.cont [14/16] 0.0, 128
    %1416 = vxpose.xlu0.b32.cont [15/16] 0.0, 128
    %1417 = vxpose.xlu0.b32.end [16/16] 0.0, 128
    %v1418 = vpop.trf.xlu0
    %v1419 = vpop.trf.xlu0
    %v1420 = vpop.trf.xlu0
    %v1421 = vpop.trf.xlu0
    %v1422 = vpop.trf.xlu0
    %v1423 = vpop.trf.xlu0
    %v1424 = vpop.trf.xlu0
    %v1425 = vpop.trf.xlu0
    %v1426 = vpop.trf.xlu0
    %v1427 = vpop.trf.xlu0
    %v1428 = vpop.trf.xlu0
    %v1429 = vpop.trf.xlu0
    %v1430 = vpop.trf.xlu0
    %v1431 = vpop.trf.xlu0
    %v1432 = vpop.trf.xlu0
    %v1433 = vpop.trf.xlu0
    %1434 = vxpose.xlu0.b32.start [1/16] %v1069, 128
    %1435 = vxpose.xlu0.b32.cont [2/16] 0.0, 128
    %1436 = vxpose.xlu0.b32.cont [3/16] 0.0, 128
    %1437 = vxpose.xlu0.b32.cont [4/16] 0.0, 128
    %1438 = vxpose.xlu0.b32.cont [5/16] 0.0, 128
    %1439 = vxpose.xlu0.b32.cont [6/16] 0.0, 128
    %1440 = vxpose.xlu0.b32.cont [7/16] 0.0, 128
    %1441 = vxpose.xlu0.b32.cont [8/16] 0.0, 128
    %1442 = vxpose.xlu0.b32.cont [9/16] 0.0, 128
    %1443 = vxpose.xlu0.b32.cont [10/16] 0.0, 128
    %1444 = vxpose.xlu0.b32.cont [11/16] 0.0, 128
    %1445 = vxpose.xlu0.b32.cont [12/16] 0.0, 128
    %1446 = vxpose.xlu0.b32.cont [13/16] 0.0, 128
    %1447 = vxpose.xlu0.b32.cont [14/16] 0.0, 128
    %1448 = vxpose.xlu0.b32.cont [15/16] 0.0, 128
    %1449 = vxpose.xlu0.b32.end [16/16] 0.0, 128
    %v1450 = vpop.trf.xlu0
    %v1451 = vpop.trf.xlu0
    %v1452 = vpop.trf.xlu0
    %v1453 = vpop.trf.xlu0
    %v1454 = vpop.trf.xlu0
    %v1455 = vpop.trf.xlu0
    %v1456 = vpop.trf.xlu0
    %v1457 = vpop.trf.xlu0
    %v1458 = vpop.trf.xlu0
    %v1459 = vpop.trf.xlu0
    %v1460 = vpop.trf.xlu0
    %v1461 = vpop.trf.xlu0
    %v1462 = vpop.trf.xlu0
    %v1463 = vpop.trf.xlu0
    %v1464 = vpop.trf.xlu0
    %v1465 = vpop.trf.xlu0
    %v1466 = vpack.c.bf16 %v1354, %v1354
    %v1467 = vpack.c.bf16 %v1386, %v1386
    %v1468 = vpack.c.bf16 %v1418, %v1418
    %v1469 = vpack.c.bf16 %v1450, %v1450
    %v1471 = vsel %vm680, %v1202, 0
    %v1474 = vsel %vm680, %v1334, 0
    %1476 = vmatpush.bf16.xpose.msra.mxu0 0
    %1477 = vmatpush.bf16.xpose.msra.mxu0 0
    %1478 = vmatpush.bf16.xpose.msra.mxu0 0
    %1479 = vmatpush.bf16.xpose.msra.mxu0 0
    %1480 = vmatpush.bf16.xpose.msra.mxu0 0
    %1481 = vmatpush.bf16.xpose.msra.mxu0 0
    %1482 = vmatpush.bf16.xpose.msra.mxu0 0
    %1483 = vmatpush.bf16.xpose.msra.mxu0 %v1474
    %1484 = vmatmul.bf16.gmra.mxu0 %v1471
    %v1485 = vpop.f32.mrf.mxu0
    %v1486 = vadd.f32 0.0, %v1485
    %v1487 = vpop.f32.mrf.mxu0
    %1488 = vdwg.mxu0
    %v1490 = vsel %vm680, %v1203, 0
    %v1493 = vsel %vm680, %v1335, 0
    %1495 = vmatpush.bf16.xpose.msra.mxu0 0
    %1496 = vmatpush.bf16.xpose.msra.mxu0 0
    %1497 = vmatpush.bf16.xpose.msra.mxu0 0
    %1498 = vmatpush.bf16.xpose.msra.mxu0 0
    %1499 = vmatpush.bf16.xpose.msra.mxu0 0
    %1500 = vmatpush.bf16.xpose.msra.mxu0 0
    %1501 = vmatpush.bf16.xpose.msra.mxu0 0
    %1502 = vmatpush.bf16.xpose.msra.mxu0 %v1493
    %1503 = vmatmul.bf16.gmra.mxu0 %v1490
    %v1504 = vpop.f32.mrf.mxu0
    %v1505 = vadd.f32 0.0, %v1504
    %v1506 = vpop.f32.mrf.mxu0
    %1507 = vdwg.mxu0
    %v1509 = vsel %vm680, %v1204, 0
    %v1512 = vsel %vm680, %v1336, 0
    %1514 = vmatpush.bf16.xpose.msra.mxu0 0
    %1515 = vmatpush.bf16.xpose.msra.mxu0 0
    %1516 = vmatpush.bf16.xpose.msra.mxu0 0
    %1517 = vmatpush.bf16.xpose.msra.mxu0 0
    %1518 = vmatpush.bf16.xpose.msra.mxu0 0
    %1519 = vmatpush.bf16.xpose.msra.mxu0 0
    %1520 = vmatpush.bf16.xpose.msra.mxu0 0
    %1521 = vmatpush.bf16.xpose.msra.mxu0 %v1512
    %1522 = vmatmul.bf16.gmra.mxu0 %v1509
    %v1523 = vpop.f32.mrf.mxu0
    %v1524 = vadd.f32 0.0, %v1523
    %v1525 = vpop.f32.mrf.mxu0
    %1526 = vdwg.mxu0
    %v1528 = vsel %vm680, %v1205, 0
    %v1531 = vsel %vm680, %v1337, 0
    %1533 = vmatpush.bf16.xpose.msra.mxu0 0
    %1534 = vmatpush.bf16.xpose.msra.mxu0 0
    %1535 = vmatpush.bf16.xpose.msra.mxu0 0
    %1536 = vmatpush.bf16.xpose.msra.mxu0 0
    %1537 = vmatpush.bf16.xpose.msra.mxu0 0
    %1538 = vmatpush.bf16.xpose.msra.mxu0 0
    %1539 = vmatpush.bf16.xpose.msra.mxu0 0
    %1540 = vmatpush.bf16.xpose.msra.mxu0 %v1531
    %1541 = vmatmul.bf16.gmra.mxu0 %v1528
    %v1542 = vpop.f32.mrf.mxu0
    %v1543 = vadd.f32 0.0, %v1542
    %v1544 = vpop.f32.mrf.mxu0
    %1545 = vdwg.mxu0
    %v1546 = vsel %vm680, %v1486, -inf
    %1547 = vmax.xlane.f32.xlu0 %v1546
    %v1548 = vpop.xlane.xlu0 %1547
    %v1549 = vsel %vm680, %v1505, -inf
    %1550 = vmax.xlane.f32.xlu0 %v1549
    %v1551 = vpop.xlane.xlu0 %1550
    %v1552 = vsel %vm680, %v1524, -inf
    %1553 = vmax.xlane.f32.xlu0 %v1552
    %v1554 = vpop.xlane.xlu0 %1553
    %v1555 = vsel %vm680, %v1543, -inf
    %1556 = vmax.xlane.f32.xlu0 %v1555
    %v1557 = vpop.xlane.xlu0 %1556
    %v1558 = vsub.f32 %v1486, %v1548
    %v1559 = vsub.f32 %v1505, %v1551
    %v1560 = vsub.f32 %v1524, %v1554
    %v1561 = vsub.f32 %v1543, %v1557
    %v1562 = vmul.f32 %v1558, 1.442695
    %v1563 = vpow.pop %v1562
    %v1564 = vmul.f32 %v1559, 1.442695
    %v1565 = vpow.pop %v1564
    %v1566 = vmul.f32 %v1560, 1.442695
    %v1567 = vpow.pop %v1566
    %v1568 = vmul.f32 %v1561, 1.442695
    %v1569 = vpow.pop %v1568
    %v1570 = vsel %vm680, %v1563, 0.0
    %1571 = vadd.xlane.f32.xlu0 %v1570
    %v1572 = vpop.xlane.xlu0 %1571
    %v1573 = vsel %vm680, %v1565, 0.0
    %1574 = vadd.xlane.f32.xlu0 %v1573
    %v1575 = vpop.xlane.xlu0 %1574
    %v1576 = vsel %vm680, %v1567, 0.0
    %1577 = vadd.xlane.f32.xlu0 %v1576
    %v1578 = vpop.xlane.xlu0 %1577
    %v1579 = vsel %vm680, %v1569, 0.0
    %1580 = vadd.xlane.f32.xlu0 %v1579
    %v1581 = vpop.xlane.xlu0 %1580
    %v1582 = vrcp.pop %v1572
    %v1583 = vrcp.pop %v1575
    %v1584 = vrcp.pop %v1578
    %v1585 = vrcp.pop %v1581
    %v1586 = vmul.f32 %v1563, %v1582
    %v1587 = vmul.f32 %v1565, %v1583
    %v1588 = vmul.f32 %v1567, %v1584
    %v1589 = vmul.f32 %v1569, %v1585
    %v1590 = vpack.c.bf16 %v1586, %v1586
    %v1591 = vpack.c.bf16 %v1587, %v1587
    %v1592 = vpack.c.bf16 %v1588, %v1588
    %v1593 = vpack.c.bf16 %v1589, %v1589
    %v1595 = vsel %vm680, %v1590, 0
    %v1598 = vsel %vm808, %v1466, 0
    %1600 = vmatpush.bf16.msra.mxu0 0
    %1601 = vmatpush.bf16.msra.mxu0 0
    %1602 = vmatpush.bf16.msra.mxu0 0
    %1603 = vmatpush.bf16.msra.mxu0 0
    %1604 = vmatpush.bf16.msra.mxu0 0
    %1605 = vmatpush.bf16.msra.mxu0 0
    %1606 = vmatpush.bf16.msra.mxu0 0
    %1607 = vmatpush.bf16.msra.mxu0 %v1598
    %1608 = vmatmul.bf16.gmra.mxu0 %v1595
    %v1609 = vpop.f32.mrf.mxu0
    %v1610 = vadd.f32 0.0, %v1609
    %v1611 = vpop.f32.mrf.mxu0
    %1612 = vdwg.mxu0
    %v1614 = vsel %vm680, %v1591, 0
    %v1617 = vsel %vm808, %v1467, 0
    %1619 = vmatpush.bf16.msra.mxu0 0
    %1620 = vmatpush.bf16.msra.mxu0 0
    %1621 = vmatpush.bf16.msra.mxu0 0
    %1622 = vmatpush.bf16.msra.mxu0 0
    %1623 = vmatpush.bf16.msra.mxu0 0
    %1624 = vmatpush.bf16.msra.mxu0 0
    %1625 = vmatpush.bf16.msra.mxu0 0
    %1626 = vmatpush.bf16.msra.mxu0 %v1617
    %1627 = vmatmul.bf16.gmra.mxu0 %v1614
    %v1628 = vpop.f32.mrf.mxu0
    %v1629 = vadd.f32 0.0, %v1628
    %v1630 = vpop.f32.mrf.mxu0
    %1631 = vdwg.mxu0
    %v1633 = vsel %vm680, %v1592, 0
    %v1636 = vsel %vm808, %v1468, 0
    %1638 = vmatpush.bf16.msra.mxu0 0
    %1639 = vmatpush.bf16.msra.mxu0 0
    %1640 = vmatpush.bf16.msra.mxu0 0
    %1641 = vmatpush.bf16.msra.mxu0 0
    %1642 = vmatpush.bf16.msra.mxu0 0
    %1643 = vmatpush.bf16.msra.mxu0 0
    %1644 = vmatpush.bf16.msra.mxu0 0
    %1645 = vmatpush.bf16.msra.mxu0 %v1636
    %1646 = vmatmul.bf16.gmra.mxu0 %v1633
    %v1647 = vpop.f32.mrf.mxu0
    %v1648 = vadd.f32 0.0, %v1647
    %v1649 = vpop.f32.mrf.mxu0
    %1650 = vdwg.mxu0
    %v1652 = vsel %vm680, %v1593, 0
    %v1655 = vsel %vm808, %v1469, 0
    %1657 = vmatpush.bf16.msra.mxu0 0
    %1658 = vmatpush.bf16.msra.mxu0 0
    %1659 = vmatpush.bf16.msra.mxu0 0
    %1660 = vmatpush.bf16.msra.mxu0 0
    %1661 = vmatpush.bf16.msra.mxu0 0
    %1662 = vmatpush.bf16.msra.mxu0 0
    %1663 = vmatpush.bf16.msra.mxu0 0
    %1664 = vmatpush.bf16.msra.mxu0 %v1655
    %1665 = vmatmul.bf16.gmra.mxu0 %v1652
    %v1666 = vpop.f32.mrf.mxu0
    %v1667 = vadd.f32 0.0, %v1666
    %v1668 = vpop.f32.mrf.mxu0
    %1669 = vdwg.mxu0
    %1670 = vxpose.xlu0.b32.start [1/16] %v1610, 128
    %1671 = vxpose.xlu0.b32.cont [2/16] 0.0, 128
    %1672 = vxpose.xlu0.b32.cont [3/16] 0.0, 128
    %1673 = vxpose.xlu0.b32.cont [4/16] 0.0, 128
    %1674 = vxpose.xlu0.b32.cont [5/16] 0.0, 128
    %1675 = vxpose.xlu0.b32.cont [6/16] 0.0, 128
    %1676 = vxpose.xlu0.b32.cont [7/16] 0.0, 128
    %1677 = vxpose.xlu0.b32.cont [8/16] 0.0, 128
    %1678 = vxpose.xlu0.b32.cont [9/16] 0.0, 128
    %1679 = vxpose.xlu0.b32.cont [10/16] 0.0, 128
    %1680 = vxpose.xlu0.b32.cont [11/16] 0.0, 128
    %1681 = vxpose.xlu0.b32.cont [12/16] 0.0, 128
    %1682 = vxpose.xlu0.b32.cont [13/16] 0.0, 128
    %1683 = vxpose.xlu0.b32.cont [14/16] 0.0, 128
    %1684 = vxpose.xlu0.b32.cont [15/16] 0.0, 128
    %1685 = vxpose.xlu0.b32.end [16/16] 0.0, 128
    %v1686 = vpop.trf.xlu0
    %v1687 = vpop.trf.xlu0
    %v1688 = vpop.trf.xlu0
    %v1689 = vpop.trf.xlu0
    %v1690 = vpop.trf.xlu0
    %v1691 = vpop.trf.xlu0
    %v1692 = vpop.trf.xlu0
    %v1693 = vpop.trf.xlu0
    %v1694 = vpop.trf.xlu0
    %v1695 = vpop.trf.xlu0
    %v1696 = vpop.trf.xlu0
    %v1697 = vpop.trf.xlu0
    %v1698 = vpop.trf.xlu0
    %v1699 = vpop.trf.xlu0
    %v1700 = vpop.trf.xlu0
    %v1701 = vpop.trf.xlu0
    %1702 = vxpose.xlu0.b32.start [1/16] %v1629, 128
    %1703 = vxpose.xlu0.b32.cont [2/16] 0.0, 128
    %1704 = vxpose.xlu0.b32.cont [3/16] 0.0, 128
    %1705 = vxpose.xlu0.b32.cont [4/16] 0.0, 128
    %1706 = vxpose.xlu0.b32.cont [5/16] 0.0, 128
    %1707 = vxpose.xlu0.b32.cont [6/16] 0.0, 128
    %1708 = vxpose.xlu0.b32.cont [7/16] 0.0, 128
    %1709 = vxpose.xlu0.b32.cont [8/16] 0.0, 128
    %1710 = vxpose.xlu0.b32.cont [9/16] 0.0, 128
    %1711 = vxpose.xlu0.b32.cont [10/16] 0.0, 128
    %1712 = vxpose.xlu0.b32.cont [11/16] 0.0, 128
    %1713 = vxpose.xlu0.b32.cont [12/16] 0.0, 128
    %1714 = vxpose.xlu0.b32.cont [13/16] 0.0, 128
    %1715 = vxpose.xlu0.b32.cont [14/16] 0.0, 128
    %1716 = vxpose.xlu0.b32.cont [15/16] 0.0, 128
    %1717 = vxpose.xlu0.b32.end [16/16] 0.0, 128
    %v1718 = vpop.trf.xlu0
    %v1719 = vpop.trf.xlu0
    %v1720 = vpop.trf.xlu0
    %v1721 = vpop.trf.xlu0
    %v1722 = vpop.trf.xlu0
    %v1723 = vpop.trf.xlu0
    %v1724 = vpop.trf.xlu0
    %v1725 = vpop.trf.xlu0
    %v1726 = vpop.trf.xlu0
    %v1727 = vpop.trf.xlu0
    %v1728 = vpop.trf.xlu0
    %v1729 = vpop.trf.xlu0
    %v1730 = vpop.trf.xlu0
    %v1731 = vpop.trf.xlu0
    %v1732 = vpop.trf.xlu0
    %v1733 = vpop.trf.xlu0
    %1734 = vxpose.xlu0.b32.start [1/16] %v1648, 128
    %1735 = vxpose.xlu0.b32.cont [2/16] 0.0, 128
    %1736 = vxpose.xlu0.b32.cont [3/16] 0.0, 128
    %1737 = vxpose.xlu0.b32.cont [4/16] 0.0, 128
    %1738 = vxpose.xlu0.b32.cont [5/16] 0.0, 128
    %1739 = vxpose.xlu0.b32.cont [6/16] 0.0, 128
    %1740 = vxpose.xlu0.b32.cont [7/16] 0.0, 128
    %1741 = vxpose.xlu0.b32.cont [8/16] 0.0, 128
    %1742 = vxpose.xlu0.b32.cont [9/16] 0.0, 128
    %1743 = vxpose.xlu0.b32.cont [10/16] 0.0, 128
    %1744 = vxpose.xlu0.b32.cont [11/16] 0.0, 128
    %1745 = vxpose.xlu0.b32.cont [12/16] 0.0, 128
    %1746 = vxpose.xlu0.b32.cont [13/16] 0.0, 128
    %1747 = vxpose.xlu0.b32.cont [14/16] 0.0, 128
    %1748 = vxpose.xlu0.b32.cont [15/16] 0.0, 128
    %1749 = vxpose.xlu0.b32.end [16/16] 0.0, 128
    %v1750 = vpop.trf.xlu0
    %v1751 = vpop.trf.xlu0
    %v1752 = vpop.trf.xlu0
    %v1753 = vpop.trf.xlu0
    %v1754 = vpop.trf.xlu0
    %v1755 = vpop.trf.xlu0
    %v1756 = vpop.trf.xlu0
    %v1757 = vpop.trf.xlu0
    %v1758 = vpop.trf.xlu0
    %v1759 = vpop.trf.xlu0
    %v1760 = vpop.trf.xlu0
    %v1761 = vpop.trf.xlu0
    %v1762 = vpop.trf.xlu0
    %v1763 = vpop.trf.xlu0
    %v1764 = vpop.trf.xlu0
    %v1765 = vpop.trf.xlu0
    %1766 = vxpose.xlu0.b32.start [1/16] %v1667, 128
    %1767 = vxpose.xlu0.b32.cont [2/16] 0.0, 128
    %1768 = vxpose.xlu0.b32.cont [3/16] 0.0, 128
    %1769 = vxpose.xlu0.b32.cont [4/16] 0.0, 128
    %1770 = vxpose.xlu0.b32.cont [5/16] 0.0, 128
    %1771 = vxpose.xlu0.b32.cont [6/16] 0.0, 128
    %1772 = vxpose.xlu0.b32.cont [7/16] 0.0, 128
    %1773 = vxpose.xlu0.b32.cont [8/16] 0.0, 128
    %1774 = vxpose.xlu0.b32.cont [9/16] 0.0, 128
    %1775 = vxpose.xlu0.b32.cont [10/16] 0.0, 128
    %1776 = vxpose.xlu0.b32.cont [11/16] 0.0, 128
    %1777 = vxpose.xlu0.b32.cont [12/16] 0.0, 128
    %1778 = vxpose.xlu0.b32.cont [13/16] 0.0, 128
    %1779 = vxpose.xlu0.b32.cont [14/16] 0.0, 128
    %1780 = vxpose.xlu0.b32.cont [15/16] 0.0, 128
    %1781 = vxpose.xlu0.b32.end [16/16] 0.0, 128
    %v1782 = vpop.trf.xlu0
    %v1783 = vpop.trf.xlu0
    %v1784 = vpop.trf.xlu0
    %v1785 = vpop.trf.xlu0
    %v1786 = vpop.trf.xlu0
    %v1787 = vpop.trf.xlu0
    %v1788 = vpop.trf.xlu0
    %v1789 = vpop.trf.xlu0
    %v1790 = vpop.trf.xlu0
    %v1791 = vpop.trf.xlu0
    %v1792 = vpop.trf.xlu0
    %v1793 = vpop.trf.xlu0
    %v1794 = vpop.trf.xlu0
    %v1795 = vpop.trf.xlu0
    %v1796 = vpop.trf.xlu0
    %v1797 = vpop.trf.xlu0
    %1798 = vxpose.xlu0.b32.start [1/16] %v1686, 128
    %1799 = vxpose.xlu0.b32.cont [2/16] %v1718, 128
    %1800 = vxpose.xlu0.b32.cont [3/16] %v1750, 128
    %1801 = vxpose.xlu0.b32.cont [4/16] %v1782, 128
    %1802 = vxpose.xlu0.b32.cont [5/16] 0.0, 128
    %1803 = vxpose.xlu0.b32.cont [6/16] 0.0, 128
    %1804 = vxpose.xlu0.b32.cont [7/16] 0.0, 128
    %1805 = vxpose.xlu0.b32.cont [8/16] 0.0, 128
    %1806 = vxpose.xlu0.b32.cont [9/16] 0.0, 128
    %1807 = vxpose.xlu0.b32.cont [10/16] 0.0, 128
    %1808 = vxpose.xlu0.b32.cont [11/16] 0.0, 128
    %1809 = vxpose.xlu0.b32.cont [12/16] 0.0, 128
    %1810 = vxpose.xlu0.b32.cont [13/16] 0.0, 128
    %1811 = vxpose.xlu0.b32.cont [14/16] 0.0, 128
    %1812 = vxpose.xlu0.b32.cont [15/16] 0.0, 128
    %1813 = vxpose.xlu0.b32.end [16/16] 0.0, 128
    %v1814 = vpop.trf.xlu0
    %v1815 = vpop.trf.xlu0
    %v1816 = vpop.trf.xlu0
    %v1817 = vpop.trf.xlu0
    %v1818 = vpop.trf.xlu0
    %v1819 = vpop.trf.xlu0
    %v1820 = vpop.trf.xlu0
    %v1821 = vpop.trf.xlu0
    %v1822 = vpop.trf.xlu0
    %v1823 = vpop.trf.xlu0
    %v1824 = vpop.trf.xlu0
    %v1825 = vpop.trf.xlu0
    %v1826 = vpop.trf.xlu0
    %v1827 = vpop.trf.xlu0
    %v1828 = vpop.trf.xlu0
    %v1829 = vpop.trf.xlu0
    %v1830 = vpack.c.bf16 %v1814, %v1026
    %v1831 = vld [vmem:[%s7] sm:$0xf]
    %v1832 = vld [vmem:[%s7 + $0x4] sm:$0xf]
    %v1833 = vld [vmem:[%s7 + $0x8] sm:$0xf]
    %v1834 = vld [vmem:[%s7 + $0xc] sm:$0xf]
    %v1835 = vld [vmem:[%s8] sm:$0x1]
    %v1837 = vperm.slane %v1835, 0
    %v1843 = vunpack.c.l.b16 %v1831
    %v1844 = vunpack.c.l.b16 %v1832
    %v1845 = vunpack.c.l.b16 %v1833
    %v1846 = vunpack.c.l.b16 %v1834
    %v1847 = vpack.c.b16 %v1844, %v1843
    %v1848 = vpack.c.b16 %v1846, %v1845
    %v1852 = vsel %vm152, %v1830, 0
    %1854 = vmatpush.bf16.msra.mxu0 0
    %1855 = vmatpush.bf16.msra.mxu0 0
    %1856 = vmatpush.bf16.msra.mxu0 0
    %1857 = vmatpush.bf16.msra.mxu0 0
    %1858 = vmatpush.bf16.msra.mxu0 0
    %1859 = vmatpush.bf16.msra.mxu0 0
    %1860 = vmatpush.bf16.msra.mxu0 %v1848
    %1861 = vmatpush.bf16.msra.mxu0 %v1847
    %1862 = vmatmul.bf16.gmra.mxu0 %v1852
    %v1863 = vpop.f32.mrf.mxu0
    %v1864 = vadd.f32 %v1837, %v1863
    %v1865 = vpop.f32.mrf.mxu0
    %v1866 = vadd.f32 %v1837, %v1865
    %1867 = vdwg.mxu0
    %v1868 = vadd.f32 %v1864, %v212
    %v1869 = vadd.f32 %v1866, %v213
    %v1870 = vld [vmem:[%s9] sm:$0x1]
    %v1871 = vld [vmem:[%s10] sm:$0x1]
    %v1872 = vsel %vm152, %v1868, 0.0
    %1873 = vadd.xlane.f32.xlu0 %v1872
    %v1874 = vpop.xlane.xlu0 %1873
    %v1875 = vsel %vm152, %v1869, 0.0
    %1876 = vadd.xlane.f32.xlu0 %v1875
    %v1877 = vpop.xlane.xlu0 %1876
    %v1878 = vmul.f32 %v1874, %v165
    %v1879 = vmul.f32 %v1877, %v165
    %v1880 = vsub.f32 %v1868, %v1878
    %v1881 = vsub.f32 %v1869, %v1879
    %v1882 = vmul.f32 %v1880, %v1880
    %v1883 = vmul.f32 %v1881, %v1881
    %v1884 = vsel %vm152, %v1882, 0.0
    %1885 = vadd.xlane.f32.xlu0 %v1884
    %v1886 = vpop.xlane.xlu0 %1885
    %v1887 = vsel %vm152, %v1883, 0.0
    %1888 = vadd.xlane.f32.xlu0 %v1887
    %v1889 = vpop.xlane.xlu0 %1888
    %v1890 = vmul.f32 %v1886, %v165
    %v1891 = vmul.f32 %v1889, %v165
    %v1892 = vadd.f32 %v1890, 1e-12
    %v1893 = vadd.f32 %v1891, 1e-12
    %v1894 = vrsqrt.pop %v1892
    %v1895 = vmul.f32 %v1894, %v1892
    %v1896 = vmul.f32 %v1895, %v1894
    %v1897 = vmul.f32 0.5, %v1896
    %v1898 = vsub.f32 1.5, %v1897
    %v1899 = vmul.f32 %v1894, %v1898
    %vm1900 = vweird.f32 %v1892
    %vm1901 = vweird.f32 %v1894
    %vm1902 = vmor %vm1900, %vm1901
    %v1903 = vsel %vm1902, %v1894, %v1899
    %v1904 = vrsqrt.pop %v1893
    %v1905 = vmul.f32 %v1904, %v1893
    %v1906 = vmul.f32 %v1905, %v1904
    %v1907 = vmul.f32 0.5, %v1906
    %v1908 = vsub.f32 1.5, %v1907
    %v1909 = vmul.f32 %v1904, %v1908
    %vm1910 = vweird.f32 %v1893
    %vm1911 = vweird.f32 %v1904
    %vm1912 = vmor %vm1910, %vm1911
    %v1913 = vsel %vm1912, %v1904, %v1909
    %v1914 = vmul.f32 %v1880, %v1903
    %v1915 = vmul.f32 %v1881, %v1913
    %v1917 = vperm.slane %v1870, 0
    %v1919 = vmul.f32 %v1914, %v1917
    %v1920 = vmul.f32 %v1915, %v1917
    %v1922 = vperm.slane %v1871, 0
    %v1924 = vadd.f32 %v1919, %v1922
    %v1925 = vadd.f32 %v1920, %v1922
    %v1926 = vpack.c.bf16 %v1925, %v1924
    %v1927 = vld [vmem:[%s11] sm:$0xf]
    %v1928 = vld [vmem:[%s11 + $0x4] sm:$0xf]
    %v1929 = vld [vmem:[%s11 + $0x8] sm:$0xf]
    %v1930 = vld [vmem:[%s11 + $0xc] sm:$0xf]
    %v1931 = vld [vmem:[%s12] sm:$0x1]
    %v1933 = vperm.slane %v1931, 0
    %v1939 = vunpack.c.l.b16 %v1927
    %v1940 = vunpack.c.l.b16 %v1928
    %v1941 = vunpack.c.l.b16 %v1929
    %v1942 = vunpack.c.l.b16 %v1930
    %v1943 = vpack.c.b16 %v1940, %v1939
    %v1944 = vpack.c.b16 %v1942, %v1941
    %v1948 = vsel %vm152, %v1926, 0
    %1950 = vmatpush.bf16.msra.mxu0 0
    %1951 = vmatpush.bf16.msra.mxu0 0
    %1952 = vmatpush.bf16.msra.mxu0 0
    %1953 = vmatpush.bf16.msra.mxu0 0
    %1954 = vmatpush.bf16.msra.mxu0 0
    %1955 = vmatpush.bf16.msra.mxu0 0
    %1956 = vmatpush.bf16.msra.mxu0 %v1944
    %1957 = vmatpush.bf16.msra.mxu0 %v1943
    %1958 = vmatmul.bf16.gmra.mxu0 %v1948
    %v1959 = vpop.f32.mrf.mxu0
    %v1960 = vadd.f32 %v1933, %v1959
    %v1961 = vpop.f32.mrf.mxu0
    %v1962 = vadd.f32 %v1933, %v1961
    %1963 = vdwg.mxu0
    %v1964 = vmul.f32 %v1960, 0.5
    %v1965 = vmul.f32 %v1962, 0.5
    %v1966 = vmul.f32 %v1960, 0.70710677
    %v1967 = vmul.f32 %v1962, 0.70710677
    %v1968 = vmul.f32 %v1966, %v1966
    %v1969 = vmin.f32 16.0, %v1968
    %v1970 = vmul.f32 %v1969, 2.1237322e-06
    %v1971 = vadd.f32 %v1970, 0.00028619796
    %v1972 = vmul.f32 %v1969, %v1971
    %v1973 = vadd.f32 %v1972, 0.0036580483
    %v1974 = vmul.f32 %v1969, %v1973
    %v1975 = vadd.f32 %v1974, 0.05243302
    %v1976 = vmul.f32 %v1969, %v1975
    %v1977 = vadd.f32 %v1976, 0.18741608
    %v1978 = vmul.f32 %v1969, %v1977
    %v1979 = vadd.f32 %v1978, 1.1283791
    %v1980 = vmul.f32 %v1966, %v1979
    %v1981 = vmul.f32 %v1969, 3.8918573e-05
    %v1982 = vadd.f32 %v1981, 0.001143296
    %v1983 = vmul.f32 %v1969, %v1982
    %v1984 = vadd.f32 %v1983, 0.014752088
    %v1985 = vmul.f32 %v1969, %v1984
    %v1986 = vadd.f32 %v1985, 0.112945676
    %v1987 = vmul.f32 %v1969, %v1986
    %v1988 = vadd.f32 %v1987, 0.4994258
    %v1989 = vmul.f32 %v1969, %v1988
    %v1990 = vadd.f32 %v1989, 1.0
    %v1991 = vrcp.pop %v1990
    %v1992 = vmul.f32 %v1990, %v1991
    %v1993 = vsub.f32 1.0, %v1992
    %v1994 = vmul.f32 %v1991, %v1993
    %v1995 = vadd.f32 %v1991, %v1994
    %vm1996 = vweird.f32 %v1990
    %vm1997 = vweird.f32 %v1991
    %vm1998 = vmor %vm1996, %vm1997
    %v1999 = vsel %vm1998, %v1991, %v1995
    %v2000 = vand.u32 2147483647, %v1990
    %vm2001 = vcmp.eq.f32.partialorder %v2000, 8.507059e+37
    %v2002 = vand.u32 %v1990, 2147483648
    %v2003 = vor.u32 1.1754944e-38, %v2002
    %v2004 = vsel %vm2001, %v2003, %v1999
    %v2005 = vmul.f32 %v1980, %v2004
    %v2006 = vmin.f32 %v2005, 1.0
    %v2007 = vmax.f32 %v2006, -1.0
    %v2008 = vmul.f32 %v1967, %v1967
    %v2009 = vmin.f32 16.0, %v2008
    %v2010 = vmul.f32 %v2009, 2.1237322e-06
    %v2011 = vadd.f32 %v2010, 0.00028619796
    %v2012 = vmul.f32 %v2009, %v2011
    %v2013 = vadd.f32 %v2012, 0.0036580483
    %v2014 = vmul.f32 %v2009, %v2013
    %v2015 = vadd.f32 %v2014, 0.05243302
    %v2016 = vmul.f32 %v2009, %v2015
    %v2017 = vadd.f32 %v2016, 0.18741608
    %v2018 = vmul.f32 %v2009, %v2017
    %v2019 = vadd.f32 %v2018, 1.1283791
    %v2020 = vmul.f32 %v1967, %v2019
    %v2021 = vmul.f32 %v2009, 3.8918573e-05
    %v2022 = vadd.f32 %v2021, 0.001143296
    %v2023 = vmul.f32 %v2009, %v2022
    %v2024 = vadd.f32 %v2023, 0.014752088
    %v2025 = vmul.f32 %v2009, %v2024
    %v2026 = vadd.f32 %v2025, 0.112945676
    %v2027 = vmul.f32 %v2009, %v2026
    %v2028 = vadd.f32 %v2027, 0.4994258
    %v2029 = vmul.f32 %v2009, %v2028
    %v2030 = vadd.f32 %v2029, 1.0
    %v2031 = vrcp.pop %v2030
    %v2032 = vmul.f32 %v2030, %v2031
    %v2033 = vsub.f32 1.0, %v2032
    %v2034 = vmul.f32 %v2031, %v2033
    %v2035 = vadd.f32 %v2031, %v2034
    %vm2036 = vweird.f32 %v2030
    %vm2037 = vweird.f32 %v2031
    %vm2038 = vmor %vm2036, %vm2037
    %v2039 = vsel %vm2038, %v2031, %v2035
    %v2040 = vand.u32 2147483647, %v2030
    %vm2041 = vcmp.eq.f32.partialorder %v2040, 8.507059e+37
    %v2042 = vand.u32 %v2030, 2147483648
    %v2043 = vor.u32 1.1754944e-38, %v2042
    %v2044 = vsel %vm2041, %v2043, %v2039
    %v2045 = vmul.f32 %v2020, %v2044
    %v2046 = vmin.f32 %v2045, 1.0
    %v2047 = vmax.f32 %v2046, -1.0
    %v2048 = vadd.f32 %v2007, 1.0
    %v2049 = vadd.f32 %v2047, 1.0
    %v2050 = vmul.f32 %v1964, %v2048
    %v2051 = vmul.f32 %v1965, %v2049
    %v2052 = vpack.c.bf16 %v2051, %v2050
    %v2053 = vld [vmem:[%s13] sm:$0xf]
    %v2054 = vld [vmem:[%s13 + $0x4] sm:$0xf]
    %v2055 = vld [vmem:[%s13 + $0x8] sm:$0xf]
    %v2056 = vld [vmem:[%s13 + $0xc] sm:$0xf]
    %v2057 = vld [vmem:[%s13 + $0x10] sm:$0xf]
    %v2058 = vld [vmem:[%s13 + $0x14] sm:$0xf]
    %v2059 = vld [vmem:[%s13 + $0x18] sm:$0xf]
    %v2060 = vld [vmem:[%s13 + $0x1c] sm:$0xf]
    %v2061 = vld [vmem:[%s14] sm:$0x1]
    %v2063 = vperm.slane %v2061, 0
    %v2073 = vunpack.c.l.b16 %v2053
    %v2074 = vunpack.c.l.b16 %v2054
    %v2075 = vunpack.c.l.b16 %v2055
    %v2076 = vunpack.c.l.b16 %v2056
    %v2077 = vunpack.c.l.b16 %v2057
    %v2078 = vunpack.c.l.b16 %v2058
    %v2079 = vunpack.c.l.b16 %v2059
    %v2080 = vunpack.c.l.b16 %v2060
    %v2081 = vpack.c.b16 %v2074, %v2073
    %v2082 = vpack.c.b16 %v2076, %v2075
    %v2083 = vpack.c.b16 %v2078, %v2077
    %v2084 = vpack.c.b16 %v2080, %v2079
    %vm2089 = vcmask 523264
    %v2091 = vsel %vm2089, %v2052, 0
    %2093 = vmatpush.bf16.msra.mxu0 0
    %2094 = vmatpush.bf16.msra.mxu0 0
    %2095 = vmatpush.bf16.msra.mxu0 0
    %2096 = vmatpush.bf16.msra.mxu0 0
    %2097 = vmatpush.bf16.msra.mxu0 %v2084
    %2098 = vmatpush.bf16.msra.mxu0 %v2083
    %2099 = vmatpush.bf16.msra.mxu0 %v2082
    %2100 = vmatpush.bf16.msra.mxu0 %v2081
    %2101 = vmatmul.bf16.gmra.mxu0 %v2091
    %v2102 = vpop.f32.mrf.mxu0
    %v2103 = vadd.f32 %v2063, %v2102
    %v2104 = vpop.f32.mrf.mxu0
    %v2105 = vadd.f32 %v2063, %v2104
    %2106 = vdwg.mxu0
    %v2107 = vadd.f32 %v2103, %v1924
    %v2108 = vadd.f32 %v2105, %v1925
    %v2109 = vld [vmem:[%s15] sm:$0x1]
    %v2110 = vld [vmem:[%s16] sm:$0x1]
    %v2111 = vsel %vm152, %v2107, 0.0
    %2112 = vadd.xlane.f32.xlu0 %v2111
    %v2113 = vpop.xlane.xlu0 %2112
    %v2114 = vsel %vm152, %v2108, 0.0
    %2115 = vadd.xlane.f32.xlu0 %v2114
    %v2116 = vpop.xlane.xlu0 %2115
    %v2117 = vmul.f32 %v2113, %v165
    %v2118 = vmul.f32 %v2116, %v165
    %v2119 = vsub.f32 %v2107, %v2117
    %v2120 = vsub.f32 %v2108, %v2118
    %v2121 = vmul.f32 %v2119, %v2119
    %v2122 = vmul.f32 %v2120, %v2120
    %v2123 = vsel %vm152, %v2121, 0.0
    %2124 = vadd.xlane.f32.xlu0 %v2123
    %v2125 = vpop.xlane.xlu0 %2124
    %v2126 = vsel %vm152, %v2122, 0.0
    %2127 = vadd.xlane.f32.xlu0 %v2126
    %v2128 = vpop.xlane.xlu0 %2127
    %v2129 = vmul.f32 %v2125, %v165
    %v2130 = vmul.f32 %v2128, %v165
    %v2131 = vadd.f32 %v2129, 1e-12
    %v2132 = vadd.f32 %v2130, 1e-12
    %v2133 = vrsqrt.pop %v2131
    %v2134 = vmul.f32 %v2133, %v2131
    %v2135 = vmul.f32 %v2134, %v2133
    %v2136 = vmul.f32 0.5, %v2135
    %v2137 = vsub.f32 1.5, %v2136
    %v2138 = vmul.f32 %v2133, %v2137
    %vm2139 = vweird.f32 %v2131
    %vm2140 = vweird.f32 %v2133
    %vm2141 = vmor %vm2139, %vm2140
    %v2142 = vsel %vm2141, %v2133, %v2138
    %v2143 = vrsqrt.pop %v2132
    %v2144 = vmul.f32 %v2143, %v2132
    %v2145 = vmul.f32 %v2144, %v2143
    %v2146 = vmul.f32 0.5, %v2145
    %v2147 = vsub.f32 1.5, %v2146
    %v2148 = vmul.f32 %v2143, %v2147
    %vm2149 = vweird.f32 %v2132
    %vm2150 = vweird.f32 %v2143
    %vm2151 = vmor %vm2149, %vm2150
    %v2152 = vsel %vm2151, %v2143, %v2148
    %v2153 = vmul.f32 %v2119, %v2142
    %v2154 = vmul.f32 %v2120, %v2152
    %v2156 = vperm.slane %v2109, 0
    %v2158 = vmul.f32 %v2153, %v2156
    %v2159 = vmul.f32 %v2154, %v2156
    %v2161 = vperm.slane %v2110, 0
    %v2163 = vadd.f32 %v2158, %v2161
    %v2164 = vadd.f32 %v2159, %v2161
    %v2165 = vpack.c.bf16 %v2164, %v2163
    %s2166 = scalar_lea.vmem %s5, 16
    %v2167 = vld [vmem:[%s2166] sm:$0xf]
    %v2168 = vld [vmem:[%s2166 + $0x4] sm:$0xf]
    %v2169 = vld [vmem:[%s2166 + $0x8] sm:$0xf]
    %v2170 = vld [vmem:[%s2166 + $0xc] sm:$0xf]
    %s2171 = scalar_lea.vmem %s6, 1
    %v2172 = vld [vmem:[%s2171] sm:$0x1]
    %v2174 = vperm.slane %v2172, 0
    %v2180 = vunpack.c.l.b16 %v2167
    %v2181 = vunpack.c.l.b16 %v2168
    %v2182 = vunpack.c.l.b16 %v2169
    %v2183 = vunpack.c.l.b16 %v2170
    %v2184 = vpack.c.b16 %v2181, %v2180
    %v2185 = vpack.c.b16 %v2183, %v2182
    %v2189 = vsel %vm152, %v2165, 0
    %2191 = vmatpush.bf16.msra.mxu0 0
    %2192 = vmatpush.bf16.msra.mxu0 0
    %2193 = vmatpush.bf16.msra.mxu0 0
    %2194 = vmatpush.bf16.msra.mxu0 0
    %2195 = vmatpush.bf16.msra.mxu0 0
    %2196 = vmatpush.bf16.msra.mxu0 0
    %2197 = vmatpush.bf16.msra.mxu0 %v2185
    %2198 = vmatpush.bf16.msra.mxu0 %v2184
    %2199 = vmatmul.bf16.gmra.mxu0 %v2189
    %v2200 = vpop.f32.mrf.mxu0
    %v2201 = vadd.f32 %v2174, %v2200
    %v2202 = vpop.f32.mrf.mxu0
    %v2203 = vadd.f32 %v2174, %v2202
    %2204 = vdwg.mxu0
    %2205 = vxpose.xlu0.b32.start [1/16] %v2201, 128
    %2206 = vxpose.xlu0.b32.cont [2/16] 0.0, 128
    %2207 = vxpose.xlu0.b32.cont [3/16] 0.0, 128
    %2208 = vxpose.xlu0.b32.cont [4/16] 0.0, 128
    %2209 = vxpose.xlu0.b32.cont [5/16] 0.0, 128
    %2210 = vxpose.xlu0.b32.cont [6/16] 0.0, 128
    %2211 = vxpose.xlu0.b32.cont [7/16] 0.0, 128
    %2212 = vxpose.xlu0.b32.cont [8/16] 0.0, 128
    %2213 = vxpose.xlu0.b32.cont [9/16] 0.0, 128
    %2214 = vxpose.xlu0.b32.cont [10/16] 0.0, 128
    %2215 = vxpose.xlu0.b32.cont [11/16] 0.0, 128
    %2216 = vxpose.xlu0.b32.cont [12/16] 0.0, 128
    %2217 = vxpose.xlu0.b32.cont [13/16] 0.0, 128
    %2218 = vxpose.xlu0.b32.cont [14/16] 0.0, 128
    %2219 = vxpose.xlu0.b32.cont [15/16] 0.0, 128
    %2220 = vxpose.xlu0.b32.end [16/16] 0.0, 128
    %v2221 = vpop.trf.xlu0
    %v2222 = vpop.trf.xlu0
    %v2223 = vpop.trf.xlu0
    %v2224 = vpop.trf.xlu0
    %v2225 = vpop.trf.xlu0
    %v2226 = vpop.trf.xlu0
    %v2227 = vpop.trf.xlu0
    %v2228 = vpop.trf.xlu0
    %v2229 = vpop.trf.xlu0
    %v2230 = vpop.trf.xlu0
    %v2231 = vpop.trf.xlu0
    %v2232 = vpop.trf.xlu0
    %v2233 = vpop.trf.xlu0
    %v2234 = vpop.trf.xlu0
    %v2235 = vpop.trf.xlu0
    %v2236 = vpop.trf.xlu0
    %2237 = vxpose.xlu0.b32.start [1/16] %v2221, 128
    %2238 = vxpose.xlu0.b32.cont [2/16] 0.0, 128
    %2239 = vxpose.xlu0.b32.cont [3/16] 0.0, 128
    %2240 = vxpose.xlu0.b32.cont [4/16] 0.0, 128
    %2241 = vxpose.xlu0.b32.cont [5/16] 0.0, 128
    %2242 = vxpose.xlu0.b32.cont [6/16] 0.0, 128
    %2243 = vxpose.xlu0.b32.cont [7/16] 0.0, 128
    %2244 = vxpose.xlu0.b32.cont [8/16] 0.0, 128
    %2245 = vxpose.xlu0.b32.cont [9/16] 0.0, 128
    %2246 = vxpose.xlu0.b32.cont [10/16] 0.0, 128
    %2247 = vxpose.xlu0.b32.cont [11/16] 0.0, 128
    %2248 = vxpose.xlu0.b32.cont [12/16] 0.0, 128
    %2249 = vxpose.xlu0.b32.cont [13/16] 0.0, 128
    %2250 = vxpose.xlu0.b32.cont [14/16] 0.0, 128
    %2251 = vxpose.xlu0.b32.cont [15/16] 0.0, 128
    %2252 = vxpose.xlu0.b32.end [16/16] 0.0, 128
    %v2253 = vpop.trf.xlu0
    %v2254 = vpop.trf.xlu0
    %v2255 = vpop.trf.xlu0
    %v2256 = vpop.trf.xlu0
    %v2257 = vpop.trf.xlu0
    %v2258 = vpop.trf.xlu0
    %v2259 = vpop.trf.xlu0
    %v2260 = vpop.trf.xlu0
    %v2261 = vpop.trf.xlu0
    %v2262 = vpop.trf.xlu0
    %v2263 = vpop.trf.xlu0
    %v2264 = vpop.trf.xlu0
    %v2265 = vpop.trf.xlu0
    %v2266 = vpop.trf.xlu0
    %v2267 = vpop.trf.xlu0
    %v2268 = vpop.trf.xlu0
    %2269 = vxpose.xlu0.b32.start [1/16] %v2222, 128
    %2270 = vxpose.xlu0.b32.cont [2/16] 0.0, 128
    %2271 = vxpose.xlu0.b32.cont [3/16] 0.0, 128
    %2272 = vxpose.xlu0.b32.cont [4/16] 0.0, 128
    %2273 = vxpose.xlu0.b32.cont [5/16] 0.0, 128
    %2274 = vxpose.xlu0.b32.cont [6/16] 0.0, 128
    %2275 = vxpose.xlu0.b32.cont [7/16] 0.0, 128
    %2276 = vxpose.xlu0.b32.cont [8/16] 0.0, 128
    %2277 = vxpose.xlu0.b32.cont [9/16] 0.0, 128
    %2278 = vxpose.xlu0.b32.cont [10/16] 0.0, 128
    %2279 = vxpose.xlu0.b32.cont [11/16] 0.0, 128
    %2280 = vxpose.xlu0.b32.cont [12/16] 0.0, 128
    %2281 = vxpose.xlu0.b32.cont [13/16] 0.0, 128
    %2282 = vxpose.xlu0.b32.cont [14/16] 0.0, 128
    %2283 = vxpose.xlu0.b32.cont [15/16] 0.0, 128
    %2284 = vxpose.xlu0.b32.end [16/16] 0.0, 128
    %v2285 = vpop.trf.xlu0
    %v2286 = vpop.trf.xlu0
    %v2287 = vpop.trf.xlu0
    %v2288 = vpop.trf.xlu0
    %v2289 = vpop.trf.xlu0
    %v2290 = vpop.trf.xlu0
    %v2291 = vpop.trf.xlu0
    %v2292 = vpop.trf.xlu0
    %v2293 = vpop.trf.xlu0
    %v2294 = vpop.trf.xlu0
    %v2295 = vpop.trf.xlu0
    %v2296 = vpop.trf.xlu0
    %v2297 = vpop.trf.xlu0
    %v2298 = vpop.trf.xlu0
    %v2299 = vpop.trf.xlu0
    %v2300 = vpop.trf.xlu0
    %2301 = vxpose.xlu0.b32.start [1/16] %v2223, 128
    %2302 = vxpose.xlu0.b32.cont [2/16] 0.0, 128
    %2303 = vxpose.xlu0.b32.cont [3/16] 0.0, 128
    %2304 = vxpose.xlu0.b32.cont [4/16] 0.0, 128
    %2305 = vxpose.xlu0.b32.cont [5/16] 0.0, 128
    %2306 = vxpose.xlu0.b32.cont [6/16] 0.0, 128
    %2307 = vxpose.xlu0.b32.cont [7/16] 0.0, 128
    %2308 = vxpose.xlu0.b32.cont [8/16] 0.0, 128
    %2309 = vxpose.xlu0.b32.cont [9/16] 0.0, 128
    %2310 = vxpose.xlu0.b32.cont [10/16] 0.0, 128
    %2311 = vxpose.xlu0.b32.cont [11/16] 0.0, 128
    %2312 = vxpose.xlu0.b32.cont [12/16] 0.0, 128
    %2313 = vxpose.xlu0.b32.cont [13/16] 0.0, 128
    %2314 = vxpose.xlu0.b32.cont [14/16] 0.0, 128
    %2315 = vxpose.xlu0.b32.cont [15/16] 0.0, 128
    %2316 = vxpose.xlu0.b32.end [16/16] 0.0, 128
    %v2317 = vpop.trf.xlu0
    %v2318 = vpop.trf.xlu0
    %v2319 = vpop.trf.xlu0
    %v2320 = vpop.trf.xlu0
    %v2321 = vpop.trf.xlu0
    %v2322 = vpop.trf.xlu0
    %v2323 = vpop.trf.xlu0
    %v2324 = vpop.trf.xlu0
    %v2325 = vpop.trf.xlu0
    %v2326 = vpop.trf.xlu0
    %v2327 = vpop.trf.xlu0
    %v2328 = vpop.trf.xlu0
    %v2329 = vpop.trf.xlu0
    %v2330 = vpop.trf.xlu0
    %v2331 = vpop.trf.xlu0
    %v2332 = vpop.trf.xlu0
    %2333 = vxpose.xlu0.b32.start [1/16] %v2224, 128
    %2334 = vxpose.xlu0.b32.cont [2/16] 0.0, 128
    %2335 = vxpose.xlu0.b32.cont [3/16] 0.0, 128
    %2336 = vxpose.xlu0.b32.cont [4/16] 0.0, 128
    %2337 = vxpose.xlu0.b32.cont [5/16] 0.0, 128
    %2338 = vxpose.xlu0.b32.cont [6/16] 0.0, 128
    %2339 = vxpose.xlu0.b32.cont [7/16] 0.0, 128
    %2340 = vxpose.xlu0.b32.cont [8/16] 0.0, 128
    %2341 = vxpose.xlu0.b32.cont [9/16] 0.0, 128
    %2342 = vxpose.xlu0.b32.cont [10/16] 0.0, 128
    %2343 = vxpose.xlu0.b32.cont [11/16] 0.0, 128
    %2344 = vxpose.xlu0.b32.cont [12/16] 0.0, 128
    %2345 = vxpose.xlu0.b32.cont [13/16] 0.0, 128
    %2346 = vxpose.xlu0.b32.cont [14/16] 0.0, 128
    %2347 = vxpose.xlu0.b32.cont [15/16] 0.0, 128
    %2348 = vxpose.xlu0.b32.end [16/16] 0.0, 128
    %v2349 = vpop.trf.xlu0
    %v2350 = vpop.trf.xlu0
    %v2351 = vpop.trf.xlu0
    %v2352 = vpop.trf.xlu0
    %v2353 = vpop.trf.xlu0
    %v2354 = vpop.trf.xlu0
    %v2355 = vpop.trf.xlu0
    %v2356 = vpop.trf.xlu0
    %v2357 = vpop.trf.xlu0
    %v2358 = vpop.trf.xlu0
    %v2359 = vpop.trf.xlu0
    %v2360 = vpop.trf.xlu0
    %v2361 = vpop.trf.xlu0
    %v2362 = vpop.trf.xlu0
    %v2363 = vpop.trf.xlu0
    %v2364 = vpop.trf.xlu0
    %v2365 = vpack.c.bf16 %v2253, %v2253
    %v2366 = vpack.c.bf16 %v2285, %v2285
    %v2367 = vpack.c.bf16 %v2317, %v2317
    %v2368 = vpack.c.bf16 %v2349, %v2349
    %2369 = vxpose.xlu0.b32.start [1/16] %v2225, 128
    %2370 = vxpose.xlu0.b32.cont [2/16] 0.0, 128
    %2371 = vxpose.xlu0.b32.cont [3/16] 0.0, 128
    %2372 = vxpose.xlu0.b32.cont [4/16] 0.0, 128
    %2373 = vxpose.xlu0.b32.cont [5/16] 0.0, 128
    %2374 = vxpose.xlu0.b32.cont [6/16] 0.0, 128
    %2375 = vxpose.xlu0.b32.cont [7/16] 0.0, 128
    %2376 = vxpose.xlu0.b32.cont [8/16] 0.0, 128
    %2377 = vxpose.xlu0.b32.cont [9/16] 0.0, 128
    %2378 = vxpose.xlu0.b32.cont [10/16] 0.0, 128
    %2379 = vxpose.xlu0.b32.cont [11/16] 0.0, 128
    %2380 = vxpose.xlu0.b32.cont [12/16] 0.0, 128
    %2381 = vxpose.xlu0.b32.cont [13/16] 0.0, 128
    %2382 = vxpose.xlu0.b32.cont [14/16] 0.0, 128
    %2383 = vxpose.xlu0.b32.cont [15/16] 0.0, 128
    %2384 = vxpose.xlu0.b32.end [16/16] 0.0, 128
    %v2385 = vpop.trf.xlu0
    %v2386 = vpop.trf.xlu0
    %v2387 = vpop.trf.xlu0
    %v2388 = vpop.trf.xlu0
    %v2389 = vpop.trf.xlu0
    %v2390 = vpop.trf.xlu0
    %v2391 = vpop.trf.xlu0
    %v2392 = vpop.trf.xlu0
    %v2393 = vpop.trf.xlu0
    %v2394 = vpop.trf.xlu0
    %v2395 = vpop.trf.xlu0
    %v2396 = vpop.trf.xlu0
    %v2397 = vpop.trf.xlu0
    %v2398 = vpop.trf.xlu0
    %v2399 = vpop.trf.xlu0
    %v2400 = vpop.trf.xlu0
    %2401 = vxpose.xlu0.b32.start [1/16] %v2226, 128
    %2402 = vxpose.xlu0.b32.cont [2/16] 0.0, 128
    %2403 = vxpose.xlu0.b32.cont [3/16] 0.0, 128
    %2404 = vxpose.xlu0.b32.cont [4/16] 0.0, 128
    %2405 = vxpose.xlu0.b32.cont [5/16] 0.0, 128
    %2406 = vxpose.xlu0.b32.cont [6/16] 0.0, 128
    %2407 = vxpose.xlu0.b32.cont [7/16] 0.0, 128
    %2408 = vxpose.xlu0.b32.cont [8/16] 0.0, 128
    %2409 = vxpose.xlu0.b32.cont [9/16] 0.0, 128
    %2410 = vxpose.xlu0.b32.cont [10/16] 0.0, 128
    %2411 = vxpose.xlu0.b32.cont [11/16] 0.0, 128
    %2412 = vxpose.xlu0.b32.cont [12/16] 0.0, 128
    %2413 = vxpose.xlu0.b32.cont [13/16] 0.0, 128
    %2414 = vxpose.xlu0.b32.cont [14/16] 0.0, 128
    %2415 = vxpose.xlu0.b32.cont [15/16] 0.0, 128
    %2416 = vxpose.xlu0.b32.end [16/16] 0.0, 128
    %v2417 = vpop.trf.xlu0
    %v2418 = vpop.trf.xlu0
    %v2419 = vpop.trf.xlu0
    %v2420 = vpop.trf.xlu0
    %v2421 = vpop.trf.xlu0
    %v2422 = vpop.trf.xlu0
    %v2423 = vpop.trf.xlu0
    %v2424 = vpop.trf.xlu0
    %v2425 = vpop.trf.xlu0
    %v2426 = vpop.trf.xlu0
    %v2427 = vpop.trf.xlu0
    %v2428 = vpop.trf.xlu0
    %v2429 = vpop.trf.xlu0
    %v2430 = vpop.trf.xlu0
    %v2431 = vpop.trf.xlu0
    %v2432 = vpop.trf.xlu0
    %2433 = vxpose.xlu0.b32.start [1/16] %v2227, 128
    %2434 = vxpose.xlu0.b32.cont [2/16] 0.0, 128
    %2435 = vxpose.xlu0.b32.cont [3/16] 0.0, 128
    %2436 = vxpose.xlu0.b32.cont [4/16] 0.0, 128
    %2437 = vxpose.xlu0.b32.cont [5/16] 0.0, 128
    %2438 = vxpose.xlu0.b32.cont [6/16] 0.0, 128
    %2439 = vxpose.xlu0.b32.cont [7/16] 0.0, 128
    %2440 = vxpose.xlu0.b32.cont [8/16] 0.0, 128
    %2441 = vxpose.xlu0.b32.cont [9/16] 0.0, 128
    %2442 = vxpose.xlu0.b32.cont [10/16] 0.0, 128
    %2443 = vxpose.xlu0.b32.cont [11/16] 0.0, 128
    %2444 = vxpose.xlu0.b32.cont [12/16] 0.0, 128
    %2445 = vxpose.xlu0.b32.cont [13/16] 0.0, 128
    %2446 = vxpose.xlu0.b32.cont [14/16] 0.0, 128
    %2447 = vxpose.xlu0.b32.cont [15/16] 0.0, 128
    %2448 = vxpose.xlu0.b32.end [16/16] 0.0, 128
    %v2449 = vpop.trf.xlu0
    %v2450 = vpop.trf.xlu0
    %v2451 = vpop.trf.xlu0
    %v2452 = vpop.trf.xlu0
    %v2453 = vpop.trf.xlu0
    %v2454 = vpop.trf.xlu0
    %v2455 = vpop.trf.xlu0
    %v2456 = vpop.trf.xlu0
    %v2457 = vpop.trf.xlu0
    %v2458 = vpop.trf.xlu0
    %v2459 = vpop.trf.xlu0
    %v2460 = vpop.trf.xlu0
    %v2461 = vpop.trf.xlu0
    %v2462 = vpop.trf.xlu0
    %v2463 = vpop.trf.xlu0
    %v2464 = vpop.trf.xlu0
    %2465 = vxpose.xlu0.b32.start [1/16] %v2228, 128
    %2466 = vxpose.xlu0.b32.cont [2/16] 0.0, 128
    %2467 = vxpose.xlu0.b32.cont [3/16] 0.0, 128
    %2468 = vxpose.xlu0.b32.cont [4/16] 0.0, 128
    %2469 = vxpose.xlu0.b32.cont [5/16] 0.0, 128
    %2470 = vxpose.xlu0.b32.cont [6/16] 0.0, 128
    %2471 = vxpose.xlu0.b32.cont [7/16] 0.0, 128
    %2472 = vxpose.xlu0.b32.cont [8/16] 0.0, 128
    %2473 = vxpose.xlu0.b32.cont [9/16] 0.0, 128
    %2474 = vxpose.xlu0.b32.cont [10/16] 0.0, 128
    %2475 = vxpose.xlu0.b32.cont [11/16] 0.0, 128
    %2476 = vxpose.xlu0.b32.cont [12/16] 0.0, 128
    %2477 = vxpose.xlu0.b32.cont [13/16] 0.0, 128
    %2478 = vxpose.xlu0.b32.cont [14/16] 0.0, 128
    %2479 = vxpose.xlu0.b32.cont [15/16] 0.0, 128
    %2480 = vxpose.xlu0.b32.end [16/16] 0.0, 128
    %v2481 = vpop.trf.xlu0
    %v2482 = vpop.trf.xlu0
    %v2483 = vpop.trf.xlu0
    %v2484 = vpop.trf.xlu0
    %v2485 = vpop.trf.xlu0
    %v2486 = vpop.trf.xlu0
    %v2487 = vpop.trf.xlu0
    %v2488 = vpop.trf.xlu0
    %v2489 = vpop.trf.xlu0
    %v2490 = vpop.trf.xlu0
    %v2491 = vpop.trf.xlu0
    %v2492 = vpop.trf.xlu0
    %v2493 = vpop.trf.xlu0
    %v2494 = vpop.trf.xlu0
    %v2495 = vpop.trf.xlu0
    %v2496 = vpop.trf.xlu0
    %v2497 = vpack.c.bf16 %v2385, %v2385
    %v2498 = vpack.c.bf16 %v2417, %v2417
    %v2499 = vpack.c.bf16 %v2449, %v2449
    %v2500 = vpack.c.bf16 %v2481, %v2481
    %2501 = vxpose.xlu0.b32.start [1/16] %v2229, 128
    %2502 = vxpose.xlu0.b32.cont [2/16] 0.0, 128
    %2503 = vxpose.xlu0.b32.cont [3/16] 0.0, 128
    %2504 = vxpose.xlu0.b32.cont [4/16] 0.0, 128
    %2505 = vxpose.xlu0.b32.cont [5/16] 0.0, 128
    %2506 = vxpose.xlu0.b32.cont [6/16] 0.0, 128
    %2507 = vxpose.xlu0.b32.cont [7/16] 0.0, 128
    %2508 = vxpose.xlu0.b32.cont [8/16] 0.0, 128
    %2509 = vxpose.xlu0.b32.cont [9/16] 0.0, 128
    %2510 = vxpose.xlu0.b32.cont [10/16] 0.0, 128
    %2511 = vxpose.xlu0.b32.cont [11/16] 0.0, 128
    %2512 = vxpose.xlu0.b32.cont [12/16] 0.0, 128
    %2513 = vxpose.xlu0.b32.cont [13/16] 0.0, 128
    %2514 = vxpose.xlu0.b32.cont [14/16] 0.0, 128
    %2515 = vxpose.xlu0.b32.cont [15/16] 0.0, 128
    %2516 = vxpose.xlu0.b32.end [16/16] 0.0, 128
    %v2517 = vpop.trf.xlu0
    %v2518 = vpop.trf.xlu0
    %v2519 = vpop.trf.xlu0
    %v2520 = vpop.trf.xlu0
    %v2521 = vpop.trf.xlu0
    %v2522 = vpop.trf.xlu0
    %v2523 = vpop.trf.xlu0
    %v2524 = vpop.trf.xlu0
    %v2525 = vpop.trf.xlu0
    %v2526 = vpop.trf.xlu0
    %v2527 = vpop.trf.xlu0
    %v2528 = vpop.trf.xlu0
    %v2529 = vpop.trf.xlu0
    %v2530 = vpop.trf.xlu0
    %v2531 = vpop.trf.xlu0
    %v2532 = vpop.trf.xlu0
    %2533 = vxpose.xlu0.b32.start [1/16] %v2230, 128
    %2534 = vxpose.xlu0.b32.cont [2/16] 0.0, 128
    %2535 = vxpose.xlu0.b32.cont [3/16] 0.0, 128
    %2536 = vxpose.xlu0.b32.cont [4/16] 0.0, 128
    %2537 = vxpose.xlu0.b32.cont [5/16] 0.0, 128
    %2538 = vxpose.xlu0.b32.cont [6/16] 0.0, 128
    %2539 = vxpose.xlu0.b32.cont [7/16] 0.0, 128
    %2540 = vxpose.xlu0.b32.cont [8/16] 0.0, 128
    %2541 = vxpose.xlu0.b32.cont [9/16] 0.0, 128
    %2542 = vxpose.xlu0.b32.cont [10/16] 0.0, 128
    %2543 = vxpose.xlu0.b32.cont [11/16] 0.0, 128
    %2544 = vxpose.xlu0.b32.cont [12/16] 0.0, 128
    %2545 = vxpose.xlu0.b32.cont [13/16] 0.0, 128
    %2546 = vxpose.xlu0.b32.cont [14/16] 0.0, 128
    %2547 = vxpose.xlu0.b32.cont [15/16] 0.0, 128
    %2548 = vxpose.xlu0.b32.end [16/16] 0.0, 128
    %v2549 = vpop.trf.xlu0
    %v2550 = vpop.trf.xlu0
    %v2551 = vpop.trf.xlu0
    %v2552 = vpop.trf.xlu0
    %v2553 = vpop.trf.xlu0
    %v2554 = vpop.trf.xlu0
    %v2555 = vpop.trf.xlu0
    %v2556 = vpop.trf.xlu0
    %v2557 = vpop.trf.xlu0
    %v2558 = vpop.trf.xlu0
    %v2559 = vpop.trf.xlu0
    %v2560 = vpop.trf.xlu0
    %v2561 = vpop.trf.xlu0
    %v2562 = vpop.trf.xlu0
    %v2563 = vpop.trf.xlu0
    %v2564 = vpop.trf.xlu0
    %2565 = vxpose.xlu0.b32.start [1/16] %v2231, 128
    %2566 = vxpose.xlu0.b32.cont [2/16] 0.0, 128
    %2567 = vxpose.xlu0.b32.cont [3/16] 0.0, 128
    %2568 = vxpose.xlu0.b32.cont [4/16] 0.0, 128
    %2569 = vxpose.xlu0.b32.cont [5/16] 0.0, 128
    %2570 = vxpose.xlu0.b32.cont [6/16] 0.0, 128
    %2571 = vxpose.xlu0.b32.cont [7/16] 0.0, 128
    %2572 = vxpose.xlu0.b32.cont [8/16] 0.0, 128
    %2573 = vxpose.xlu0.b32.cont [9/16] 0.0, 128
    %2574 = vxpose.xlu0.b32.cont [10/16] 0.0, 128
    %2575 = vxpose.xlu0.b32.cont [11/16] 0.0, 128
    %2576 = vxpose.xlu0.b32.cont [12/16] 0.0, 128
    %2577 = vxpose.xlu0.b32.cont [13/16] 0.0, 128
    %2578 = vxpose.xlu0.b32.cont [14/16] 0.0, 128
    %2579 = vxpose.xlu0.b32.cont [15/16] 0.0, 128
    %2580 = vxpose.xlu0.b32.end [16/16] 0.0, 128
    %v2581 = vpop.trf.xlu0
    %v2582 = vpop.trf.xlu0
    %v2583 = vpop.trf.xlu0
    %v2584 = vpop.trf.xlu0
    %v2585 = vpop.trf.xlu0
    %v2586 = vpop.trf.xlu0
    %v2587 = vpop.trf.xlu0
    %v2588 = vpop.trf.xlu0
    %v2589 = vpop.trf.xlu0
    %v2590 = vpop.trf.xlu0
    %v2591 = vpop.trf.xlu0
    %v2592 = vpop.trf.xlu0
    %v2593 = vpop.trf.xlu0
    %v2594 = vpop.trf.xlu0
    %v2595 = vpop.trf.xlu0
    %v2596 = vpop.trf.xlu0
    %2597 = vxpose.xlu0.b32.start [1/16] %v2232, 128
    %2598 = vxpose.xlu0.b32.cont [2/16] 0.0, 128
    %2599 = vxpose.xlu0.b32.cont [3/16] 0.0, 128
    %2600 = vxpose.xlu0.b32.cont [4/16] 0.0, 128
    %2601 = vxpose.xlu0.b32.cont [5/16] 0.0, 128
    %2602 = vxpose.xlu0.b32.cont [6/16] 0.0, 128
    %2603 = vxpose.xlu0.b32.cont [7/16] 0.0, 128
    %2604 = vxpose.xlu0.b32.cont [8/16] 0.0, 128
    %2605 = vxpose.xlu0.b32.cont [9/16] 0.0, 128
    %2606 = vxpose.xlu0.b32.cont [10/16] 0.0, 128
    %2607 = vxpose.xlu0.b32.cont [11/16] 0.0, 128
    %2608 = vxpose.xlu0.b32.cont [12/16] 0.0, 128
    %2609 = vxpose.xlu0.b32.cont [13/16] 0.0, 128
    %2610 = vxpose.xlu0.b32.cont [14/16] 0.0, 128
    %2611 = vxpose.xlu0.b32.cont [15/16] 0.0, 128
    %2612 = vxpose.xlu0.b32.end [16/16] 0.0, 128
    %v2613 = vpop.trf.xlu0
    %v2614 = vpop.trf.xlu0
    %v2615 = vpop.trf.xlu0
    %v2616 = vpop.trf.xlu0
    %v2617 = vpop.trf.xlu0
    %v2618 = vpop.trf.xlu0
    %v2619 = vpop.trf.xlu0
    %v2620 = vpop.trf.xlu0
    %v2621 = vpop.trf.xlu0
    %v2622 = vpop.trf.xlu0
    %v2623 = vpop.trf.xlu0
    %v2624 = vpop.trf.xlu0
    %v2625 = vpop.trf.xlu0
    %v2626 = vpop.trf.xlu0
    %v2627 = vpop.trf.xlu0
    %v2628 = vpop.trf.xlu0
    %v2629 = vpack.c.bf16 %v2517, %v2517
    %v2630 = vpack.c.bf16 %v2549, %v2549
    %v2631 = vpack.c.bf16 %v2581, %v2581
    %v2632 = vpack.c.bf16 %v2613, %v2613
    %v2634 = vsel %vm680, %v2365, 0
    %v2637 = vsel %vm680, %v2497, 0
    %2639 = vmatpush.bf16.xpose.msra.mxu0 0
    %2640 = vmatpush.bf16.xpose.msra.mxu0 0
    %2641 = vmatpush.bf16.xpose.msra.mxu0 0
    %2642 = vmatpush.bf16.xpose.msra.mxu0 0
    %2643 = vmatpush.bf16.xpose.msra.mxu0 0
    %2644 = vmatpush.bf16.xpose.msra.mxu0 0
    %2645 = vmatpush.bf16.xpose.msra.mxu0 0
    %2646 = vmatpush.bf16.xpose.msra.mxu0 %v2637
    %2647 = vmatmul.bf16.gmra.mxu0 %v2634
    %v2648 = vpop.f32.mrf.mxu0
    %v2649 = vadd.f32 0.0, %v2648
    %v2650 = vpop.f32.mrf.mxu0
    %2651 = vdwg.mxu0
    %v2653 = vsel %vm680, %v2366, 0
    %v2656 = vsel %vm680, %v2498, 0
    %2658 = vmatpush.bf16.xpose.msra.mxu0 0
    %2659 = vmatpush.bf16.xpose.msra.mxu0 0
    %2660 = vmatpush.bf16.xpose.msra.mxu0 0
    %2661 = vmatpush.bf16.xpose.msra.mxu0 0
    %2662 = vmatpush.bf16.xpose.msra.mxu0 0
    %2663 = vmatpush.bf16.xpose.msra.mxu0 0
    %2664 = vmatpush.bf16.xpose.msra.mxu0 0
    %2665 = vmatpush.bf16.xpose.msra.mxu0 %v2656
    %2666 = vmatmul.bf16.gmra.mxu0 %v2653
    %v2667 = vpop.f32.mrf.mxu0
    %v2668 = vadd.f32 0.0, %v2667
    %v2669 = vpop.f32.mrf.mxu0
    %2670 = vdwg.mxu0
    %v2672 = vsel %vm680, %v2367, 0
    %v2675 = vsel %vm680, %v2499, 0
    %2677 = vmatpush.bf16.xpose.msra.mxu0 0
    %2678 = vmatpush.bf16.xpose.msra.mxu0 0
    %2679 = vmatpush.bf16.xpose.msra.mxu0 0
    %2680 = vmatpush.bf16.xpose.msra.mxu0 0
    %2681 = vmatpush.bf16.xpose.msra.mxu0 0
    %2682 = vmatpush.bf16.xpose.msra.mxu0 0
    %2683 = vmatpush.bf16.xpose.msra.mxu0 0
    %2684 = vmatpush.bf16.xpose.msra.mxu0 %v2675
    %2685 = vmatmul.bf16.gmra.mxu0 %v2672
    %v2686 = vpop.f32.mrf.mxu0
    %v2687 = vadd.f32 0.0, %v2686
    %v2688 = vpop.f32.mrf.mxu0
    %2689 = vdwg.mxu0
    %v2691 = vsel %vm680, %v2368, 0
    %v2694 = vsel %vm680, %v2500, 0
    %2696 = vmatpush.bf16.xpose.msra.mxu0 0
    %2697 = vmatpush.bf16.xpose.msra.mxu0 0
    %2698 = vmatpush.bf16.xpose.msra.mxu0 0
    %2699 = vmatpush.bf16.xpose.msra.mxu0 0
    %2700 = vmatpush.bf16.xpose.msra.mxu0 0
    %2701 = vmatpush.bf16.xpose.msra.mxu0 0
    %2702 = vmatpush.bf16.xpose.msra.mxu0 0
    %2703 = vmatpush.bf16.xpose.msra.mxu0 %v2694
    %2704 = vmatmul.bf16.gmra.mxu0 %v2691
    %v2705 = vpop.f32.mrf.mxu0
    %v2706 = vadd.f32 0.0, %v2705
    %v2707 = vpop.f32.mrf.mxu0
    %2708 = vdwg.mxu0
    %v2709 = vsel %vm680, %v2649, -inf
    %2710 = vmax.xlane.f32.xlu0 %v2709
    %v2711 = vpop.xlane.xlu0 %2710
    %v2712 = vsel %vm680, %v2668, -inf
    %2713 = vmax.xlane.f32.xlu0 %v2712
    %v2714 = vpop.xlane.xlu0 %2713
    %v2715 = vsel %vm680, %v2687, -inf
    %2716 = vmax.xlane.f32.xlu0 %v2715
    %v2717 = vpop.xlane.xlu0 %2716
    %v2718 = vsel %vm680, %v2706, -inf
    %2719 = vmax.xlane.f32.xlu0 %v2718
    %v2720 = vpop.xlane.xlu0 %2719
    %v2721 = vsub.f32 %v2649, %v2711
    %v2722 = vsub.f32 %v2668, %v2714
    %v2723 = vsub.f32 %v2687, %v2717
    %v2724 = vsub.f32 %v2706, %v2720
    %v2725 = vmul.f32 %v2721, 1.442695
    %v2726 = vpow.pop %v2725
    %v2727 = vmul.f32 %v2722, 1.442695
    %v2728 = vpow.pop %v2727
    %v2729 = vmul.f32 %v2723, 1.442695
    %v2730 = vpow.pop %v2729
    %v2731 = vmul.f32 %v2724, 1.442695
    %v2732 = vpow.pop %v2731
    %v2733 = vsel %vm680, %v2726, 0.0
    %2734 = vadd.xlane.f32.xlu0 %v2733
    %v2735 = vpop.xlane.xlu0 %2734
    %v2736 = vsel %vm680, %v2728, 0.0
    %2737 = vadd.xlane.f32.xlu0 %v2736
    %v2738 = vpop.xlane.xlu0 %2737
    %v2739 = vsel %vm680, %v2730, 0.0
    %2740 = vadd.xlane.f32.xlu0 %v2739
    %v2741 = vpop.xlane.xlu0 %2740
    %v2742 = vsel %vm680, %v2732, 0.0
    %2743 = vadd.xlane.f32.xlu0 %v2742
    %v2744 = vpop.xlane.xlu0 %2743
    %v2745 = vrcp.pop %v2735
    %v2746 = vrcp.pop %v2738
    %v2747 = vrcp.pop %v2741
    %v2748 = vrcp.pop %v2744
    %v2749 = vmul.f32 %v2726, %v2745
    %v2750 = vmul.f32 %v2728, %v2746
    %v2751 = vmul.f32 %v2730, %v2747
    %v2752 = vmul.f32 %v2732, %v2748
    %v2753 = vpack.c.bf16 %v2749, %v2749
    %v2754 = vpack.c.bf16 %v2750, %v2750
    %v2755 = vpack.c.bf16 %v2751, %v2751
    %v2756 = vpack.c.bf16 %v2752, %v2752
    %v2758 = vsel %vm680, %v2753, 0
    %v2761 = vsel %vm808, %v2629, 0
    %2763 = vmatpush.bf16.msra.mxu0 0
    %2764 = vmatpush.bf16.msra.mxu0 0
    %2765 = vmatpush.bf16.msra.mxu0 0
    %2766 = vmatpush.bf16.msra.mxu0 0
    %2767 = vmatpush.bf16.msra.mxu0 0
    %2768 = vmatpush.bf16.msra.mxu0 0
    %2769 = vmatpush.bf16.msra.mxu0 0
    %2770 = vmatpush.bf16.msra.mxu0 %v2761
    %2771 = vmatmul.bf16.gmra.mxu0 %v2758
    %v2772 = vpop.f32.mrf.mxu0
    %v2773 = vadd.f32 0.0, %v2772
    %v2774 = vpop.f32.mrf.mxu0
    %2775 = vdwg.mxu0
    %v2777 = vsel %vm680, %v2754, 0
    %v2780 = vsel %vm808, %v2630, 0
    %2782 = vmatpush.bf16.msra.mxu0 0
    %2783 = vmatpush.bf16.msra.mxu0 0
    %2784 = vmatpush.bf16.msra.mxu0 0
    %2785 = vmatpush.bf16.msra.mxu0 0
    %2786 = vmatpush.bf16.msra.mxu0 0
    %2787 = vmatpush.bf16.msra.mxu0 0
    %2788 = vmatpush.bf16.msra.mxu0 0
    %2789 = vmatpush.bf16.msra.mxu0 %v2780
    %2790 = vmatmul.bf16.gmra.mxu0 %v2777
    %v2791 = vpop.f32.mrf.mxu0
    %v2792 = vadd.f32 0.0, %v2791
    %v2793 = vpop.f32.mrf.mxu0
    %2794 = vdwg.mxu0
    %v2796 = vsel %vm680, %v2755, 0
    %v2799 = vsel %vm808, %v2631, 0
    %2801 = vmatpush.bf16.msra.mxu0 0
    %2802 = vmatpush.bf16.msra.mxu0 0
    %2803 = vmatpush.bf16.msra.mxu0 0
    %2804 = vmatpush.bf16.msra.mxu0 0
    %2805 = vmatpush.bf16.msra.mxu0 0
    %2806 = vmatpush.bf16.msra.mxu0 0
    %2807 = vmatpush.bf16.msra.mxu0 0
    %2808 = vmatpush.bf16.msra.mxu0 %v2799
    %2809 = vmatmul.bf16.gmra.mxu0 %v2796
    %v2810 = vpop.f32.mrf.mxu0
    %v2811 = vadd.f32 0.0, %v2810
    %v2812 = vpop.f32.mrf.mxu0
    %2813 = vdwg.mxu0
    %v2815 = vsel %vm680, %v2756, 0
    %v2818 = vsel %vm808, %v2632, 0
    %2820 = vmatpush.bf16.msra.mxu0 0
    %2821 = vmatpush.bf16.msra.mxu0 0
    %2822 = vmatpush.bf16.msra.mxu0 0
    %2823 = vmatpush.bf16.msra.mxu0 0
    %2824 = vmatpush.bf16.msra.mxu0 0
    %2825 = vmatpush.bf16.msra.mxu0 0
    %2826 = vmatpush.bf16.msra.mxu0 0
    %2827 = vmatpush.bf16.msra.mxu0 %v2818
    %2828 = vmatmul.bf16.gmra.mxu0 %v2815
    %v2829 = vpop.f32.mrf.mxu0
    %v2830 = vadd.f32 0.0, %v2829
    %v2831 = vpop.f32.mrf.mxu0
    %2832 = vdwg.mxu0
    %2833 = vxpose.xlu0.b32.start [1/16] %v2773, 128
    %2834 = vxpose.xlu0.b32.cont [2/16] 0.0, 128
    %2835 = vxpose.xlu0.b32.cont [3/16] 0.0, 128
    %2836 = vxpose.xlu0.b32.cont [4/16] 0.0, 128
    %2837 = vxpose.xlu0.b32.cont [5/16] 0.0, 128
    %2838 = vxpose.xlu0.b32.cont [6/16] 0.0, 128
    %2839 = vxpose.xlu0.b32.cont [7/16] 0.0, 128
    %2840 = vxpose.xlu0.b32.cont [8/16] 0.0, 128
    %2841 = vxpose.xlu0.b32.cont [9/16] 0.0, 128
    %2842 = vxpose.xlu0.b32.cont [10/16] 0.0, 128
    %2843 = vxpose.xlu0.b32.cont [11/16] 0.0, 128
    %2844 = vxpose.xlu0.b32.cont [12/16] 0.0, 128
    %2845 = vxpose.xlu0.b32.cont [13/16] 0.0, 128
    %2846 = vxpose.xlu0.b32.cont [14/16] 0.0, 128
    %2847 = vxpose.xlu0.b32.cont [15/16] 0.0, 128
    %2848 = vxpose.xlu0.b32.end [16/16] 0.0, 128
    %v2849 = vpop.trf.xlu0
    %v2850 = vpop.trf.xlu0
    %v2851 = vpop.trf.xlu0
    %v2852 = vpop.trf.xlu0
    %v2853 = vpop.trf.xlu0
    %v2854 = vpop.trf.xlu0
    %v2855 = vpop.trf.xlu0
    %v2856 = vpop.trf.xlu0
    %v2857 = vpop.trf.xlu0
    %v2858 = vpop.trf.xlu0
    %v2859 = vpop.trf.xlu0
    %v2860 = vpop.trf.xlu0
    %v2861 = vpop.trf.xlu0
    %v2862 = vpop.trf.xlu0
    %v2863 = vpop.trf.xlu0
    %v2864 = vpop.trf.xlu0
    %2865 = vxpose.xlu0.b32.start [1/16] %v2792, 128
    %2866 = vxpose.xlu0.b32.cont [2/16] 0.0, 128
    %2867 = vxpose.xlu0.b32.cont [3/16] 0.0, 128
    %2868 = vxpose.xlu0.b32.cont [4/16] 0.0, 128
    %2869 = vxpose.xlu0.b32.cont [5/16] 0.0, 128
    %2870 = vxpose.xlu0.b32.cont [6/16] 0.0, 128
    %2871 = vxpose.xlu0.b32.cont [7/16] 0.0, 128
    %2872 = vxpose.xlu0.b32.cont [8/16] 0.0, 128
    %2873 = vxpose.xlu0.b32.cont [9/16] 0.0, 128
    %2874 = vxpose.xlu0.b32.cont [10/16] 0.0, 128
    %2875 = vxpose.xlu0.b32.cont [11/16] 0.0, 128
    %2876 = vxpose.xlu0.b32.cont [12/16] 0.0, 128
    %2877 = vxpose.xlu0.b32.cont [13/16] 0.0, 128
    %2878 = vxpose.xlu0.b32.cont [14/16] 0.0, 128
    %2879 = vxpose.xlu0.b32.cont [15/16] 0.0, 128
    %2880 = vxpose.xlu0.b32.end [16/16] 0.0, 128
    %v2881 = vpop.trf.xlu0
    %v2882 = vpop.trf.xlu0
    %v2883 = vpop.trf.xlu0
    %v2884 = vpop.trf.xlu0
    %v2885 = vpop.trf.xlu0
    %v2886 = vpop.trf.xlu0
    %v2887 = vpop.trf.xlu0
    %v2888 = vpop.trf.xlu0
    %v2889 = vpop.trf.xlu0
    %v2890 = vpop.trf.xlu0
    %v2891 = vpop.trf.xlu0
    %v2892 = vpop.trf.xlu0
    %v2893 = vpop.trf.xlu0
    %v2894 = vpop.trf.xlu0
    %v2895 = vpop.trf.xlu0
    %v2896 = vpop.trf.xlu0
    %2897 = vxpose.xlu0.b32.start [1/16] %v2811, 128
    %2898 = vxpose.xlu0.b32.cont [2/16] 0.0, 128
    %2899 = vxpose.xlu0.b32.cont [3/16] 0.0, 128
    %2900 = vxpose.xlu0.b32.cont [4/16] 0.0, 128
    %2901 = vxpose.xlu0.b32.cont [5/16] 0.0, 128
    %2902 = vxpose.xlu0.b32.cont [6/16] 0.0, 128
    %2903 = vxpose.xlu0.b32.cont [7/16] 0.0, 128
    %2904 = vxpose.xlu0.b32.cont [8/16] 0.0, 128
    %2905 = vxpose.xlu0.b32.cont [9/16] 0.0, 128
    %2906 = vxpose.xlu0.b32.cont [10/16] 0.0, 128
    %2907 = vxpose.xlu0.b32.cont [11/16] 0.0, 128
    %2908 = vxpose.xlu0.b32.cont [12/16] 0.0, 128
    %2909 = vxpose.xlu0.b32.cont [13/16] 0.0, 128
    %2910 = vxpose.xlu0.b32.cont [14/16] 0.0, 128
    %2911 = vxpose.xlu0.b32.cont [15/16] 0.0, 128
    %2912 = vxpose.xlu0.b32.end [16/16] 0.0, 128
    %v2913 = vpop.trf.xlu0
    %v2914 = vpop.trf.xlu0
    %v2915 = vpop.trf.xlu0
    %v2916 = vpop.trf.xlu0
    %v2917 = vpop.trf.xlu0
    %v2918 = vpop.trf.xlu0
    %v2919 = vpop.trf.xlu0
    %v2920 = vpop.trf.xlu0
    %v2921 = vpop.trf.xlu0
    %v2922 = vpop.trf.xlu0
    %v2923 = vpop.trf.xlu0
    %v2924 = vpop.trf.xlu0
    %v2925 = vpop.trf.xlu0
    %v2926 = vpop.trf.xlu0
    %v2927 = vpop.trf.xlu0
    %v2928 = vpop.trf.xlu0
    %2929 = vxpose.xlu0.b32.start [1/16] %v2830, 128
    %2930 = vxpose.xlu0.b32.cont [2/16] 0.0, 128
    %2931 = vxpose.xlu0.b32.cont [3/16] 0.0, 128
    %2932 = vxpose.xlu0.b32.cont [4/16] 0.0, 128
    %2933 = vxpose.xlu0.b32.cont [5/16] 0.0, 128
    %2934 = vxpose.xlu0.b32.cont [6/16] 0.0, 128
    %2935 = vxpose.xlu0.b32.cont [7/16] 0.0, 128
    %2936 = vxpose.xlu0.b32.cont [8/16] 0.0, 128
    %2937 = vxpose.xlu0.b32.cont [9/16] 0.0, 128
    %2938 = vxpose.xlu0.b32.cont [10/16] 0.0, 128
    %2939 = vxpose.xlu0.b32.cont [11/16] 0.0, 128
    %2940 = vxpose.xlu0.b32.cont [12/16] 0.0, 128
    %2941 = vxpose.xlu0.b32.cont [13/16] 0.0, 128
    %2942 = vxpose.xlu0.b32.cont [14/16] 0.0, 128
    %2943 = vxpose.xlu0.b32.cont [15/16] 0.0, 128
    %2944 = vxpose.xlu0.b32.end [16/16] 0.0, 128
    %v2945 = vpop.trf.xlu0
    %v2946 = vpop.trf.xlu0
    %v2947 = vpop.trf.xlu0
    %v2948 = vpop.trf.xlu0
    %v2949 = vpop.trf.xlu0
    %v2950 = vpop.trf.xlu0
    %v2951 = vpop.trf.xlu0
    %v2952 = vpop.trf.xlu0
    %v2953 = vpop.trf.xlu0
    %v2954 = vpop.trf.xlu0
    %v2955 = vpop.trf.xlu0
    %v2956 = vpop.trf.xlu0
    %v2957 = vpop.trf.xlu0
    %v2958 = vpop.trf.xlu0
    %v2959 = vpop.trf.xlu0
    %v2960 = vpop.trf.xlu0
    %2961 = vxpose.xlu0.b32.start [1/16] %v2849, 128
    %2962 = vxpose.xlu0.b32.cont [2/16] %v2881, 128
    %2963 = vxpose.xlu0.b32.cont [3/16] %v2913, 128
    %2964 = vxpose.xlu0.b32.cont [4/16] %v2945, 128
    %2965 = vxpose.xlu0.b32.cont [5/16] 0.0, 128
    %2966 = vxpose.xlu0.b32.cont [6/16] 0.0, 128
    %2967 = vxpose.xlu0.b32.cont [7/16] 0.0, 128
    %2968 = vxpose.xlu0.b32.cont [8/16] 0.0, 128
    %2969 = vxpose.xlu0.b32.cont [9/16] 0.0, 128
    %2970 = vxpose.xlu0.b32.cont [10/16] 0.0, 128
    %2971 = vxpose.xlu0.b32.cont [11/16] 0.0, 128
    %2972 = vxpose.xlu0.b32.cont [12/16] 0.0, 128
    %2973 = vxpose.xlu0.b32.cont [13/16] 0.0, 128
    %2974 = vxpose.xlu0.b32.cont [14/16] 0.0, 128
    %2975 = vxpose.xlu0.b32.cont [15/16] 0.0, 128
    %2976 = vxpose.xlu0.b32.end [16/16] 0.0, 128
    %v2977 = vpop.trf.xlu0
    %v2978 = vpop.trf.xlu0
    %v2979 = vpop.trf.xlu0
    %v2980 = vpop.trf.xlu0
    %v2981 = vpop.trf.xlu0
    %v2982 = vpop.trf.xlu0
    %v2983 = vpop.trf.xlu0
    %v2984 = vpop.trf.xlu0
    %v2985 = vpop.trf.xlu0
    %v2986 = vpop.trf.xlu0
    %v2987 = vpop.trf.xlu0
    %v2988 = vpop.trf.xlu0
    %v2989 = vpop.trf.xlu0
    %v2990 = vpop.trf.xlu0
    %v2991 = vpop.trf.xlu0
    %v2992 = vpop.trf.xlu0
    %2993 = vxpose.xlu0.b32.start [1/16] %v2203, 128
    %2994 = vxpose.xlu0.b32.cont [2/16] 0.0, 128
    %2995 = vxpose.xlu0.b32.cont [3/16] 0.0, 128
    %2996 = vxpose.xlu0.b32.cont [4/16] 0.0, 128
    %2997 = vxpose.xlu0.b32.cont [5/16] 0.0, 128
    %2998 = vxpose.xlu0.b32.cont [6/16] 0.0, 128
    %2999 = vxpose.xlu0.b32.cont [7/16] 0.0, 128
    %3000 = vxpose.xlu0.b32.cont [8/16] 0.0, 128
    %3001 = vxpose.xlu0.b32.cont [9/16] 0.0, 128
    %3002 = vxpose.xlu0.b32.cont [10/16] 0.0, 128
    %3003 = vxpose.xlu0.b32.cont [11/16] 0.0, 128
    %3004 = vxpose.xlu0.b32.cont [12/16] 0.0, 128
    %3005 = vxpose.xlu0.b32.cont [13/16] 0.0, 128
    %3006 = vxpose.xlu0.b32.cont [14/16] 0.0, 128
    %3007 = vxpose.xlu0.b32.cont [15/16] 0.0, 128
    %3008 = vxpose.xlu0.b32.end [16/16] 0.0, 128
    %v3009 = vpop.trf.xlu0
    %v3010 = vpop.trf.xlu0
    %v3011 = vpop.trf.xlu0
    %v3012 = vpop.trf.xlu0
    %v3013 = vpop.trf.xlu0
    %v3014 = vpop.trf.xlu0
    %v3015 = vpop.trf.xlu0
    %v3016 = vpop.trf.xlu0
    %v3017 = vpop.trf.xlu0
    %v3018 = vpop.trf.xlu0
    %v3019 = vpop.trf.xlu0
    %v3020 = vpop.trf.xlu0
    %v3021 = vpop.trf.xlu0
    %v3022 = vpop.trf.xlu0
    %v3023 = vpop.trf.xlu0
    %v3024 = vpop.trf.xlu0
    %3025 = vxpose.xlu0.b32.start [1/16] %v3009, 128
    %3026 = vxpose.xlu0.b32.cont [2/16] 0.0, 128
    %3027 = vxpose.xlu0.b32.cont [3/16] 0.0, 128
    %3028 = vxpose.xlu0.b32.cont [4/16] 0.0, 128
    %3029 = vxpose.xlu0.b32.cont [5/16] 0.0, 128
    %3030 = vxpose.xlu0.b32.cont [6/16] 0.0, 128
    %3031 = vxpose.xlu0.b32.cont [7/16] 0.0, 128
    %3032 = vxpose.xlu0.b32.cont [8/16] 0.0, 128
    %3033 = vxpose.xlu0.b32.cont [9/16] 0.0, 128
    %3034 = vxpose.xlu0.b32.cont [10/16] 0.0, 128
    %3035 = vxpose.xlu0.b32.cont [11/16] 0.0, 128
    %3036 = vxpose.xlu0.b32.cont [12/16] 0.0, 128
    %3037 = vxpose.xlu0.b32.cont [13/16] 0.0, 128
    %3038 = vxpose.xlu0.b32.cont [14/16] 0.0, 128
    %3039 = vxpose.xlu0.b32.cont [15/16] 0.0, 128
    %3040 = vxpose.xlu0.b32.end [16/16] 0.0, 128
    %v3041 = vpop.trf.xlu0
    %v3042 = vpop.trf.xlu0
    %v3043 = vpop.trf.xlu0
    %v3044 = vpop.trf.xlu0
    %v3045 = vpop.trf.xlu0
    %v3046 = vpop.trf.xlu0
    %v3047 = vpop.trf.xlu0
    %v3048 = vpop.trf.xlu0
    %v3049 = vpop.trf.xlu0
    %v3050 = vpop.trf.xlu0
    %v3051 = vpop.trf.xlu0
    %v3052 = vpop.trf.xlu0
    %v3053 = vpop.trf.xlu0
    %v3054 = vpop.trf.xlu0
    %v3055 = vpop.trf.xlu0
    %v3056 = vpop.trf.xlu0
    %3057 = vxpose.xlu0.b32.start [1/16] %v3010, 128
    %3058 = vxpose.xlu0.b32.cont [2/16] 0.0, 128
    %3059 = vxpose.xlu0.b32.cont [3/16] 0.0, 128
    %3060 = vxpose.xlu0.b32.cont [4/16] 0.0, 128
    %3061 = vxpose.xlu0.b32.cont [5/16] 0.0, 128
    %3062 = vxpose.xlu0.b32.cont [6/16] 0.0, 128
    %3063 = vxpose.xlu0.b32.cont [7/16] 0.0, 128
    %3064 = vxpose.xlu0.b32.cont [8/16] 0.0, 128
    %3065 = vxpose.xlu0.b32.cont [9/16] 0.0, 128
    %3066 = vxpose.xlu0.b32.cont [10/16] 0.0, 128
    %3067 = vxpose.xlu0.b32.cont [11/16] 0.0, 128
    %3068 = vxpose.xlu0.b32.cont [12/16] 0.0, 128
    %3069 = vxpose.xlu0.b32.cont [13/16] 0.0, 128
    %3070 = vxpose.xlu0.b32.cont [14/16] 0.0, 128
    %3071 = vxpose.xlu0.b32.cont [15/16] 0.0, 128
    %3072 = vxpose.xlu0.b32.end [16/16] 0.0, 128
    %v3073 = vpop.trf.xlu0
    %v3074 = vpop.trf.xlu0
    %v3075 = vpop.trf.xlu0
    %v3076 = vpop.trf.xlu0
    %v3077 = vpop.trf.xlu0
    %v3078 = vpop.trf.xlu0
    %v3079 = vpop.trf.xlu0
    %v3080 = vpop.trf.xlu0
    %v3081 = vpop.trf.xlu0
    %v3082 = vpop.trf.xlu0
    %v3083 = vpop.trf.xlu0
    %v3084 = vpop.trf.xlu0
    %v3085 = vpop.trf.xlu0
    %v3086 = vpop.trf.xlu0
    %v3087 = vpop.trf.xlu0
    %v3088 = vpop.trf.xlu0
    %3089 = vxpose.xlu0.b32.start [1/16] %v3011, 128
    %3090 = vxpose.xlu0.b32.cont [2/16] 0.0, 128
    %3091 = vxpose.xlu0.b32.cont [3/16] 0.0, 128
    %3092 = vxpose.xlu0.b32.cont [4/16] 0.0, 128
    %3093 = vxpose.xlu0.b32.cont [5/16] 0.0, 128
    %3094 = vxpose.xlu0.b32.cont [6/16] 0.0, 128
    %3095 = vxpose.xlu0.b32.cont [7/16] 0.0, 128
    %3096 = vxpose.xlu0.b32.cont [8/16] 0.0, 128
    %3097 = vxpose.xlu0.b32.cont [9/16] 0.0, 128
    %3098 = vxpose.xlu0.b32.cont [10/16] 0.0, 128
    %3099 = vxpose.xlu0.b32.cont [11/16] 0.0, 128
    %3100 = vxpose.xlu0.b32.cont [12/16] 0.0, 128
    %3101 = vxpose.xlu0.b32.cont [13/16] 0.0, 128
    %3102 = vxpose.xlu0.b32.cont [14/16] 0.0, 128
    %3103 = vxpose.xlu0.b32.cont [15/16] 0.0, 128
    %3104 = vxpose.xlu0.b32.end [16/16] 0.0, 128
    %v3105 = vpop.trf.xlu0
    %v3106 = vpop.trf.xlu0
    %v3107 = vpop.trf.xlu0
    %v3108 = vpop.trf.xlu0
    %v3109 = vpop.trf.xlu0
    %v3110 = vpop.trf.xlu0
    %v3111 = vpop.trf.xlu0
    %v3112 = vpop.trf.xlu0
    %v3113 = vpop.trf.xlu0
    %v3114 = vpop.trf.xlu0
    %v3115 = vpop.trf.xlu0
    %v3116 = vpop.trf.xlu0
    %v3117 = vpop.trf.xlu0
    %v3118 = vpop.trf.xlu0
    %v3119 = vpop.trf.xlu0
    %v3120 = vpop.trf.xlu0
    %3121 = vxpose.xlu0.b32.start [1/16] %v3012, 128
    %3122 = vxpose.xlu0.b32.cont [2/16] 0.0, 128
    %3123 = vxpose.xlu0.b32.cont [3/16] 0.0, 128
    %3124 = vxpose.xlu0.b32.cont [4/16] 0.0, 128
    %3125 = vxpose.xlu0.b32.cont [5/16] 0.0, 128
    %3126 = vxpose.xlu0.b32.cont [6/16] 0.0, 128
    %3127 = vxpose.xlu0.b32.cont [7/16] 0.0, 128
    %3128 = vxpose.xlu0.b32.cont [8/16] 0.0, 128
    %3129 = vxpose.xlu0.b32.cont [9/16] 0.0, 128
    %3130 = vxpose.xlu0.b32.cont [10/16] 0.0, 128
    %3131 = vxpose.xlu0.b32.cont [11/16] 0.0, 128
    %3132 = vxpose.xlu0.b32.cont [12/16] 0.0, 128
    %3133 = vxpose.xlu0.b32.cont [13/16] 0.0, 128
    %3134 = vxpose.xlu0.b32.cont [14/16] 0.0, 128
    %3135 = vxpose.xlu0.b32.cont [15/16] 0.0, 128
    %3136 = vxpose.xlu0.b32.end [16/16] 0.0, 128
    %v3137 = vpop.trf.xlu0
    %v3138 = vpop.trf.xlu0
    %v3139 = vpop.trf.xlu0
    %v3140 = vpop.trf.xlu0
    %v3141 = vpop.trf.xlu0
    %v3142 = vpop.trf.xlu0
    %v3143 = vpop.trf.xlu0
    %v3144 = vpop.trf.xlu0
    %v3145 = vpop.trf.xlu0
    %v3146 = vpop.trf.xlu0
    %v3147 = vpop.trf.xlu0
    %v3148 = vpop.trf.xlu0
    %v3149 = vpop.trf.xlu0
    %v3150 = vpop.trf.xlu0
    %v3151 = vpop.trf.xlu0
    %v3152 = vpop.trf.xlu0
    %v3153 = vpack.c.bf16 %v3041, %v3041
    %v3154 = vpack.c.bf16 %v3073, %v3073
    %v3155 = vpack.c.bf16 %v3105, %v3105
    %v3156 = vpack.c.bf16 %v3137, %v3137
    %3157 = vxpose.xlu0.b32.start [1/16] %v3013, 128
    %3158 = vxpose.xlu0.b32.cont [2/16] 0.0, 128
    %3159 = vxpose.xlu0.b32.cont [3/16] 0.0, 128
    %3160 = vxpose.xlu0.b32.cont [4/16] 0.0, 128
    %3161 = vxpose.xlu0.b32.cont [5/16] 0.0, 128
    %3162 = vxpose.xlu0.b32.cont [6/16] 0.0, 128
    %3163 = vxpose.xlu0.b32.cont [7/16] 0.0, 128
    %3164 = vxpose.xlu0.b32.cont [8/16] 0.0, 128
    %3165 = vxpose.xlu0.b32.cont [9/16] 0.0, 128
    %3166 = vxpose.xlu0.b32.cont [10/16] 0.0, 128
    %3167 = vxpose.xlu0.b32.cont [11/16] 0.0, 128
    %3168 = vxpose.xlu0.b32.cont [12/16] 0.0, 128
    %3169 = vxpose.xlu0.b32.cont [13/16] 0.0, 128
    %3170 = vxpose.xlu0.b32.cont [14/16] 0.0, 128
    %3171 = vxpose.xlu0.b32.cont [15/16] 0.0, 128
    %3172 = vxpose.xlu0.b32.end [16/16] 0.0, 128
    %v3173 = vpop.trf.xlu0
    %v3174 = vpop.trf.xlu0
    %v3175 = vpop.trf.xlu0
    %v3176 = vpop.trf.xlu0
    %v3177 = vpop.trf.xlu0
    %v3178 = vpop.trf.xlu0
    %v3179 = vpop.trf.xlu0
    %v3180 = vpop.trf.xlu0
    %v3181 = vpop.trf.xlu0
    %v3182 = vpop.trf.xlu0
    %v3183 = vpop.trf.xlu0
    %v3184 = vpop.trf.xlu0
    %v3185 = vpop.trf.xlu0
    %v3186 = vpop.trf.xlu0
    %v3187 = vpop.trf.xlu0
    %v3188 = vpop.trf.xlu0
    %3189 = vxpose.xlu0.b32.start [1/16] %v3014, 128
    %3190 = vxpose.xlu0.b32.cont [2/16] 0.0, 128
    %3191 = vxpose.xlu0.b32.cont [3/16] 0.0, 128
    %3192 = vxpose.xlu0.b32.cont [4/16] 0.0, 128
    %3193 = vxpose.xlu0.b32.cont [5/16] 0.0, 128
    %3194 = vxpose.xlu0.b32.cont [6/16] 0.0, 128
    %3195 = vxpose.xlu0.b32.cont [7/16] 0.0, 128
    %3196 = vxpose.xlu0.b32.cont [8/16] 0.0, 128
    %3197 = vxpose.xlu0.b32.cont [9/16] 0.0, 128
    %3198 = vxpose.xlu0.b32.cont [10/16] 0.0, 128
    %3199 = vxpose.xlu0.b32.cont [11/16] 0.0, 128
    %3200 = vxpose.xlu0.b32.cont [12/16] 0.0, 128
    %3201 = vxpose.xlu0.b32.cont [13/16] 0.0, 128
    %3202 = vxpose.xlu0.b32.cont [14/16] 0.0, 128
    %3203 = vxpose.xlu0.b32.cont [15/16] 0.0, 128
    %3204 = vxpose.xlu0.b32.end [16/16] 0.0, 128
    %v3205 = vpop.trf.xlu0
    %v3206 = vpop.trf.xlu0
    %v3207 = vpop.trf.xlu0
    %v3208 = vpop.trf.xlu0
    %v3209 = vpop.trf.xlu0
    %v3210 = vpop.trf.xlu0
    %v3211 = vpop.trf.xlu0
    %v3212 = vpop.trf.xlu0
    %v3213 = vpop.trf.xlu0
    %v3214 = vpop.trf.xlu0
    %v3215 = vpop.trf.xlu0
    %v3216 = vpop.trf.xlu0
    %v3217 = vpop.trf.xlu0
    %v3218 = vpop.trf.xlu0
    %v3219 = vpop.trf.xlu0
    %v3220 = vpop.trf.xlu0
    %3221 = vxpose.xlu0.b32.start [1/16] %v3015, 128
    %3222 = vxpose.xlu0.b32.cont [2/16] 0.0, 128
    %3223 = vxpose.xlu0.b32.cont [3/16] 0.0, 128
    %3224 = vxpose.xlu0.b32.cont [4/16] 0.0, 128
    %3225 = vxpose.xlu0.b32.cont [5/16] 0.0, 128
    %3226 = vxpose.xlu0.b32.cont [6/16] 0.0, 128
    %3227 = vxpose.xlu0.b32.cont [7/16] 0.0, 128
    %3228 = vxpose.xlu0.b32.cont [8/16] 0.0, 128
    %3229 = vxpose.xlu0.b32.cont [9/16] 0.0, 128
    %3230 = vxpose.xlu0.b32.cont [10/16] 0.0, 128
    %3231 = vxpose.xlu0.b32.cont [11/16] 0.0, 128
    %3232 = vxpose.xlu0.b32.cont [12/16] 0.0, 128
    %3233 = vxpose.xlu0.b32.cont [13/16] 0.0, 128
    %3234 = vxpose.xlu0.b32.cont [14/16] 0.0, 128
    %3235 = vxpose.xlu0.b32.cont [15/16] 0.0, 128
    %3236 = vxpose.xlu0.b32.end [16/16] 0.0, 128
    %v3237 = vpop.trf.xlu0
    %v3238 = vpop.trf.xlu0
    %v3239 = vpop.trf.xlu0
    %v3240 = vpop.trf.xlu0
    %v3241 = vpop.trf.xlu0
    %v3242 = vpop.trf.xlu0
    %v3243 = vpop.trf.xlu0
    %v3244 = vpop.trf.xlu0
    %v3245 = vpop.trf.xlu0
    %v3246 = vpop.trf.xlu0
    %v3247 = vpop.trf.xlu0
    %v3248 = vpop.trf.xlu0
    %v3249 = vpop.trf.xlu0
    %v3250 = vpop.trf.xlu0
    %v3251 = vpop.trf.xlu0
    %v3252 = vpop.trf.xlu0
    %3253 = vxpose.xlu0.b32.start [1/16] %v3016, 128
    %3254 = vxpose.xlu0.b32.cont [2/16] 0.0, 128
    %3255 = vxpose.xlu0.b32.cont [3/16] 0.0, 128
    %3256 = vxpose.xlu0.b32.cont [4/16] 0.0, 128
    %3257 = vxpose.xlu0.b32.cont [5/16] 0.0, 128
    %3258 = vxpose.xlu0.b32.cont [6/16] 0.0, 128
    %3259 = vxpose.xlu0.b32.cont [7/16] 0.0, 128
    %3260 = vxpose.xlu0.b32.cont [8/16] 0.0, 128
    %3261 = vxpose.xlu0.b32.cont [9/16] 0.0, 128
    %3262 = vxpose.xlu0.b32.cont [10/16] 0.0, 128
    %3263 = vxpose.xlu0.b32.cont [11/16] 0.0, 128
    %3264 = vxpose.xlu0.b32.cont [12/16] 0.0, 128
    %3265 = vxpose.xlu0.b32.cont [13/16] 0.0, 128
    %3266 = vxpose.xlu0.b32.cont [14/16] 0.0, 128
    %3267 = vxpose.xlu0.b32.cont [15/16] 0.0, 128
    %3268 = vxpose.xlu0.b32.end [16/16] 0.0, 128
    %v3269 = vpop.trf.xlu0
    %v3270 = vpop.trf.xlu0
    %v3271 = vpop.trf.xlu0
    %v3272 = vpop.trf.xlu0
    %v3273 = vpop.trf.xlu0
    %v3274 = vpop.trf.xlu0
    %v3275 = vpop.trf.xlu0
    %v3276 = vpop.trf.xlu0
    %v3277 = vpop.trf.xlu0
    %v3278 = vpop.trf.xlu0
    %v3279 = vpop.trf.xlu0
    %v3280 = vpop.trf.xlu0
    %v3281 = vpop.trf.xlu0
    %v3282 = vpop.trf.xlu0
    %v3283 = vpop.trf.xlu0
    %v3284 = vpop.trf.xlu0
    %v3285 = vpack.c.bf16 %v3173, %v3173
    %v3286 = vpack.c.bf16 %v3205, %v3205
    %v3287 = vpack.c.bf16 %v3237, %v3237
    %v3288 = vpack.c.bf16 %v3269, %v3269
    %3289 = vxpose.xlu0.b32.start [1/16] %v3017, 128
    %3290 = vxpose.xlu0.b32.cont [2/16] 0.0, 128
    %3291 = vxpose.xlu0.b32.cont [3/16] 0.0, 128
    %3292 = vxpose.xlu0.b32.cont [4/16] 0.0, 128
    %3293 = vxpose.xlu0.b32.cont [5/16] 0.0, 128
    %3294 = vxpose.xlu0.b32.cont [6/16] 0.0, 128
    %3295 = vxpose.xlu0.b32.cont [7/16] 0.0, 128
    %3296 = vxpose.xlu0.b32.cont [8/16] 0.0, 128
    %3297 = vxpose.xlu0.b32.cont [9/16] 0.0, 128
    %3298 = vxpose.xlu0.b32.cont [10/16] 0.0, 128
    %3299 = vxpose.xlu0.b32.cont [11/16] 0.0, 128
    %3300 = vxpose.xlu0.b32.cont [12/16] 0.0, 128
    %3301 = vxpose.xlu0.b32.cont [13/16] 0.0, 128
    %3302 = vxpose.xlu0.b32.cont [14/16] 0.0, 128
    %3303 = vxpose.xlu0.b32.cont [15/16] 0.0, 128
    %3304 = vxpose.xlu0.b32.end [16/16] 0.0, 128
    %v3305 = vpop.trf.xlu0
    %v3306 = vpop.trf.xlu0
    %v3307 = vpop.trf.xlu0
    %v3308 = vpop.trf.xlu0
    %v3309 = vpop.trf.xlu0
    %v3310 = vpop.trf.xlu0
    %v3311 = vpop.trf.xlu0
    %v3312 = vpop.trf.xlu0
    %v3313 = vpop.trf.xlu0
    %v3314 = vpop.trf.xlu0
    %v3315 = vpop.trf.xlu0
    %v3316 = vpop.trf.xlu0
    %v3317 = vpop.trf.xlu0
    %v3318 = vpop.trf.xlu0
    %v3319 = vpop.trf.xlu0
    %v3320 = vpop.trf.xlu0
    %3321 = vxpose.xlu0.b32.start [1/16] %v3018, 128
    %3322 = vxpose.xlu0.b32.cont [2/16] 0.0, 128
    %3323 = vxpose.xlu0.b32.cont [3/16] 0.0, 128
    %3324 = vxpose.xlu0.b32.cont [4/16] 0.0, 128
    %3325 = vxpose.xlu0.b32.cont [5/16] 0.0, 128
    %3326 = vxpose.xlu0.b32.cont [6/16] 0.0, 128
    %3327 = vxpose.xlu0.b32.cont [7/16] 0.0, 128
    %3328 = vxpose.xlu0.b32.cont [8/16] 0.0, 128
    %3329 = vxpose.xlu0.b32.cont [9/16] 0.0, 128
    %3330 = vxpose.xlu0.b32.cont [10/16] 0.0, 128
    %3331 = vxpose.xlu0.b32.cont [11/16] 0.0, 128
    %3332 = vxpose.xlu0.b32.cont [12/16] 0.0, 128
    %3333 = vxpose.xlu0.b32.cont [13/16] 0.0, 128
    %3334 = vxpose.xlu0.b32.cont [14/16] 0.0, 128
    %3335 = vxpose.xlu0.b32.cont [15/16] 0.0, 128
    %3336 = vxpose.xlu0.b32.end [16/16] 0.0, 128
    %v3337 = vpop.trf.xlu0
    %v3338 = vpop.trf.xlu0
    %v3339 = vpop.trf.xlu0
    %v3340 = vpop.trf.xlu0
    %v3341 = vpop.trf.xlu0
    %v3342 = vpop.trf.xlu0
    %v3343 = vpop.trf.xlu0
    %v3344 = vpop.trf.xlu0
    %v3345 = vpop.trf.xlu0
    %v3346 = vpop.trf.xlu0
    %v3347 = vpop.trf.xlu0
    %v3348 = vpop.trf.xlu0
    %v3349 = vpop.trf.xlu0
    %v3350 = vpop.trf.xlu0
    %v3351 = vpop.trf.xlu0
    %v3352 = vpop.trf.xlu0
    %3353 = vxpose.xlu0.b32.start [1/16] %v3019, 128
    %3354 = vxpose.xlu0.b32.cont [2/16] 0.0, 128
    %3355 = vxpose.xlu0.b32.cont [3/16] 0.0, 128
    %3356 = vxpose.xlu0.b32.cont [4/16] 0.0, 128
    %3357 = vxpose.xlu0.b32.cont [5/16] 0.0, 128
    %3358 = vxpose.xlu0.b32.cont [6/16] 0.0, 128
    %3359 = vxpose.xlu0.b32.cont [7/16] 0.0, 128
    %3360 = vxpose.xlu0.b32.cont [8/16] 0.0, 128
    %3361 = vxpose.xlu0.b32.cont [9/16] 0.0, 128
    %3362 = vxpose.xlu0.b32.cont [10/16] 0.0, 128
    %3363 = vxpose.xlu0.b32.cont [11/16] 0.0, 128
    %3364 = vxpose.xlu0.b32.cont [12/16] 0.0, 128
    %3365 = vxpose.xlu0.b32.cont [13/16] 0.0, 128
    %3366 = vxpose.xlu0.b32.cont [14/16] 0.0, 128
    %3367 = vxpose.xlu0.b32.cont [15/16] 0.0, 128
    %3368 = vxpose.xlu0.b32.end [16/16] 0.0, 128
    %v3369 = vpop.trf.xlu0
    %v3370 = vpop.trf.xlu0
    %v3371 = vpop.trf.xlu0
    %v3372 = vpop.trf.xlu0
    %v3373 = vpop.trf.xlu0
    %v3374 = vpop.trf.xlu0
    %v3375 = vpop.trf.xlu0
    %v3376 = vpop.trf.xlu0
    %v3377 = vpop.trf.xlu0
    %v3378 = vpop.trf.xlu0
    %v3379 = vpop.trf.xlu0
    %v3380 = vpop.trf.xlu0
    %v3381 = vpop.trf.xlu0
    %v3382 = vpop.trf.xlu0
    %v3383 = vpop.trf.xlu0
    %v3384 = vpop.trf.xlu0
    %3385 = vxpose.xlu0.b32.start [1/16] %v3020, 128
    %3386 = vxpose.xlu0.b32.cont [2/16] 0.0, 128
    %3387 = vxpose.xlu0.b32.cont [3/16] 0.0, 128
    %3388 = vxpose.xlu0.b32.cont [4/16] 0.0, 128
    %3389 = vxpose.xlu0.b32.cont [5/16] 0.0, 128
    %3390 = vxpose.xlu0.b32.cont [6/16] 0.0, 128
    %3391 = vxpose.xlu0.b32.cont [7/16] 0.0, 128
    %3392 = vxpose.xlu0.b32.cont [8/16] 0.0, 128
    %3393 = vxpose.xlu0.b32.cont [9/16] 0.0, 128
    %3394 = vxpose.xlu0.b32.cont [10/16] 0.0, 128
    %3395 = vxpose.xlu0.b32.cont [11/16] 0.0, 128
    %3396 = vxpose.xlu0.b32.cont [12/16] 0.0, 128
    %3397 = vxpose.xlu0.b32.cont [13/16] 0.0, 128
    %3398 = vxpose.xlu0.b32.cont [14/16] 0.0, 128
    %3399 = vxpose.xlu0.b32.cont [15/16] 0.0, 128
    %3400 = vxpose.xlu0.b32.end [16/16] 0.0, 128
    %v3401 = vpop.trf.xlu0
    %v3402 = vpop.trf.xlu0
    %v3403 = vpop.trf.xlu0
    %v3404 = vpop.trf.xlu0
    %v3405 = vpop.trf.xlu0
    %v3406 = vpop.trf.xlu0
    %v3407 = vpop.trf.xlu0
    %v3408 = vpop.trf.xlu0
    %v3409 = vpop.trf.xlu0
    %v3410 = vpop.trf.xlu0
    %v3411 = vpop.trf.xlu0
    %v3412 = vpop.trf.xlu0
    %v3413 = vpop.trf.xlu0
    %v3414 = vpop.trf.xlu0
    %v3415 = vpop.trf.xlu0
    %v3416 = vpop.trf.xlu0
    %v3417 = vpack.c.bf16 %v3305, %v3305
    %v3418 = vpack.c.bf16 %v3337, %v3337
    %v3419 = vpack.c.bf16 %v3369, %v3369
    %v3420 = vpack.c.bf16 %v3401, %v3401
    %v3422 = vsel %vm680, %v3153, 0
    %v3425 = vsel %vm680, %v3285, 0
    %3427 = vmatpush.bf16.xpose.msra.mxu0 0
    %3428 = vmatpush.bf16.xpose.msra.mxu0 0
    %3429 = vmatpush.bf16.xpose.msra.mxu0 0
    %3430 = vmatpush.bf16.xpose.msra.mxu0 0
    %3431 = vmatpush.bf16.xpose.msra.mxu0 0
    %3432 = vmatpush.bf16.xpose.msra.mxu0 0
    %3433 = vmatpush.bf16.xpose.msra.mxu0 0
    %3434 = vmatpush.bf16.xpose.msra.mxu0 %v3425
    %3435 = vmatmul.bf16.gmra.mxu0 %v3422
    %v3436 = vpop.f32.mrf.mxu0
    %v3437 = vadd.f32 0.0, %v3436
    %v3438 = vpop.f32.mrf.mxu0
    %3439 = vdwg.mxu0
    %v3441 = vsel %vm680, %v3154, 0
    %v3444 = vsel %vm680, %v3286, 0
    %3446 = vmatpush.bf16.xpose.msra.mxu0 0
    %3447 = vmatpush.bf16.xpose.msra.mxu0 0
    %3448 = vmatpush.bf16.xpose.msra.mxu0 0
    %3449 = vmatpush.bf16.xpose.msra.mxu0 0
    %3450 = vmatpush.bf16.xpose.msra.mxu0 0
    %3451 = vmatpush.bf16.xpose.msra.mxu0 0
    %3452 = vmatpush.bf16.xpose.msra.mxu0 0
    %3453 = vmatpush.bf16.xpose.msra.mxu0 %v3444
    %3454 = vmatmul.bf16.gmra.mxu0 %v3441
    %v3455 = vpop.f32.mrf.mxu0
    %v3456 = vadd.f32 0.0, %v3455
    %v3457 = vpop.f32.mrf.mxu0
    %3458 = vdwg.mxu0
    %v3460 = vsel %vm680, %v3155, 0
    %v3463 = vsel %vm680, %v3287, 0
    %3465 = vmatpush.bf16.xpose.msra.mxu0 0
    %3466 = vmatpush.bf16.xpose.msra.mxu0 0
    %3467 = vmatpush.bf16.xpose.msra.mxu0 0
    %3468 = vmatpush.bf16.xpose.msra.mxu0 0
    %3469 = vmatpush.bf16.xpose.msra.mxu0 0
    %3470 = vmatpush.bf16.xpose.msra.mxu0 0
    %3471 = vmatpush.bf16.xpose.msra.mxu0 0
    %3472 = vmatpush.bf16.xpose.msra.mxu0 %v3463
    %3473 = vmatmul.bf16.gmra.mxu0 %v3460
    %v3474 = vpop.f32.mrf.mxu0
    %v3475 = vadd.f32 0.0, %v3474
    %v3476 = vpop.f32.mrf.mxu0
    %3477 = vdwg.mxu0
    %v3479 = vsel %vm680, %v3156, 0
    %v3482 = vsel %vm680, %v3288, 0
    %3484 = vmatpush.bf16.xpose.msra.mxu0 0
    %3485 = vmatpush.bf16.xpose.msra.mxu0 0
    %3486 = vmatpush.bf16.xpose.msra.mxu0 0
    %3487 = vmatpush.bf16.xpose.msra.mxu0 0
    %3488 = vmatpush.bf16.xpose.msra.mxu0 0
    %3489 = vmatpush.bf16.xpose.msra.mxu0 0
    %3490 = vmatpush.bf16.xpose.msra.mxu0 0
    %3491 = vmatpush.bf16.xpose.msra.mxu0 %v3482
    %3492 = vmatmul.bf16.gmra.mxu0 %v3479
    %v3493 = vpop.f32.mrf.mxu0
    %v3494 = vadd.f32 0.0, %v3493
    %v3495 = vpop.f32.mrf.mxu0
    %3496 = vdwg.mxu0
    %v3497 = vsel %vm680, %v3437, -inf
    %3498 = vmax.xlane.f32.xlu0 %v3497
    %v3499 = vpop.xlane.xlu0 %3498
    %v3500 = vsel %vm680, %v3456, -inf
    %3501 = vmax.xlane.f32.xlu0 %v3500
    %v3502 = vpop.xlane.xlu0 %3501
    %v3503 = vsel %vm680, %v3475, -inf
    %3504 = vmax.xlane.f32.xlu0 %v3503
    %v3505 = vpop.xlane.xlu0 %3504
    %v3506 = vsel %vm680, %v3494, -inf
    %3507 = vmax.xlane.f32.xlu0 %v3506
    %v3508 = vpop.xlane.xlu0 %3507
    %v3509 = vsub.f32 %v3437, %v3499
    %v3510 = vsub.f32 %v3456, %v3502
    %v3511 = vsub.f32 %v3475, %v3505
    %v3512 = vsub.f32 %v3494, %v3508
    %v3513 = vmul.f32 %v3509, 1.442695
    %v3514 = vpow.pop %v3513
    %v3515 = vmul.f32 %v3510, 1.442695
    %v3516 = vpow.pop %v3515
    %v3517 = vmul.f32 %v3511, 1.442695
    %v3518 = vpow.pop %v3517
    %v3519 = vmul.f32 %v3512, 1.442695
    %v3520 = vpow.pop %v3519
    %v3521 = vsel %vm680, %v3514, 0.0
    %3522 = vadd.xlane.f32.xlu0 %v3521
    %v3523 = vpop.xlane.xlu0 %3522
    %v3524 = vsel %vm680, %v3516, 0.0
    %3525 = vadd.xlane.f32.xlu0 %v3524
    %v3526 = vpop.xlane.xlu0 %3525
    %v3527 = vsel %vm680, %v3518, 0.0
    %3528 = vadd.xlane.f32.xlu0 %v3527
    %v3529 = vpop.xlane.xlu0 %3528
    %v3530 = vsel %vm680, %v3520, 0.0
    %3531 = vadd.xlane.f32.xlu0 %v3530
    %v3532 = vpop.xlane.xlu0 %3531
    %v3533 = vrcp.pop %v3523
    %v3534 = vrcp.pop %v3526
    %v3535 = vrcp.pop %v3529
    %v3536 = vrcp.pop %v3532
    %v3537 = vmul.f32 %v3514, %v3533
    %v3538 = vmul.f32 %v3516, %v3534
    %v3539 = vmul.f32 %v3518, %v3535
    %v3540 = vmul.f32 %v3520, %v3536
    %v3541 = vpack.c.bf16 %v3537, %v3537
    %v3542 = vpack.c.bf16 %v3538, %v3538
    %v3543 = vpack.c.bf16 %v3539, %v3539
    %v3544 = vpack.c.bf16 %v3540, %v3540
    %v3546 = vsel %vm680, %v3541, 0
    %v3549 = vsel %vm808, %v3417, 0
    %3551 = vmatpush.bf16.msra.mxu0 0
    %3552 = vmatpush.bf16.msra.mxu0 0
    %3553 = vmatpush.bf16.msra.mxu0 0
    %3554 = vmatpush.bf16.msra.mxu0 0
    %3555 = vmatpush.bf16.msra.mxu0 0
    %3556 = vmatpush.bf16.msra.mxu0 0
    %3557 = vmatpush.bf16.msra.mxu0 0
    %3558 = vmatpush.bf16.msra.mxu0 %v3549
    %3559 = vmatmul.bf16.gmra.mxu0 %v3546
    %v3560 = vpop.f32.mrf.mxu0
    %v3561 = vadd.f32 0.0, %v3560
    %v3562 = vpop.f32.mrf.mxu0
    %3563 = vdwg.mxu0
    %v3565 = vsel %vm680, %v3542, 0
    %v3568 = vsel %vm808, %v3418, 0
    %3570 = vmatpush.bf16.msra.mxu0 0
    %3571 = vmatpush.bf16.msra.mxu0 0
    %3572 = vmatpush.bf16.msra.mxu0 0
    %3573 = vmatpush.bf16.msra.mxu0 0
    %3574 = vmatpush.bf16.msra.mxu0 0
    %3575 = vmatpush.bf16.msra.mxu0 0
    %3576 = vmatpush.bf16.msra.mxu0 0
    %3577 = vmatpush.bf16.msra.mxu0 %v3568
    %3578 = vmatmul.bf16.gmra.mxu0 %v3565
    %v3579 = vpop.f32.mrf.mxu0
    %v3580 = vadd.f32 0.0, %v3579
    %v3581 = vpop.f32.mrf.mxu0
    %3582 = vdwg.mxu0
    %v3584 = vsel %vm680, %v3543, 0
    %v3587 = vsel %vm808, %v3419, 0
    %3589 = vmatpush.bf16.msra.mxu0 0
    %3590 = vmatpush.bf16.msra.mxu0 0
    %3591 = vmatpush.bf16.msra.mxu0 0
    %3592 = vmatpush.bf16.msra.mxu0 0
    %3593 = vmatpush.bf16.msra.mxu0 0
    %3594 = vmatpush.bf16.msra.mxu0 0
    %3595 = vmatpush.bf16.msra.mxu0 0
    %3596 = vmatpush.bf16.msra.mxu0 %v3587
    %3597 = vmatmul.bf16.gmra.mxu0 %v3584
    %v3598 = vpop.f32.mrf.mxu0
    %v3599 = vadd.f32 0.0, %v3598
    %v3600 = vpop.f32.mrf.mxu0
    %3601 = vdwg.mxu0
    %v3603 = vsel %vm680, %v3544, 0
    %v3606 = vsel %vm808, %v3420, 0
    %3608 = vmatpush.bf16.msra.mxu0 0
    %3609 = vmatpush.bf16.msra.mxu0 0
    %3610 = vmatpush.bf16.msra.mxu0 0
    %3611 = vmatpush.bf16.msra.mxu0 0
    %3612 = vmatpush.bf16.msra.mxu0 0
    %3613 = vmatpush.bf16.msra.mxu0 0
    %3614 = vmatpush.bf16.msra.mxu0 0
    %3615 = vmatpush.bf16.msra.mxu0 %v3606
    %3616 = vmatmul.bf16.gmra.mxu0 %v3603
    %v3617 = vpop.f32.mrf.mxu0
    %v3618 = vadd.f32 0.0, %v3617
    %v3619 = vpop.f32.mrf.mxu0
    %3620 = vdwg.mxu0
    %3621 = vxpose.xlu0.b32.start [1/16] %v3561, 128
    %3622 = vxpose.xlu0.b32.cont [2/16] 0.0, 128
    %3623 = vxpose.xlu0.b32.cont [3/16] 0.0, 128
    %3624 = vxpose.xlu0.b32.cont [4/16] 0.0, 128
    %3625 = vxpose.xlu0.b32.cont [5/16] 0.0, 128
    %3626 = vxpose.xlu0.b32.cont [6/16] 0.0, 128
    %3627 = vxpose.xlu0.b32.cont [7/16] 0.0, 128
    %3628 = vxpose.xlu0.b32.cont [8/16] 0.0, 128
    %3629 = vxpose.xlu0.b32.cont [9/16] 0.0, 128
    %3630 = vxpose.xlu0.b32.cont [10/16] 0.0, 128
    %3631 = vxpose.xlu0.b32.cont [11/16] 0.0, 128
    %3632 = vxpose.xlu0.b32.cont [12/16] 0.0, 128
    %3633 = vxpose.xlu0.b32.cont [13/16] 0.0, 128
    %3634 = vxpose.xlu0.b32.cont [14/16] 0.0, 128
    %3635 = vxpose.xlu0.b32.cont [15/16] 0.0, 128
    %3636 = vxpose.xlu0.b32.end [16/16] 0.0, 128
    %v3637 = vpop.trf.xlu0
    %v3638 = vpop.trf.xlu0
    %v3639 = vpop.trf.xlu0
    %v3640 = vpop.trf.xlu0
    %v3641 = vpop.trf.xlu0
    %v3642 = vpop.trf.xlu0
    %v3643 = vpop.trf.xlu0
    %v3644 = vpop.trf.xlu0
    %v3645 = vpop.trf.xlu0
    %v3646 = vpop.trf.xlu0
    %v3647 = vpop.trf.xlu0
    %v3648 = vpop.trf.xlu0
    %v3649 = vpop.trf.xlu0
    %v3650 = vpop.trf.xlu0
    %v3651 = vpop.trf.xlu0
    %v3652 = vpop.trf.xlu0
    %3653 = vxpose.xlu0.b32.start [1/16] %v3580, 128
    %3654 = vxpose.xlu0.b32.cont [2/16] 0.0, 128
    %3655 = vxpose.xlu0.b32.cont [3/16] 0.0, 128
    %3656 = vxpose.xlu0.b32.cont [4/16] 0.0, 128
    %3657 = vxpose.xlu0.b32.cont [5/16] 0.0, 128
    %3658 = vxpose.xlu0.b32.cont [6/16] 0.0, 128
    %3659 = vxpose.xlu0.b32.cont [7/16] 0.0, 128
    %3660 = vxpose.xlu0.b32.cont [8/16] 0.0, 128
    %3661 = vxpose.xlu0.b32.cont [9/16] 0.0, 128
    %3662 = vxpose.xlu0.b32.cont [10/16] 0.0, 128
    %3663 = vxpose.xlu0.b32.cont [11/16] 0.0, 128
    %3664 = vxpose.xlu0.b32.cont [12/16] 0.0, 128
    %3665 = vxpose.xlu0.b32.cont [13/16] 0.0, 128
    %3666 = vxpose.xlu0.b32.cont [14/16] 0.0, 128
    %3667 = vxpose.xlu0.b32.cont [15/16] 0.0, 128
    %3668 = vxpose.xlu0.b32.end [16/16] 0.0, 128
    %v3669 = vpop.trf.xlu0
    %v3670 = vpop.trf.xlu0
    %v3671 = vpop.trf.xlu0
    %v3672 = vpop.trf.xlu0
    %v3673 = vpop.trf.xlu0
    %v3674 = vpop.trf.xlu0
    %v3675 = vpop.trf.xlu0
    %v3676 = vpop.trf.xlu0
    %v3677 = vpop.trf.xlu0
    %v3678 = vpop.trf.xlu0
    %v3679 = vpop.trf.xlu0
    %v3680 = vpop.trf.xlu0
    %v3681 = vpop.trf.xlu0
    %v3682 = vpop.trf.xlu0
    %v3683 = vpop.trf.xlu0
    %v3684 = vpop.trf.xlu0
    %3685 = vxpose.xlu0.b32.start [1/16] %v3599, 128
    %3686 = vxpose.xlu0.b32.cont [2/16] 0.0, 128
    %3687 = vxpose.xlu0.b32.cont [3/16] 0.0, 128
    %3688 = vxpose.xlu0.b32.cont [4/16] 0.0, 128
    %3689 = vxpose.xlu0.b32.cont [5/16] 0.0, 128
    %3690 = vxpose.xlu0.b32.cont [6/16] 0.0, 128
    %3691 = vxpose.xlu0.b32.cont [7/16] 0.0, 128
    %3692 = vxpose.xlu0.b32.cont [8/16] 0.0, 128
    %3693 = vxpose.xlu0.b32.cont [9/16] 0.0, 128
    %3694 = vxpose.xlu0.b32.cont [10/16] 0.0, 128
    %3695 = vxpose.xlu0.b32.cont [11/16] 0.0, 128
    %3696 = vxpose.xlu0.b32.cont [12/16] 0.0, 128
    %3697 = vxpose.xlu0.b32.cont [13/16] 0.0, 128
    %3698 = vxpose.xlu0.b32.cont [14/16] 0.0, 128
    %3699 = vxpose.xlu0.b32.cont [15/16] 0.0, 128
    %3700 = vxpose.xlu0.b32.end [16/16] 0.0, 128
    %v3701 = vpop.trf.xlu0
    %v3702 = vpop.trf.xlu0
    %v3703 = vpop.trf.xlu0
    %v3704 = vpop.trf.xlu0
    %v3705 = vpop.trf.xlu0
    %v3706 = vpop.trf.xlu0
    %v3707 = vpop.trf.xlu0
    %v3708 = vpop.trf.xlu0
    %v3709 = vpop.trf.xlu0
    %v3710 = vpop.trf.xlu0
    %v3711 = vpop.trf.xlu0
    %v3712 = vpop.trf.xlu0
    %v3713 = vpop.trf.xlu0
    %v3714 = vpop.trf.xlu0
    %v3715 = vpop.trf.xlu0
    %v3716 = vpop.trf.xlu0
    %3717 = vxpose.xlu0.b32.start [1/16] %v3618, 128
    %3718 = vxpose.xlu0.b32.cont [2/16] 0.0, 128
    %3719 = vxpose.xlu0.b32.cont [3/16] 0.0, 128
    %3720 = vxpose.xlu0.b32.cont [4/16] 0.0, 128
    %3721 = vxpose.xlu0.b32.cont [5/16] 0.0, 128
    %3722 = vxpose.xlu0.b32.cont [6/16] 0.0, 128
    %3723 = vxpose.xlu0.b32.cont [7/16] 0.0, 128
    %3724 = vxpose.xlu0.b32.cont [8/16] 0.0, 128
    %3725 = vxpose.xlu0.b32.cont [9/16] 0.0, 128
    %3726 = vxpose.xlu0.b32.cont [10/16] 0.0, 128
    %3727 = vxpose.xlu0.b32.cont [11/16] 0.0, 128
    %3728 = vxpose.xlu0.b32.cont [12/16] 0.0, 128
    %3729 = vxpose.xlu0.b32.cont [13/16] 0.0, 128
    %3730 = vxpose.xlu0.b32.cont [14/16] 0.0, 128
    %3731 = vxpose.xlu0.b32.cont [15/16] 0.0, 128
    %3732 = vxpose.xlu0.b32.end [16/16] 0.0, 128
    %v3733 = vpop.trf.xlu0
    %v3734 = vpop.trf.xlu0
    %v3735 = vpop.trf.xlu0
    %v3736 = vpop.trf.xlu0
    %v3737 = vpop.trf.xlu0
    %v3738 = vpop.trf.xlu0
    %v3739 = vpop.trf.xlu0
    %v3740 = vpop.trf.xlu0
    %v3741 = vpop.trf.xlu0
    %v3742 = vpop.trf.xlu0
    %v3743 = vpop.trf.xlu0
    %v3744 = vpop.trf.xlu0
    %v3745 = vpop.trf.xlu0
    %v3746 = vpop.trf.xlu0
    %v3747 = vpop.trf.xlu0
    %v3748 = vpop.trf.xlu0
    %3749 = vxpose.xlu0.b32.start [1/16] %v3637, 128
    %3750 = vxpose.xlu0.b32.cont [2/16] %v3669, 128
    %3751 = vxpose.xlu0.b32.cont [3/16] %v3701, 128
    %3752 = vxpose.xlu0.b32.cont [4/16] %v3733, 128
    %3753 = vxpose.xlu0.b32.cont [5/16] 0.0, 128
    %3754 = vxpose.xlu0.b32.cont [6/16] 0.0, 128
    %3755 = vxpose.xlu0.b32.cont [7/16] 0.0, 128
    %3756 = vxpose.xlu0.b32.cont [8/16] 0.0, 128
    %3757 = vxpose.xlu0.b32.cont [9/16] 0.0, 128
    %3758 = vxpose.xlu0.b32.cont [10/16] 0.0, 128
    %3759 = vxpose.xlu0.b32.cont [11/16] 0.0, 128
    %3760 = vxpose.xlu0.b32.cont [12/16] 0.0, 128
    %3761 = vxpose.xlu0.b32.cont [13/16] 0.0, 128
    %3762 = vxpose.xlu0.b32.cont [14/16] 0.0, 128
    %3763 = vxpose.xlu0.b32.cont [15/16] 0.0, 128
    %3764 = vxpose.xlu0.b32.end [16/16] 0.0, 128
    %v3765 = vpop.trf.xlu0
    %v3766 = vpop.trf.xlu0
    %v3767 = vpop.trf.xlu0
    %v3768 = vpop.trf.xlu0
    %v3769 = vpop.trf.xlu0
    %v3770 = vpop.trf.xlu0
    %v3771 = vpop.trf.xlu0
    %v3772 = vpop.trf.xlu0
    %v3773 = vpop.trf.xlu0
    %v3774 = vpop.trf.xlu0
    %v3775 = vpop.trf.xlu0
    %v3776 = vpop.trf.xlu0
    %v3777 = vpop.trf.xlu0
    %v3778 = vpop.trf.xlu0
    %v3779 = vpop.trf.xlu0
    %v3780 = vpop.trf.xlu0
    %v3781 = vpack.c.bf16 %v3765, %v2977
    %s3782 = scalar_lea.vmem %s7, 16
    %v3783 = vld [vmem:[%s3782] sm:$0xf]
    %v3784 = vld [vmem:[%s3782 + $0x4] sm:$0xf]
    %v3785 = vld [vmem:[%s3782 + $0x8] sm:$0xf]
    %v3786 = vld [vmem:[%s3782 + $0xc] sm:$0xf]
    %s3787 = scalar_lea.vmem %s8, 1
    %v3788 = vld [vmem:[%s3787] sm:$0x1]
    %v3790 = vperm.slane %v3788, 0
    %v3796 = vunpack.c.l.b16 %v3783
    %v3797 = vunpack.c.l.b16 %v3784
    %v3798 = vunpack.c.l.b16 %v3785
    %v3799 = vunpack.c.l.b16 %v3786
    %v3800 = vpack.c.b16 %v3797, %v3796
    %v3801 = vpack.c.b16 %v3799, %v3798
    %v3805 = vsel %vm152, %v3781, 0
    %3807 = vmatpush.bf16.msra.mxu0 0
    %3808 = vmatpush.bf16.msra.mxu0 0
    %3809 = vmatpush.bf16.msra.mxu0 0
    %3810 = vmatpush.bf16.msra.mxu0 0
    %3811 = vmatpush.bf16.msra.mxu0 0
    %3812 = vmatpush.bf16.msra.mxu0 0
    %3813 = vmatpush.bf16.msra.mxu0 %v3801
    %3814 = vmatpush.bf16.msra.mxu0 %v3800
    %3815 = vmatmul.bf16.gmra.mxu0 %v3805
    %v3816 = vpop.f32.mrf.mxu0
    %v3817 = vadd.f32 %v3790, %v3816
    %v3818 = vpop.f32.mrf.mxu0
    %v3819 = vadd.f32 %v3790, %v3818
    %3820 = vdwg.mxu0
    %v3821 = vadd.f32 %v3817, %v2163
    %v3822 = vadd.f32 %v3819, %v2164
    %s3823 = scalar_lea.vmem %s9, 1
    %v3824 = vld [vmem:[%s3823] sm:$0x1]
    %s3825 = scalar_lea.vmem %s10, 1
    %v3826 = vld [vmem:[%s3825] sm:$0x1]
    %v3827 = vsel %vm152, %v3821, 0.0
    %3828 = vadd.xlane.f32.xlu0 %v3827
    %v3829 = vpop.xlane.xlu0 %3828
    %v3830 = vsel %vm152, %v3822, 0.0
    %3831 = vadd.xlane.f32.xlu0 %v3830
    %v3832 = vpop.xlane.xlu0 %3831
    %v3833 = vmul.f32 %v3829, %v165
    %v3834 = vmul.f32 %v3832, %v165
    %v3835 = vsub.f32 %v3821, %v3833
    %v3836 = vsub.f32 %v3822, %v3834
    %v3837 = vmul.f32 %v3835, %v3835
    %v3838 = vmul.f32 %v3836, %v3836
    %v3839 = vsel %vm152, %v3837, 0.0
    %3840 = vadd.xlane.f32.xlu0 %v3839
    %v3841 = vpop.xlane.xlu0 %3840
    %v3842 = vsel %vm152, %v3838, 0.0
    %3843 = vadd.xlane.f32.xlu0 %v3842
    %v3844 = vpop.xlane.xlu0 %3843
    %v3845 = vmul.f32 %v3841, %v165
    %v3846 = vmul.f32 %v3844, %v165
    %v3847 = vadd.f32 %v3845, 1e-12
    %v3848 = vadd.f32 %v3846, 1e-12
    %v3849 = vrsqrt.pop %v3847
    %v3850 = vmul.f32 %v3849, %v3847
    %v3851 = vmul.f32 %v3850, %v3849
    %v3852 = vmul.f32 0.5, %v3851
    %v3853 = vsub.f32 1.5, %v3852
    %v3854 = vmul.f32 %v3849, %v3853
    %vm3855 = vweird.f32 %v3847
    %vm3856 = vweird.f32 %v3849
    %vm3857 = vmor %vm3855, %vm3856
    %v3858 = vsel %vm3857, %v3849, %v3854
    %v3859 = vrsqrt.pop %v3848
    %v3860 = vmul.f32 %v3859, %v3848
    %v3861 = vmul.f32 %v3860, %v3859
    %v3862 = vmul.f32 0.5, %v3861
    %v3863 = vsub.f32 1.5, %v3862
    %v3864 = vmul.f32 %v3859, %v3863
    %vm3865 = vweird.f32 %v3848
    %vm3866 = vweird.f32 %v3859
    %vm3867 = vmor %vm3865, %vm3866
    %v3868 = vsel %vm3867, %v3859, %v3864
    %v3869 = vmul.f32 %v3835, %v3858
    %v3870 = vmul.f32 %v3836, %v3868
    %v3872 = vperm.slane %v3824, 0
    %v3874 = vmul.f32 %v3869, %v3872
    %v3875 = vmul.f32 %v3870, %v3872
    %v3877 = vperm.slane %v3826, 0
    %v3879 = vadd.f32 %v3874, %v3877
    %v3880 = vadd.f32 %v3875, %v3877
    %v3881 = vpack.c.bf16 %v3880, %v3879
    %s3882 = scalar_lea.vmem %s11, 16
    %v3883 = vld [vmem:[%s3882] sm:$0xf]
    %v3884 = vld [vmem:[%s3882 + $0x4] sm:$0xf]
    %v3885 = vld [vmem:[%s3882 + $0x8] sm:$0xf]
    %v3886 = vld [vmem:[%s3882 + $0xc] sm:$0xf]
    %s3887 = scalar_lea.vmem %s12, 1
    %v3888 = vld [vmem:[%s3887] sm:$0x1]
    %v3890 = vperm.slane %v3888, 0
    %v3896 = vunpack.c.l.b16 %v3883
    %v3897 = vunpack.c.l.b16 %v3884
    %v3898 = vunpack.c.l.b16 %v3885
    %v3899 = vunpack.c.l.b16 %v3886
    %v3900 = vpack.c.b16 %v3897, %v3896
    %v3901 = vpack.c.b16 %v3899, %v3898
    %v3905 = vsel %vm152, %v3881, 0
    %3907 = vmatpush.bf16.msra.mxu0 0
    %3908 = vmatpush.bf16.msra.mxu0 0
    %3909 = vmatpush.bf16.msra.mxu0 0
    %3910 = vmatpush.bf16.msra.mxu0 0
    %3911 = vmatpush.bf16.msra.mxu0 0
    %3912 = vmatpush.bf16.msra.mxu0 0
    %3913 = vmatpush.bf16.msra.mxu0 %v3901
    %3914 = vmatpush.bf16.msra.mxu0 %v3900
    %3915 = vmatmul.bf16.gmra.mxu0 %v3905
    %v3916 = vpop.f32.mrf.mxu0
    %v3917 = vadd.f32 %v3890, %v3916
    %v3918 = vpop.f32.mrf.mxu0
    %v3919 = vadd.f32 %v3890, %v3918
    %3920 = vdwg.mxu0
    %v3921 = vmul.f32 %v3917, 0.5
    %v3922 = vmul.f32 %v3919, 0.5
    %v3923 = vmul.f32 %v3917, 0.70710677
    %v3924 = vmul.f32 %v3919, 0.70710677
    %v3925 = vmul.f32 %v3923, %v3923
    %v3926 = vmin.f32 16.0, %v3925
    %v3927 = vmul.f32 %v3926, 2.1237322e-06
    %v3928 = vadd.f32 %v3927, 0.00028619796
    %v3929 = vmul.f32 %v3926, %v3928
    %v3930 = vadd.f32 %v3929, 0.0036580483
    %v3931 = vmul.f32 %v3926, %v3930
    %v3932 = vadd.f32 %v3931, 0.05243302
    %v3933 = vmul.f32 %v3926, %v3932
    %v3934 = vadd.f32 %v3933, 0.18741608
    %v3935 = vmul.f32 %v3926, %v3934
    %v3936 = vadd.f32 %v3935, 1.1283791
    %v3937 = vmul.f32 %v3923, %v3936
    %v3938 = vmul.f32 %v3926, 3.8918573e-05
    %v3939 = vadd.f32 %v3938, 0.001143296
    %v3940 = vmul.f32 %v3926, %v3939
    %v3941 = vadd.f32 %v3940, 0.014752088
    %v3942 = vmul.f32 %v3926, %v3941
    %v3943 = vadd.f32 %v3942, 0.112945676
    %v3944 = vmul.f32 %v3926, %v3943
    %v3945 = vadd.f32 %v3944, 0.4994258
    %v3946 = vmul.f32 %v3926, %v3945
    %v3947 = vadd.f32 %v3946, 1.0
    %v3948 = vrcp.pop %v3947
    %v3949 = vmul.f32 %v3947, %v3948
    %v3950 = vsub.f32 1.0, %v3949
    %v3951 = vmul.f32 %v3948, %v3950
    %v3952 = vadd.f32 %v3948, %v3951
    %vm3953 = vweird.f32 %v3947
    %vm3954 = vweird.f32 %v3948
    %vm3955 = vmor %vm3953, %vm3954
    %v3956 = vsel %vm3955, %v3948, %v3952
    %v3957 = vand.u32 2147483647, %v3947
    %vm3958 = vcmp.eq.f32.partialorder %v3957, 8.507059e+37
    %v3959 = vand.u32 %v3947, 2147483648
    %v3960 = vor.u32 1.1754944e-38, %v3959
    %v3961 = vsel %vm3958, %v3960, %v3956
    %v3962 = vmul.f32 %v3937, %v3961
    %v3963 = vmin.f32 %v3962, 1.0
    %v3964 = vmax.f32 %v3963, -1.0
    %v3965 = vmul.f32 %v3924, %v3924
    %v3966 = vmin.f32 16.0, %v3965
    %v3967 = vmul.f32 %v3966, 2.1237322e-06
    %v3968 = vadd.f32 %v3967, 0.00028619796
    %v3969 = vmul.f32 %v3966, %v3968
    %v3970 = vadd.f32 %v3969, 0.0036580483
    %v3971 = vmul.f32 %v3966, %v3970
    %v3972 = vadd.f32 %v3971, 0.05243302
    %v3973 = vmul.f32 %v3966, %v3972
    %v3974 = vadd.f32 %v3973, 0.18741608
    %v3975 = vmul.f32 %v3966, %v3974
    %v3976 = vadd.f32 %v3975, 1.1283791
    %v3977 = vmul.f32 %v3924, %v3976
    %v3978 = vmul.f32 %v3966, 3.8918573e-05
    %v3979 = vadd.f32 %v3978, 0.001143296
    %v3980 = vmul.f32 %v3966, %v3979
    %v3981 = vadd.f32 %v3980, 0.014752088
    %v3982 = vmul.f32 %v3966, %v3981
    %v3983 = vadd.f32 %v3982, 0.112945676
    %v3984 = vmul.f32 %v3966, %v3983
    %v3985 = vadd.f32 %v3984, 0.4994258
    %v3986 = vmul.f32 %v3966, %v3985
    %v3987 = vadd.f32 %v3986, 1.0
    %v3988 = vrcp.pop %v3987
    %v3989 = vmul.f32 %v3987, %v3988
    %v3990 = vsub.f32 1.0, %v3989
    %v3991 = vmul.f32 %v3988, %v3990
    %v3992 = vadd.f32 %v3988, %v3991
    %vm3993 = vweird.f32 %v3987
    %vm3994 = vweird.f32 %v3988
    %vm3995 = vmor %vm3993, %vm3994
    %v3996 = vsel %vm3995, %v3988, %v3992
    %v3997 = vand.u32 2147483647, %v3987
    %vm3998 = vcmp.eq.f32.partialorder %v3997, 8.507059e+37
    %v3999 = vand.u32 %v3987, 2147483648
    %v4000 = vor.u32 1.1754944e-38, %v3999
    %v4001 = vsel %vm3998, %v4000, %v3996
    %v4002 = vmul.f32 %v3977, %v4001
    %v4003 = vmin.f32 %v4002, 1.0
    %v4004 = vmax.f32 %v4003, -1.0
    %v4005 = vadd.f32 %v3964, 1.0
    %v4006 = vadd.f32 %v4004, 1.0
    %v4007 = vmul.f32 %v3921, %v4005
    %v4008 = vmul.f32 %v3922, %v4006
    %v4009 = vpack.c.bf16 %v4008, %v4007
    %s4010 = scalar_lea.vmem %s13, 32
    %v4011 = vld [vmem:[%s4010] sm:$0xf]
    %v4012 = vld [vmem:[%s4010 + $0x4] sm:$0xf]
    %v4013 = vld [vmem:[%s4010 + $0x8] sm:$0xf]
    %v4014 = vld [vmem:[%s4010 + $0xc] sm:$0xf]
    %v4015 = vld [vmem:[%s4010 + $0x10] sm:$0xf]
    %v4016 = vld [vmem:[%s4010 + $0x14] sm:$0xf]
    %v4017 = vld [vmem:[%s4010 + $0x18] sm:$0xf]
    %v4018 = vld [vmem:[%s4010 + $0x1c] sm:$0xf]
    %s4019 = scalar_lea.vmem %s14, 1
    %v4020 = vld [vmem:[%s4019] sm:$0x1]
    %v4022 = vperm.slane %v4020, 0
    %v4032 = vunpack.c.l.b16 %v4011
    %v4033 = vunpack.c.l.b16 %v4012
    %v4034 = vunpack.c.l.b16 %v4013
    %v4035 = vunpack.c.l.b16 %v4014
    %v4036 = vunpack.c.l.b16 %v4015
    %v4037 = vunpack.c.l.b16 %v4016
    %v4038 = vunpack.c.l.b16 %v4017
    %v4039 = vunpack.c.l.b16 %v4018
    %v4040 = vpack.c.b16 %v4033, %v4032
    %v4041 = vpack.c.b16 %v4035, %v4034
    %v4042 = vpack.c.b16 %v4037, %v4036
    %v4043 = vpack.c.b16 %v4039, %v4038
    %v4049 = vsel %vm2089, %v4009, 0
    %4051 = vmatpush.bf16.msra.mxu0 0
    %4052 = vmatpush.bf16.msra.mxu0 0
    %4053 = vmatpush.bf16.msra.mxu0 0
    %4054 = vmatpush.bf16.msra.mxu0 0
    %4055 = vmatpush.bf16.msra.mxu0 %v4043
    %4056 = vmatpush.bf16.msra.mxu0 %v4042
    %4057 = vmatpush.bf16.msra.mxu0 %v4041
    %4058 = vmatpush.bf16.msra.mxu0 %v4040
    %4059 = vmatmul.bf16.gmra.mxu0 %v4049
    %v4060 = vpop.f32.mrf.mxu0
    %v4061 = vadd.f32 %v4022, %v4060
    %v4062 = vpop.f32.mrf.mxu0
    %v4063 = vadd.f32 %v4022, %v4062
    %4064 = vdwg.mxu0
    %v4065 = vadd.f32 %v4061, %v3879
    %v4066 = vadd.f32 %v4063, %v3880
    %s4067 = scalar_lea.vmem %s15, 1
    %v4068 = vld [vmem:[%s4067] sm:$0x1]
    %s4069 = scalar_lea.vmem %s16, 1
    %v4070 = vld [vmem:[%s4069] sm:$0x1]
    %v4071 = vsel %vm152, %v4065, 0.0
    %4072 = vadd.xlane.f32.xlu0 %v4071
    %v4073 = vpop.xlane.xlu0 %4072
    %v4074 = vsel %vm152, %v4066, 0.0
    %4075 = vadd.xlane.f32.xlu0 %v4074
    %v4076 = vpop.xlane.xlu0 %4075
    %v4077 = vmul.f32 %v4073, %v165
    %v4078 = vmul.f32 %v4076, %v165
    %v4079 = vsub.f32 %v4065, %v4077
    %v4080 = vsub.f32 %v4066, %v4078
    %v4081 = vmul.f32 %v4079, %v4079
    %v4082 = vmul.f32 %v4080, %v4080
    %v4083 = vsel %vm152, %v4081, 0.0
    %4084 = vadd.xlane.f32.xlu0 %v4083
    %v4085 = vpop.xlane.xlu0 %4084
    %v4086 = vsel %vm152, %v4082, 0.0
    %4087 = vadd.xlane.f32.xlu0 %v4086
    %v4088 = vpop.xlane.xlu0 %4087
    %v4089 = vmul.f32 %v4085, %v165
    %v4090 = vmul.f32 %v4088, %v165
    %v4091 = vadd.f32 %v4089, 1e-12
    %v4092 = vadd.f32 %v4090, 1e-12
    %v4093 = vrsqrt.pop %v4091
    %v4094 = vmul.f32 %v4093, %v4091
    %v4095 = vmul.f32 %v4094, %v4093
    %v4096 = vmul.f32 0.5, %v4095
    %v4097 = vsub.f32 1.5, %v4096
    %v4098 = vmul.f32 %v4093, %v4097
    %vm4099 = vweird.f32 %v4091
    %vm4100 = vweird.f32 %v4093
    %vm4101 = vmor %vm4099, %vm4100
    %v4102 = vsel %vm4101, %v4093, %v4098
    %v4103 = vrsqrt.pop %v4092
    %v4104 = vmul.f32 %v4103, %v4092
    %v4105 = vmul.f32 %v4104, %v4103
    %v4106 = vmul.f32 0.5, %v4105
    %v4107 = vsub.f32 1.5, %v4106
    %v4108 = vmul.f32 %v4103, %v4107
    %vm4109 = vweird.f32 %v4092
    %vm4110 = vweird.f32 %v4103
    %vm4111 = vmor %vm4109, %vm4110
    %v4112 = vsel %vm4111, %v4103, %v4108
    %v4113 = vmul.f32 %v4079, %v4102
    %v4114 = vmul.f32 %v4080, %v4112
    %v4116 = vperm.slane %v4068, 0
    %v4118 = vmul.f32 %v4113, %v4116
    %v4119 = vmul.f32 %v4114, %v4116
    %v4121 = vperm.slane %v4070, 0
    %v4123 = vadd.f32 %v4118, %v4121
    %v4124 = vadd.f32 %v4119, %v4121
    %v4127 = vrot.slane %v4124, 7
    %vm4128 = vcmask 1041409
    %v4129 = vsel %vm4128, %v4127, %v4123
    %vm4131 = vcmask 254976
    %4132 = vst.msk [vmem:[#allocation2] sm:$0x3] %vm4131, %v4129
    // Predicated region
    $region70: #{my_bert_forward.1} parent=1 // pred_check
      _
    $region71: #{my_bert_forward.1} parent=1 // pred_check_branch
      %4134 = sbr.rel (0) target = $region73
    $region72: #{my_bert_forward.1} parent=1 // pred_region
      %4136 = vsyncadd [#allocation3], 0
      %s4138 = sshll.u32 [#allocation2], 4
      %s4139 = int_to_ptr.vmem [resolvable:$true] %s4138
      %s4140 = sshll.u32 %s17, 4
      %s4141 = int_to_ptr.hbm [resolvable:$true] %s4140
      %4143 = dma.vmem_to_hbm [thread:$0]  %s4139, 32, %s4141, [#allocation3]
    $region73: #{my_bert_forward.1} parent=1 // pred_fallthru
      _
    // Predicated region
    $region74: #{my_bert_forward.1} parent=1 // pred_check
      _
    $region75: #{my_bert_forward.1} parent=1 // pred_check_branch
      %4145 = sbr.rel (0) target = $region77
    $region76: #{my_bert_forward.1} parent=1 // pred_region
      %4147 = dma.done [#allocation3], 32
    $region77: #{my_bert_forward.1} parent=1 // pred_fallthru
      _
    %4148 = vsyncpa [#allocation3], 1

</llo_original>
